<compile_context>
chip_gen: v7x
topology: tpu7x:2x2x1
jax: 0.10.0
libtpu: 0.0.40
codegen_flags: <defaults>
</compile_context>

<pallas_src>
import functools

import numpy as np
import jax
import jax.numpy as jnp
from jax import lax
from jax.experimental import pallas as pl
from jax.experimental.pallas import tpu as pltpu


def _round_up(n, m):
    return ((n + m - 1) // m) * m


def _fold_bias(b_ih, b_hh, h):
    # b_ih plus the r/z parts of b_hh; the n-part of b_hh must stay inside the
    # r * (...) term (PyTorch GRU semantics), so it is kept separate.
    return b_ih + jnp.concatenate(
        [b_hh[:, :2 * h], jnp.zeros_like(b_hh[:, 2 * h:])], axis=1)


# ---------------------------------------------------------------------------
# GRU cell math with separate biases — used only by the pure-JAX reference.
# ---------------------------------------------------------------------------
def _gru_step(x_t, h, w_ih, w_hh, b_ih, b_hh, hidden):
    gi = jnp.dot(x_t, w_ih, preferred_element_type=jnp.float32) + b_ih
    gh = jnp.dot(h, w_hh, preferred_element_type=jnp.float32) + b_hh
    r = jax.nn.sigmoid(gi[:, 0:hidden] + gh[:, 0:hidden])
    u = jax.nn.sigmoid(gi[:, hidden:2 * hidden] + gh[:, hidden:2 * hidden])
    n = jnp.tanh(gi[:, 2 * hidden:3 * hidden] + r * gh[:, 2 * hidden:3 * hidden])
    return (1.0 - u) * n + u * h


# ---------------------------------------------------------------------------
# Encoder kernel: one grid step per GRU direction (grid=(2,), "parallel").
# Batched input projection once, recurrence only keeps h @ W_hh.
# ---------------------------------------------------------------------------
def encoder_kernel(emb_ref, wih_ref, whh_ref, bfold_ref, bhhn_ref,
                   hout_ref, gi_scratch,
                   *, seq_len, batch, h_dim):
    emb = emb_ref[0].astype(jnp.bfloat16)            # (S*B, E)   time-major, this dir
    wih = wih_ref[0].astype(jnp.bfloat16)            # (E, 3H)
    whh = whh_ref[0].astype(jnp.bfloat16)            # (H, 3H)

    # all timesteps' input-side gates in one matmul; b_ih + b_hh[r,z] pre-folded
    gi_scratch[...] = (
        jnp.dot(emb, wih, preferred_element_type=jnp.float32) + bfold_ref[0])

    bhh_n = jnp.broadcast_to(bhhn_ref[0], (batch, h_dim))   # hoisted broadcast
    h0 = jnp.zeros((batch, h_dim), jnp.float32)

    def step(t, h):
        row = pl.multiple_of(t * batch, 8)
        gi = gi_scratch[pl.ds(row, batch), :]                    # (B, 3H)
        gh = jnp.dot(h.astype(jnp.bfloat16), whh,
                     preferred_element_type=jnp.float32)         # (B, 3H)
        r = jax.nn.sigmoid(gi[:, :h_dim] + gh[:, :h_dim])
        u = jax.nn.sigmoid(gi[:, h_dim:2 * h_dim] + gh[:, h_dim:2 * h_dim])
        n = jnp.tanh(gi[:, 2 * h_dim:] + r * (gh[:, 2 * h_dim:] + bhh_n))
        return (1.0 - u) * n + u * h

    hout_ref[0] = lax.fori_loop(0, seq_len, step, h0, unroll=True)


# ---------------------------------------------------------------------------
# Decoder kernel: fused fc_mu/fc_sigma + reparameterize prologue, then greedy
# loop with a SINGLE fused GRU matmul per step:
#   g = [onehot | h] @ W_comb + base4,    g laid out as [ru | n_in | n_hid]
#   r,u = sigmoid(g[:, :2*h2]);  n = tanh(g[:, 2h2:3h2] + r * g[:, 3h2:])
# ---------------------------------------------------------------------------
def decoder_kernel(hid_ref, eps_ref, o0_ref, tagsum_ref,
                   wmusig_ref, bmusig_ref,
                   wcomb_ref, wz4_ref, wtag4_ref, bias4_ref,
                   wout_ref, bout_ref,
                   out_ref, mu_ref, sig_ref,
                   *, max_len, h2, z_dim, vocab_pad):
    batch = hid_ref.shape[0]
    hidden = hid_ref[...]
    hb = hidden.astype(jnp.bfloat16)

    # --- fc_mu / fc_sigma (one matmul) + reparameterize (fused prologue) ---
    ms = jax.nn.relu(jnp.dot(hb, wmusig_ref[...].astype(jnp.bfloat16),
                             preferred_element_type=jnp.float32)
                     + bmusig_ref[...])                          # (B, 2*z_dim)
    mu = ms[:, :z_dim]
    sig = ms[:, z_dim:]
    z = mu + eps_ref[...] * jnp.exp(0.5 * sig)
    mu_ref[...] = mu
    sig_ref[...] = sig

    # --- loop-invariant precompute ---
    # base4 = [z@Wz + tag@Wtag + (b_ih + b_hh[ru]) | b_hh[n]]   shape (B, 4*h2)
    base4 = (jnp.dot(z.astype(jnp.bfloat16), wz4_ref[...].astype(jnp.bfloat16),
                     preferred_element_type=jnp.float32)
             + jnp.dot(tagsum_ref[...].astype(jnp.bfloat16),
                       wtag4_ref[...].astype(jnp.bfloat16),
                       preferred_element_type=jnp.float32)
             + bias4_ref[...])
    wcomb = wcomb_ref[...].astype(jnp.bfloat16)                  # (V_pad+h2, 4*h2)
    wout = wout_ref[...].astype(jnp.bfloat16)                    # (h2, V_pad)
    bout = jnp.broadcast_to(bout_ref[...], (batch, vocab_pad))   # hoisted
    iota_v = lax.broadcasted_iota(jnp.int32, (batch, vocab_pad), 1)

    out_ref[0] = jnp.zeros((batch, vocab_pad), jnp.float32)      # outputs[0] stays 0

    def step(t, carry):
        o, h = carry                                             # o:(B,1) i32, h:(B,h2) f32
        onehot = (iota_v == o).astype(jnp.bfloat16)              # (B, V_pad)
        # lane-aligned concat: onehot fills vregs [0, V_pad), h follows.
        xin = jnp.concatenate([onehot, h.astype(jnp.bfloat16)], axis=1)
        g = jnp.dot(xin, wcomb, preferred_element_type=jnp.float32) + base4
        r = jax.nn.sigmoid(g[:, :h2])
        u = jax.nn.sigmoid(g[:, h2:2 * h2])
        n = jnp.tanh(g[:, 2 * h2:3 * h2] + r * g[:, 3 * h2:])
        h_new = (1.0 - u) * n + u * h
        logits = jnp.dot(h_new.astype(jnp.bfloat16), wout,
                         preferred_element_type=jnp.float32) + bout
        out_ref[t] = logits                                      # lane-dense store
        # greedy argmax on f32 logits (first max on ties); padded cols are -1e9
        m = jnp.max(logits, axis=1, keepdims=True)
        nxt = jnp.min(jnp.where(logits == m, iota_v, vocab_pad),
                      axis=1, keepdims=True).astype(jnp.int32)
        return (nxt, h_new)

    lax.fori_loop(1, max_len, step, (o0_ref[...], hidden), unroll=True)


# ---------------------------------------------------------------------------
# Wrapper: gathers / padding / one-time weight refactoring in JAX, hot loops
# in Pallas.
# ---------------------------------------------------------------------------
def l_msvae_forward(params, x, y, eps, *, h_dim, max_len):
    seq_len, batch = x.shape
    vocab, emb_dim = params['embedding'].shape
    z_dim = params['w_mu'].shape[1]
    h2 = 2 * h_dim
    b_pad = max(8, _round_up(batch, 8))
    v_pad = max(128, _round_up(vocab, 128))

    # ---- glue: gathers + batch padding ------------------------------------
    emb_x = params['embedding'][x]                               # (S, B, E)
    emb_x = jnp.pad(emb_x, ((0, 0), (0, b_pad - batch), (0, 0)))
    tagsum = params['tag_embedding'][y].sum(axis=1)              # bmm(ones, tags)
    tagsum = jnp.pad(tagsum, ((0, b_pad - batch), (0, 0)))
    eps_p = jnp.pad(eps, ((0, b_pad - batch), (0, 0)))
    o0 = jnp.pad(x[0], (0, b_pad - batch)).astype(jnp.int32)[:, None]

    # ---- encoder: stacked per-direction weights, folded biases -------------
    emb_fwd = emb_x.reshape(seq_len * b_pad, emb_dim)
    emb_bwd = emb_x[::-1].reshape(seq_len * b_pad, emb_dim)
    emb_both = jnp.stack([emb_fwd, emb_bwd])                     # (2, S*B, E)
    wih_st = jnp.stack([params['w_ih_f'], params['w_ih_b']])     # (2, E, 3H)
    whh_st = jnp.stack([params['w_hh_f'], params['w_hh_b']])     # (2, H, 3H)
    bfold_st = jnp.stack([_fold_bias(params['b_ih_f'], params['b_hh_f'], h_dim),
                          _fold_bias(params['b_ih_b'], params['b_hh_b'], h_dim)])
    bhhn_st = jnp.stack([params['b_hh_f'][:, 2 * h_dim:],
                         params['b_hh_b'][:, 2 * h_dim:]])       # (2, 1, H)

    enc_flops = 2 * (2 * seq_len * b_pad * emb_dim * 3 * h_dim
                     + 2 * seq_len * b_pad * h_dim * 3 * h_dim)
    enc_bytes = 4 * (emb_both.size + wih_st.size + whh_st.size
                     + bfold_st.size + bhhn_st.size + 2 * b_pad * h_dim)
    h_dirs = pl.pallas_call(
        functools.partial(encoder_kernel, seq_len=seq_len, batch=b_pad,
                          h_dim=h_dim),
        out_shape=jax.ShapeDtypeStruct((2, b_pad, h_dim), jnp.float32),
        grid=(2,),
        in_specs=[
            pl.BlockSpec((1, seq_len * b_pad, emb_dim), lambda d: (d, 0, 0)),
            pl.BlockSpec((1, emb_dim, 3 * h_dim), lambda d: (d, 0, 0)),
            pl.BlockSpec((1, h_dim, 3 * h_dim), lambda d: (d, 0, 0)),
            pl.BlockSpec((1, 1, 3 * h_dim), lambda d: (d, 0, 0)),
            pl.BlockSpec((1, 1, h_dim), lambda d: (d, 0, 0)),
        ],
        out_specs=pl.BlockSpec((1, b_pad, h_dim), lambda d: (d, 0, 0)),
        scratch_shapes=[pltpu.VMEM((seq_len * b_pad, 3 * h_dim), jnp.float32)],
        compiler_params=pltpu.CompilerParams(
            dimension_semantics=("parallel",),
            vmem_limit_bytes=32 * 1024 * 1024),
        cost_estimate=pl.CostEstimate(flops=enc_flops,
                                      transcendentals=2 * seq_len * b_pad * 3 * h_dim,
                                      bytes_accessed=enc_bytes),
    )(emb_both, wih_st, whh_st, bfold_st, bhhn_st)

    # hidden = cat(forward_final, backward_final)
    hidden = jnp.concatenate([h_dirs[0], h_dirs[1]], axis=1)     # (B_pad, 2H)

    # ---- decoder: one-time weight refactoring -------------------------------
    w_ih_d = params['w_ih_d']                                    # (E+Z+T, 3*h2)
    w_emb = w_ih_d[:emb_dim]
    w_z = w_ih_d[emb_dim:emb_dim + z_dim]
    w_tag = w_ih_d[emb_dim + z_dim:]
    # fused embedding table (embedding @ W_emb), vocab padded to lane quantum
    ftab = jnp.pad(jnp.dot(params['embedding'], w_emb),
                   ((0, v_pad - vocab), (0, 0)))                 # (V_pad, 3*h2)
    # block-matrix combined recurrent weight  [onehot | h] @ W_comb -> (B, 4*h2)
    #   cols [0:3h2)  : onehot->gi(all gates), h->gh(r,u gates only)
    #   cols [3h2:4h2): h->gh(n gate)   (kept separate for r*(...) semantics)
    top = jnp.concatenate([ftab, jnp.zeros((v_pad, h2), ftab.dtype)], axis=1)
    bot = jnp.concatenate([params['w_hh_d'][:, :2 * h2],
                           jnp.zeros((h2, h2), ftab.dtype),
                           params['w_hh_d'][:, 2 * h2:]], axis=1)
    wcomb = jnp.concatenate([top, bot], axis=0)                  # (V_pad+h2, 4*h2)
    # loop-invariant projections of z / tag, padded to the 4*h2 layout
    wz4 = jnp.pad(w_z, ((0, 0), (0, h2)))                        # (Z, 4*h2)
    wtag4 = jnp.pad(w_tag, ((0, 0), (0, h2)))                    # (T, 4*h2)
    bias4 = jnp.concatenate([_fold_bias(params['b_ih_d'], params['b_hh_d'], h2),
                             params['b_hh_d'][:, 2 * h2:]], axis=1)   # (1, 4*h2)
    # fc_mu / fc_sigma fused
    wmusig = jnp.concatenate([params['w_mu'], params['w_sigma']], axis=1)
    bmusig = jnp.concatenate([params['b_mu'], params['b_sigma']], axis=1)
    # output projection, vocab padded; pad cols biased to -1e9 so argmax skips them
    w_out_p = jnp.pad(params['w_out'], ((0, 0), (0, v_pad - vocab)))
    b_out_p = jnp.pad(params['b_out'], ((0, 0), (0, v_pad - vocab)),
                      constant_values=-1e9)

    vmem = pl.BlockSpec(memory_space=pltpu.MemorySpace.VMEM)
    dec_flops = 2 * max_len * b_pad * ((v_pad + h2) * 4 * h2 + h2 * v_pad)
    dec_bytes = 4 * (wcomb.size + w_out_p.size + max_len * b_pad * v_pad)
    out_pad, mu_pad, sig_pad = pl.pallas_call(
        functools.partial(decoder_kernel, max_len=max_len, h2=h2,
                          z_dim=z_dim, vocab_pad=v_pad),
        out_shape=(
            jax.ShapeDtypeStruct((max_len, b_pad, v_pad), jnp.float32),
            jax.ShapeDtypeStruct((b_pad, z_dim), jnp.float32),
            jax.ShapeDtypeStruct((b_pad, z_dim), jnp.float32),
        ),
        in_specs=[vmem] * 12,
        out_specs=(vmem, vmem, vmem),
        compiler_params=pltpu.CompilerParams(
            vmem_limit_bytes=32 * 1024 * 1024),
        cost_estimate=pl.CostEstimate(flops=dec_flops,
                                      transcendentals=max_len * b_pad * 3 * h2,
                                      bytes_accessed=dec_bytes),
    )(hidden, eps_p, o0, tagsum,
      wmusig, bmusig, wcomb, wz4, wtag4, bias4, w_out_p, b_out_p)

    outputs = out_pad[:, :batch, :vocab]
    return outputs, mu_pad[:batch], sig_pad[:batch]


# ---------------------------------------------------------------------------
# Pure-JAX f32 reference (mirrors the PyTorch forward exactly).
# ---------------------------------------------------------------------------
def reference_forward(params, x, y, eps, *, h_dim, max_len):
    seq_len, batch = x.shape
    vocab, _ = params['embedding'].shape
    h2 = 2 * h_dim

    emb_x = params['embedding'][x]
    h_f = jnp.zeros((batch, h_dim), jnp.float32)
    h_b = jnp.zeros((batch, h_dim), jnp.float32)
    for t in range(seq_len):
        h_f = _gru_step(emb_x[t], h_f, params['w_ih_f'], params['w_hh_f'],
                        params['b_ih_f'], params['b_hh_f'], h_dim)
        h_b = _gru_step(emb_x[seq_len - 1 - t], h_b, params['w_ih_b'], params['w_hh_b'],
                        params['b_ih_b'], params['b_hh_b'], h_dim)
    hidden = jnp.concatenate([h_f, h_b], axis=1)
    mu = jax.nn.relu(jnp.dot(hidden, params['w_mu']) + params['b_mu'])
    sigma = jax.nn.relu(jnp.dot(hidden, params['w_sigma']) + params['b_sigma'])
    z = mu + eps * jnp.exp(0.5 * sigma)

    weighted = params['tag_embedding'][y].sum(axis=1)
    outputs = [jnp.zeros((batch, vocab), jnp.float32)]
    o = x[0]
    h = hidden
    for _ in range(1, max_len):
        embedded = params['embedding'][o]
        xin = jnp.concatenate([embedded, z, weighted], axis=1)
        h = _gru_step(xin, h, params['w_ih_d'], params['w_hh_d'],
                      params['b_ih_d'], params['b_hh_d'], h2)
        logits = jnp.dot(h, params['w_out']) + params['b_out']
        outputs.append(logits)
        o = jnp.argmax(logits, axis=1)
    return jnp.stack(outputs), mu, sigma


# ---------------------------------------------------------------------------
# Deterministic parameter init (shapes follow L_MSVAE.__init__).
# ---------------------------------------------------------------------------
def init_params(key, *, vocab, emb_dim, tag_vocab, tag_emb_dim, z_dim, h_dim):
    h2 = 2 * h_dim
    dec_in = emb_dim + z_dim + tag_emb_dim
    shapes = {
        'embedding': (vocab, emb_dim),
        'tag_embedding': (tag_vocab, tag_emb_dim),
        'w_ih_f': (emb_dim, 3 * h_dim), 'w_hh_f': (h_dim, 3 * h_dim),
        'b_ih_f': (1, 3 * h_dim), 'b_hh_f': (1, 3 * h_dim),
        'w_ih_b': (emb_dim, 3 * h_dim), 'w_hh_b': (h_dim, 3 * h_dim),
        'b_ih_b': (1, 3 * h_dim), 'b_hh_b': (1, 3 * h_dim),
        'w_mu': (h2, z_dim), 'b_mu': (1, z_dim),
        'w_sigma': (h2, z_dim), 'b_sigma': (1, z_dim),
        'w_ih_d': (dec_in, 3 * h2), 'w_hh_d': (h2, 3 * h2),
        'b_ih_d': (1, 3 * h2), 'b_hh_d': (1, 3 * h2),
        'w_out': (h2, vocab), 'b_out': (1, vocab),
    }
    keys = jax.random.split(key, len(shapes))
    params = {}
    for (name, shp), k in zip(shapes.items(), keys):
        params[name] = (0.1 * jax.random.normal(k, shp)).astype(jnp.float32)
    params['embedding'] = params['embedding'].at[0].set(0.0)   # padding_idx = 0
    return params


if __name__ == "__main__":
    VOCAB, EMB_DIM, TAG_EMB, Z_DIM, H_DIM = 64, 32, 16, 16, 32
    SEQ, BATCH, MAX_LEN, N_TAGS, TAG_VOCAB = 8, 4, 8, 3, 10

    root = jax.random.PRNGKey(0)
    k_params, k_x, k_y, k_eps = jax.random.split(root, 4)

    params = init_params(k_params, vocab=VOCAB, emb_dim=EMB_DIM,
                         tag_vocab=TAG_VOCAB, tag_emb_dim=TAG_EMB,
                         z_dim=Z_DIM, h_dim=H_DIM)

    x = jax.random.randint(k_x, (SEQ, BATCH), 0, VOCAB, dtype=jnp.int32)
    y = jax.random.randint(k_y, (BATCH, N_TAGS), 0, TAG_VOCAB, dtype=jnp.int32)
    # TODO(synk): torch.randn_like in reparameterize could be replaced by in-kernel
    # pltpu.prng_seed/stateful_normal; eps is fed from the host so the f32
    # reference can consume identical noise.
    eps = jax.random.normal(k_eps, (BATCH, Z_DIM), dtype=jnp.float32)

    fwd = jax.jit(functools.partial(l_msvae_forward, h_dim=H_DIM, max_len=MAX_LEN))
    outputs, mu, sigma = fwd(params, x, y, eps)
    jax.block_until_ready((outputs, mu, sigma))

    # validate against the pure-JAX f32 reference (skip post-argmax steps to
    # avoid tie-break sensitivity; step 1 exercises the full decoder path).
    # Tolerance 3e-2 accounts for bf16 MXU operands with f32 accumulation.
    ref_out, ref_mu, ref_sigma = reference_forward(params, x, y, eps,
                                                   h_dim=H_DIM, max_len=MAX_LEN)
    assert outputs.shape == (MAX_LEN, BATCH, VOCAB)
    np.testing.assert_allclose(np.asarray(outputs[0]), 0.0, atol=0.0)
    np.testing.assert_allclose(np.asarray(mu), np.asarray(ref_mu), rtol=3e-2, atol=3e-2)
    np.testing.assert_allclose(np.asarray(sigma), np.asarray(ref_sigma), rtol=3e-2, atol=3e-2)
    np.testing.assert_allclose(np.asarray(outputs[1]), np.asarray(ref_out[1]),
                               rtol=3e-2, atol=3e-2)

    print("KERNEL_OK")
</pallas_src>

<mosaic_0001>
module attributes {stable_mosaic.version = 11 : i64} {
  func.func @encoder_kernel(%arg0: i32, %arg1: memref<1x64x32xf32, #tpu.memory_space<vmem>>, %arg2: memref<1x32x96xf32, #tpu.memory_space<vmem>>, %arg3: memref<1x32x96xf32, #tpu.memory_space<vmem>>, %arg4: memref<1x1x96xf32, #tpu.memory_space<vmem>>, %arg5: memref<1x1x32xf32, #tpu.memory_space<vmem>>, %arg6: memref<1x8x32xf32, #tpu.memory_space<vmem>>, %arg7: memref<64x96xf32, #tpu.memory_space<vmem>>) attributes {dimension_semantics = [#tpu.dimension_semantics<parallel>], iteration_bounds = array<i64: 2>, scalar_prefetch = 0 : i64, scratch_operands = 1 : i64, tpu.core_type = #tpu.core_type<tc>, window_params = [{transform_indices = @transform_0, window_bounds = array<i64: 1, 64, 32>}, {transform_indices = @transform_1, window_bounds = array<i64: 1, 32, 96>}, {transform_indices = @transform_2, window_bounds = array<i64: 1, 32, 96>}, {transform_indices = @transform_3, window_bounds = array<i64: 1, 1, 96>}, {transform_indices = @transform_4, window_bounds = array<i64: 1, 1, 32>}, {transform_indices = @transform_5, window_bounds = array<i64: 1, 8, 32>}]} {
    %c0 = arith.constant 0 : index
    %c0_0 = arith.constant 0 : index
    %c0_1 = arith.constant 0 : index
    %0 = vector.load %arg1[%c0, %c0_0, %c0_1] : memref<1x64x32xf32, #tpu.memory_space<vmem>>, vector<1x64x32xf32>
    %1 = vector.shape_cast %0 : vector<1x64x32xf32> to vector<64x32xf32>
    %2 = arith.truncf %1 : vector<64x32xf32> to vector<64x32xbf16>
    %c0_2 = arith.constant 0 : index
    %c0_3 = arith.constant 0 : index
    %c0_4 = arith.constant 0 : index
    %3 = vector.load %arg2[%c0_2, %c0_3, %c0_4] : memref<1x32x96xf32, #tpu.memory_space<vmem>>, vector<1x32x96xf32>
    %4 = vector.shape_cast %3 : vector<1x32x96xf32> to vector<32x96xf32>
    %5 = arith.truncf %4 : vector<32x96xf32> to vector<32x96xbf16>
    %c0_5 = arith.constant 0 : index
    %c0_6 = arith.constant 0 : index
    %c0_7 = arith.constant 0 : index
    %6 = vector.load %arg3[%c0_5, %c0_6, %c0_7] : memref<1x32x96xf32, #tpu.memory_space<vmem>>, vector<1x32x96xf32>
    %7 = vector.shape_cast %6 : vector<1x32x96xf32> to vector<32x96xf32>
    %8 = arith.truncf %7 : vector<32x96xf32> to vector<32x96xbf16>
    %cst = arith.constant dense<0.000000e+00> : vector<64x96xf32>
    %9 = tpu.matmul %2, %5, %cst {dimension_numbers = #tpu.dot_dimension_numbers<[1], [0], [0], [1], [0, 0, 1, 1], [], []>} : vector<64x32xbf16>, vector<32x96xbf16>, vector<64x96xf32> -> vector<64x96xf32>
    %c0_8 = arith.constant 0 : index
    %c0_9 = arith.constant 0 : index
    %c0_10 = arith.constant 0 : index
    %10 = vector.load %arg4[%c0_8, %c0_9, %c0_10] : memref<1x1x96xf32, #tpu.memory_space<vmem>>, vector<1x1x96xf32>
    %11 = vector.shape_cast %10 : vector<1x1x96xf32> to vector<1x96xf32>
    %12 = vector.broadcast %11 : vector<1x96xf32> to vector<64x96xf32>
    %13 = arith.addf %9, %12 : vector<64x96xf32>
    %c0_11 = arith.constant 0 : index
    %c0_12 = arith.constant 0 : index
    %14 = vector.load %arg7[%c0_11, %c0_12] : memref<64x96xf32, #tpu.memory_space<vmem>>, vector<64x96xf32>
    tpu.vector_store %arg7[%c0_11, %c0_12], %13 {strides = array<i32>} : memref<64x96xf32, #tpu.memory_space<vmem>>, vector<64x96xf32>,
    %c0_13 = arith.constant 0 : index
    %c0_14 = arith.constant 0 : index
    %c0_15 = arith.constant 0 : index
    %15 = vector.load %arg5[%c0_13, %c0_14, %c0_15] : memref<1x1x32xf32, #tpu.memory_space<vmem>>, vector<1x1x32xf32>
    %16 = vector.shape_cast %15 : vector<1x1x32xf32> to vector<1x32xf32>
    %17 = vector.shape_cast %16 : vector<1x32xf32> to vector<1x32xf32>
    %18 = vector.broadcast %17 : vector<1x32xf32> to vector<8x32xf32>
    %cst_16 = arith.constant 0.000000e+00 : f32
    %19 = vector.broadcast %cst_16 : f32 to vector<8x32xf32>
    %c0_i32 = arith.constant 0 : i32
    %c8_i32 = arith.constant 8 : i32
    %20 = arith.muli %c0_i32, %c8_i32 : i32
    %21 = tpu.assume_multiple %20, 8 : i32
    %22 = arith.index_cast %21 : i32 to index
    %c0_17 = arith.constant 0 : index
    %23 = vector.load %arg7[%22, %c0_17] : memref<64x96xf32, #tpu.memory_space<vmem>>, vector<8x96xf32>
    %24 = arith.truncf %19 : vector<8x32xf32> to vector<8x32xbf16>
    %cst_18 = arith.constant dense<0.000000e+00> : vector<8x96xf32>
    %25 = tpu.matmul %24, %8, %cst_18 {dimension_numbers = #tpu.dot_dimension_numbers<[1], [0], [0], [1], [0, 0, 1, 1], [], []>} : vector<8x32xbf16>, vector<32x96xbf16>, vector<8x96xf32> -> vector<8x96xf32>
    %26 = vector.extract_strided_slice %23 {offsets = [0, 0], sizes = [8, 32], strides = [1, 1]} : vector<8x96xf32> to vector<8x32xf32>
    %27 = vector.extract_strided_slice %25 {offsets = [0, 0], sizes = [8, 32], strides = [1, 1]} : vector<8x96xf32> to vector<8x32xf32>
    %28 = arith.addf %26, %27 : vector<8x32xf32>
    %29 = arith.negf %28 : vector<8x32xf32>
    %30 = math.exp %29 : vector<8x32xf32>
    %cst_19 = arith.constant 1.000000e+00 : f32
    %31 = vector.broadcast %cst_19 : f32 to vector<8x32xf32>
    %32 = arith.addf %31, %30 : vector<8x32xf32>
    %33 = arith.divf %31, %32 : vector<8x32xf32>
    %34 = vector.extract_strided_slice %23 {offsets = [0, 32], sizes = [8, 32], strides = [1, 1]} : vector<8x96xf32> to vector<8x32xf32>
    %35 = vector.extract_strided_slice %25 {offsets = [0, 32], sizes = [8, 32], strides = [1, 1]} : vector<8x96xf32> to vector<8x32xf32>
    %36 = arith.addf %34, %35 : vector<8x32xf32>
    %37 = arith.negf %36 : vector<8x32xf32>
    %38 = math.exp %37 : vector<8x32xf32>
    %cst_20 = arith.constant 1.000000e+00 : f32
    %39 = vector.broadcast %cst_20 : f32 to vector<8x32xf32>
    %40 = arith.addf %39, %38 : vector<8x32xf32>
    %41 = arith.divf %39, %40 : vector<8x32xf32>
    %42 = vector.extract_strided_slice %23 {offsets = [0, 64], sizes = [8, 32], strides = [1, 1]} : vector<8x96xf32> to vector<8x32xf32>
    %43 = vector.extract_strided_slice %25 {offsets = [0, 64], sizes = [8, 32], strides = [1, 1]} : vector<8x96xf32> to vector<8x32xf32>
    %44 = arith.addf %43, %18 : vector<8x32xf32>
    %45 = arith.mulf %33, %44 : vector<8x32xf32>
    %46 = arith.addf %42, %45 : vector<8x32xf32>
    %47 = math.tanh %46 : vector<8x32xf32>
    %cst_21 = arith.constant 1.000000e+00 : f32
    %48 = vector.broadcast %cst_21 : f32 to vector<8x32xf32>
    %49 = arith.subf %48, %41 : vector<8x32xf32>
    %50 = arith.mulf %49, %47 : vector<8x32xf32>
    %51 = arith.mulf %41, %19 : vector<8x32xf32>
    %52 = arith.addf %50, %51 : vector<8x32xf32>
    %c1_i32 = arith.constant 1 : i32
    %c8_i32_22 = arith.constant 8 : i32
    %53 = arith.muli %c1_i32, %c8_i32_22 : i32
    %54 = tpu.assume_multiple %53, 8 : i32
    %55 = arith.index_cast %54 : i32 to index
    %c0_23 = arith.constant 0 : index
    %56 = vector.load %arg7[%55, %c0_23] : memref<64x96xf32, #tpu.memory_space<vmem>>, vector<8x96xf32>
    %57 = arith.truncf %52 : vector<8x32xf32> to vector<8x32xbf16>
    %cst_24 = arith.constant dense<0.000000e+00> : vector<8x96xf32>
    %58 = tpu.matmul %57, %8, %cst_24 {dimension_numbers = #tpu.dot_dimension_numbers<[1], [0], [0], [1], [0, 0, 1, 1], [], []>} : vector<8x32xbf16>, vector<32x96xbf16>, vector<8x96xf32> -> vector<8x96xf32>
    %59 = vector.extract_strided_slice %56 {offsets = [0, 0], sizes = [8, 32], strides = [1, 1]} : vector<8x96xf32> to vector<8x32xf32>
    %60 = vector.extract_strided_slice %58 {offsets = [0, 0], sizes = [8, 32], strides = [1, 1]} : vector<8x96xf32> to vector<8x32xf32>
    %61 = arith.addf %59, %60 : vector<8x32xf32>
    %62 = arith.negf %61 : vector<8x32xf32>
    %63 = math.exp %62 : vector<8x32xf32>
    %cst_25 = arith.constant 1.000000e+00 : f32
    %64 = vector.broadcast %cst_25 : f32 to vector<8x32xf32>
    %65 = arith.addf %64, %63 : vector<8x32xf32>
    %66 = arith.divf %64, %65 : vector<8x32xf32>
    %67 = vector.extract_strided_slice %56 {offsets = [0, 32], sizes = [8, 32], strides = [1, 1]} : vector<8x96xf32> to vector<8x32xf32>
    %68 = vector.extract_strided_slice %58 {offsets = [0, 32], sizes = [8, 32], strides = [1, 1]} : vector<8x96xf32> to vector<8x32xf32>
    %69 = arith.addf %67, %68 : vector<8x32xf32>
    %70 = arith.negf %69 : vector<8x32xf32>
    %71 = math.exp %70 : vector<8x32xf32>
    %cst_26 = arith.constant 1.000000e+00 : f32
    %72 = vector.broadcast %cst_26 : f32 to vector<8x32xf32>
    %73 = arith.addf %72, %71 : vector<8x32xf32>
    %74 = arith.divf %72, %73 : vector<8x32xf32>
    %75 = vector.extract_strided_slice %56 {offsets = [0, 64], sizes = [8, 32], strides = [1, 1]} : vector<8x96xf32> to vector<8x32xf32>
    %76 = vector.extract_strided_slice %58 {offsets = [0, 64], sizes = [8, 32], strides = [1, 1]} : vector<8x96xf32> to vector<8x32xf32>
    %77 = arith.addf %76, %18 : vector<8x32xf32>
    %78 = arith.mulf %66, %77 : vector<8x32xf32>
    %79 = arith.addf %75, %78 : vector<8x32xf32>
    %80 = math.tanh %79 : vector<8x32xf32>
    %cst_27 = arith.constant 1.000000e+00 : f32
    %81 = vector.broadcast %cst_27 : f32 to vector<8x32xf32>
    %82 = arith.subf %81, %74 : vector<8x32xf32>
    %83 = arith.mulf %82, %80 : vector<8x32xf32>
    %84 = arith.mulf %74, %52 : vector<8x32xf32>
    %85 = arith.addf %83, %84 : vector<8x32xf32>
    %c2_i32 = arith.constant 2 : i32
    %c8_i32_28 = arith.constant 8 : i32
    %86 = arith.muli %c2_i32, %c8_i32_28 : i32
    %87 = tpu.assume_multiple %86, 8 : i32
    %88 = arith.index_cast %87 : i32 to index
    %c0_29 = arith.constant 0 : index
    %89 = vector.load %arg7[%88, %c0_29] : memref<64x96xf32, #tpu.memory_space<vmem>>, vector<8x96xf32>
    %90 = arith.truncf %85 : vector<8x32xf32> to vector<8x32xbf16>
    %cst_30 = arith.constant dense<0.000000e+00> : vector<8x96xf32>
    %91 = tpu.matmul %90, %8, %cst_30 {dimension_numbers = #tpu.dot_dimension_numbers<[1], [0], [0], [1], [0, 0, 1, 1], [], []>} : vector<8x32xbf16>, vector<32x96xbf16>, vector<8x96xf32> -> vector<8x96xf32>
    %92 = vector.extract_strided_slice %89 {offsets = [0, 0], sizes = [8, 32], strides = [1, 1]} : vector<8x96xf32> to vector<8x32xf32>
    %93 = vector.extract_strided_slice %91 {offsets = [0, 0], sizes = [8, 32], strides = [1, 1]} : vector<8x96xf32> to vector<8x32xf32>
    %94 = arith.addf %92, %93 : vector<8x32xf32>
    %95 = arith.negf %94 : vector<8x32xf32>
    %96 = math.exp %95 : vector<8x32xf32>
    %cst_31 = arith.constant 1.000000e+00 : f32
    %97 = vector.broadcast %cst_31 : f32 to vector<8x32xf32>
    %98 = arith.addf %97, %96 : vector<8x32xf32>
    %99 = arith.divf %97, %98 : vector<8x32xf32>
    %100 = vector.extract_strided_slice %89 {offsets = [0, 32], sizes = [8, 32], strides = [1, 1]} : vector<8x96xf32> to vector<8x32xf32>
    %101 = vector.extract_strided_slice %91 {offsets = [0, 32], sizes = [8, 32], strides = [1, 1]} : vector<8x96xf32> to vector<8x32xf32>
    %102 = arith.addf %100, %101 : vector<8x32xf32>
    %103 = arith.negf %102 : vector<8x32xf32>
    %104 = math.exp %103 : vector<8x32xf32>
    %cst_32 = arith.constant 1.000000e+00 : f32
    %105 = vector.broadcast %cst_32 : f32 to vector<8x32xf32>
    %106 = arith.addf %105, %104 : vector<8x32xf32>
    %107 = arith.divf %105, %106 : vector<8x32xf32>
    %108 = vector.extract_strided_slice %89 {offsets = [0, 64], sizes = [8, 32], strides = [1, 1]} : vector<8x96xf32> to vector<8x32xf32>
    %109 = vector.extract_strided_slice %91 {offsets = [0, 64], sizes = [8, 32], strides = [1, 1]} : vector<8x96xf32> to vector<8x32xf32>
    %110 = arith.addf %109, %18 : vector<8x32xf32>
    %111 = arith.mulf %99, %110 : vector<8x32xf32>
    %112 = arith.addf %108, %111 : vector<8x32xf32>
    %113 = math.tanh %112 : vector<8x32xf32>
    %cst_33 = arith.constant 1.000000e+00 : f32
    %114 = vector.broadcast %cst_33 : f32 to vector<8x32xf32>
    %115 = arith.subf %114, %107 : vector<8x32xf32>
    %116 = arith.mulf %115, %113 : vector<8x32xf32>
    %117 = arith.mulf %107, %85 : vector<8x32xf32>
    %118 = arith.addf %116, %117 : vector<8x32xf32>
    %c3_i32 = arith.constant 3 : i32
    %c8_i32_34 = arith.constant 8 : i32
    %119 = arith.muli %c3_i32, %c8_i32_34 : i32
    %120 = tpu.assume_multiple %119, 8 : i32
    %121 = arith.index_cast %120 : i32 to index
    %c0_35 = arith.constant 0 : index
    %122 = vector.load %arg7[%121, %c0_35] : memref<64x96xf32, #tpu.memory_space<vmem>>, vector<8x96xf32>
    %123 = arith.truncf %118 : vector<8x32xf32> to vector<8x32xbf16>
    %cst_36 = arith.constant dense<0.000000e+00> : vector<8x96xf32>
    %124 = tpu.matmul %123, %8, %cst_36 {dimension_numbers = #tpu.dot_dimension_numbers<[1], [0], [0], [1], [0, 0, 1, 1], [], []>} : vector<8x32xbf16>, vector<32x96xbf16>, vector<8x96xf32> -> vector<8x96xf32>
    %125 = vector.extract_strided_slice %122 {offsets = [0, 0], sizes = [8, 32], strides = [1, 1]} : vector<8x96xf32> to vector<8x32xf32>
    %126 = vector.extract_strided_slice %124 {offsets = [0, 0], sizes = [8, 32], strides = [1, 1]} : vector<8x96xf32> to vector<8x32xf32>
    %127 = arith.addf %125, %126 : vector<8x32xf32>
    %128 = arith.negf %127 : vector<8x32xf32>
    %129 = math.exp %128 : vector<8x32xf32>
    %cst_37 = arith.constant 1.000000e+00 : f32
    %130 = vector.broadcast %cst_37 : f32 to vector<8x32xf32>
    %131 = arith.addf %130, %129 : vector<8x32xf32>
    %132 = arith.divf %130, %131 : vector<8x32xf32>
    %133 = vector.extract_strided_slice %122 {offsets = [0, 32], sizes = [8, 32], strides = [1, 1]} : vector<8x96xf32> to vector<8x32xf32>
    %134 = vector.extract_strided_slice %124 {offsets = [0, 32], sizes = [8, 32], strides = [1, 1]} : vector<8x96xf32> to vector<8x32xf32>
    %135 = arith.addf %133, %134 : vector<8x32xf32>
    %136 = arith.negf %135 : vector<8x32xf32>
    %137 = math.exp %136 : vector<8x32xf32>
    %cst_38 = arith.constant 1.000000e+00 : f32
    %138 = vector.broadcast %cst_38 : f32 to vector<8x32xf32>
    %139 = arith.addf %138, %137 : vector<8x32xf32>
    %140 = arith.divf %138, %139 : vector<8x32xf32>
    %141 = vector.extract_strided_slice %122 {offsets = [0, 64], sizes = [8, 32], strides = [1, 1]} : vector<8x96xf32> to vector<8x32xf32>
    %142 = vector.extract_strided_slice %124 {offsets = [0, 64], sizes = [8, 32], strides = [1, 1]} : vector<8x96xf32> to vector<8x32xf32>
    %143 = arith.addf %142, %18 : vector<8x32xf32>
    %144 = arith.mulf %132, %143 : vector<8x32xf32>
    %145 = arith.addf %141, %144 : vector<8x32xf32>
    %146 = math.tanh %145 : vector<8x32xf32>
    %cst_39 = arith.constant 1.000000e+00 : f32
    %147 = vector.broadcast %cst_39 : f32 to vector<8x32xf32>
    %148 = arith.subf %147, %140 : vector<8x32xf32>
    %149 = arith.mulf %148, %146 : vector<8x32xf32>
    %150 = arith.mulf %140, %118 : vector<8x32xf32>
    %151 = arith.addf %149, %150 : vector<8x32xf32>
    %c4_i32 = arith.constant 4 : i32
    %c8_i32_40 = arith.constant 8 : i32
    %152 = arith.muli %c4_i32, %c8_i32_40 : i32
    %153 = tpu.assume_multiple %152, 8 : i32
    %154 = arith.index_cast %153 : i32 to index
    %c0_41 = arith.constant 0 : index
    %155 = vector.load %arg7[%154, %c0_41] : memref<64x96xf32, #tpu.memory_space<vmem>>, vector<8x96xf32>
    %156 = arith.truncf %151 : vector<8x32xf32> to vector<8x32xbf16>
    %cst_42 = arith.constant dense<0.000000e+00> : vector<8x96xf32>
    %157 = tpu.matmul %156, %8, %cst_42 {dimension_numbers = #tpu.dot_dimension_numbers<[1], [0], [0], [1], [0, 0, 1, 1], [], []>} : vector<8x32xbf16>, vector<32x96xbf16>, vector<8x96xf32> -> vector<8x96xf32>
    %158 = vector.extract_strided_slice %155 {offsets = [0, 0], sizes = [8, 32], strides = [1, 1]} : vector<8x96xf32> to vector<8x32xf32>
    %159 = vector.extract_strided_slice %157 {offsets = [0, 0], sizes = [8, 32], strides = [1, 1]} : vector<8x96xf32> to vector<8x32xf32>
    %160 = arith.addf %158, %159 : vector<8x32xf32>
    %161 = arith.negf %160 : vector<8x32xf32>
    %162 = math.exp %161 : vector<8x32xf32>
    %cst_43 = arith.constant 1.000000e+00 : f32
    %163 = vector.broadcast %cst_43 : f32 to vector<8x32xf32>
    %164 = arith.addf %163, %162 : vector<8x32xf32>
    %165 = arith.divf %163, %164 : vector<8x32xf32>
    %166 = vector.extract_strided_slice %155 {offsets = [0, 32], sizes = [8, 32], strides = [1, 1]} : vector<8x96xf32> to vector<8x32xf32>
    %167 = vector.extract_strided_slice %157 {offsets = [0, 32], sizes = [8, 32], strides = [1, 1]} : vector<8x96xf32> to vector<8x32xf32>
    %168 = arith.addf %166, %167 : vector<8x32xf32>
    %169 = arith.negf %168 : vector<8x32xf32>
    %170 = math.exp %169 : vector<8x32xf32>
    %cst_44 = arith.constant 1.000000e+00 : f32
    %171 = vector.broadcast %cst_44 : f32 to vector<8x32xf32>
    %172 = arith.addf %171, %170 : vector<8x32xf32>
    %173 = arith.divf %171, %172 : vector<8x32xf32>
    %174 = vector.extract_strided_slice %155 {offsets = [0, 64], sizes = [8, 32], strides = [1, 1]} : vector<8x96xf32> to vector<8x32xf32>
    %175 = vector.extract_strided_slice %157 {offsets = [0, 64], sizes = [8, 32], strides = [1, 1]} : vector<8x96xf32> to vector<8x32xf32>
    %176 = arith.addf %175, %18 : vector<8x32xf32>
    %177 = arith.mulf %165, %176 : vector<8x32xf32>
    %178 = arith.addf %174, %177 : vector<8x32xf32>
    %179 = math.tanh %178 : vector<8x32xf32>
    %cst_45 = arith.constant 1.000000e+00 : f32
    %180 = vector.broadcast %cst_45 : f32 to vector<8x32xf32>
    %181 = arith.subf %180, %173 : vector<8x32xf32>
    %182 = arith.mulf %181, %179 : vector<8x32xf32>
    %183 = arith.mulf %173, %151 : vector<8x32xf32>
    %184 = arith.addf %182, %183 : vector<8x32xf32>
    %c5_i32 = arith.constant 5 : i32
    %c8_i32_46 = arith.constant 8 : i32
    %185 = arith.muli %c5_i32, %c8_i32_46 : i32
    %186 = tpu.assume_multiple %185, 8 : i32
    %187 = arith.index_cast %186 : i32 to index
    %c0_47 = arith.constant 0 : index
    %188 = vector.load %arg7[%187, %c0_47] : memref<64x96xf32, #tpu.memory_space<vmem>>, vector<8x96xf32>
    %189 = arith.truncf %184 : vector<8x32xf32> to vector<8x32xbf16>
    %cst_48 = arith.constant dense<0.000000e+00> : vector<8x96xf32>
    %190 = tpu.matmul %189, %8, %cst_48 {dimension_numbers = #tpu.dot_dimension_numbers<[1], [0], [0], [1], [0, 0, 1, 1], [], []>} : vector<8x32xbf16>, vector<32x96xbf16>, vector<8x96xf32> -> vector<8x96xf32>
    %191 = vector.extract_strided_slice %188 {offsets = [0, 0], sizes = [8, 32], strides = [1, 1]} : vector<8x96xf32> to vector<8x32xf32>
    %192 = vector.extract_strided_slice %190 {offsets = [0, 0], sizes = [8, 32], strides = [1, 1]} : vector<8x96xf32> to vector<8x32xf32>
    %193 = arith.addf %191, %192 : vector<8x32xf32>
    %194 = arith.negf %193 : vector<8x32xf32>
    %195 = math.exp %194 : vector<8x32xf32>
    %cst_49 = arith.constant 1.000000e+00 : f32
    %196 = vector.broadcast %cst_49 : f32 to vector<8x32xf32>
    %197 = arith.addf %196, %195 : vector<8x32xf32>
    %198 = arith.divf %196, %197 : vector<8x32xf32>
    %199 = vector.extract_strided_slice %188 {offsets = [0, 32], sizes = [8, 32], strides = [1, 1]} : vector<8x96xf32> to vector<8x32xf32>
    %200 = vector.extract_strided_slice %190 {offsets = [0, 32], sizes = [8, 32], strides = [1, 1]} : vector<8x96xf32> to vector<8x32xf32>
    %201 = arith.addf %199, %200 : vector<8x32xf32>
    %202 = arith.negf %201 : vector<8x32xf32>
    %203 = math.exp %202 : vector<8x32xf32>
    %cst_50 = arith.constant 1.000000e+00 : f32
    %204 = vector.broadcast %cst_50 : f32 to vector<8x32xf32>
    %205 = arith.addf %204, %203 : vector<8x32xf32>
    %206 = arith.divf %204, %205 : vector<8x32xf32>
    %207 = vector.extract_strided_slice %188 {offsets = [0, 64], sizes = [8, 32], strides = [1, 1]} : vector<8x96xf32> to vector<8x32xf32>
    %208 = vector.extract_strided_slice %190 {offsets = [0, 64], sizes = [8, 32], strides = [1, 1]} : vector<8x96xf32> to vector<8x32xf32>
    %209 = arith.addf %208, %18 : vector<8x32xf32>
    %210 = arith.mulf %198, %209 : vector<8x32xf32>
    %211 = arith.addf %207, %210 : vector<8x32xf32>
    %212 = math.tanh %211 : vector<8x32xf32>
    %cst_51 = arith.constant 1.000000e+00 : f32
    %213 = vector.broadcast %cst_51 : f32 to vector<8x32xf32>
    %214 = arith.subf %213, %206 : vector<8x32xf32>
    %215 = arith.mulf %214, %212 : vector<8x32xf32>
    %216 = arith.mulf %206, %184 : vector<8x32xf32>
    %217 = arith.addf %215, %216 : vector<8x32xf32>
    %c6_i32 = arith.constant 6 : i32
    %c8_i32_52 = arith.constant 8 : i32
    %218 = arith.muli %c6_i32, %c8_i32_52 : i32
    %219 = tpu.assume_multiple %218, 8 : i32
    %220 = arith.index_cast %219 : i32 to index
    %c0_53 = arith.constant 0 : index
    %221 = vector.load %arg7[%220, %c0_53] : memref<64x96xf32, #tpu.memory_space<vmem>>, vector<8x96xf32>
    %222 = arith.truncf %217 : vector<8x32xf32> to vector<8x32xbf16>
    %cst_54 = arith.constant dense<0.000000e+00> : vector<8x96xf32>
    %223 = tpu.matmul %222, %8, %cst_54 {dimension_numbers = #tpu.dot_dimension_numbers<[1], [0], [0], [1], [0, 0, 1, 1], [], []>} : vector<8x32xbf16>, vector<32x96xbf16>, vector<8x96xf32> -> vector<8x96xf32>
    %224 = vector.extract_strided_slice %221 {offsets = [0, 0], sizes = [8, 32], strides = [1, 1]} : vector<8x96xf32> to vector<8x32xf32>
    %225 = vector.extract_strided_slice %223 {offsets = [0, 0], sizes = [8, 32], strides = [1, 1]} : vector<8x96xf32> to vector<8x32xf32>
    %226 = arith.addf %224, %225 : vector<8x32xf32>
    %227 = arith.negf %226 : vector<8x32xf32>
    %228 = math.exp %227 : vector<8x32xf32>
    %cst_55 = arith.constant 1.000000e+00 : f32
    %229 = vector.broadcast %cst_55 : f32 to vector<8x32xf32>
    %230 = arith.addf %229, %228 : vector<8x32xf32>
    %231 = arith.divf %229, %230 : vector<8x32xf32>
    %232 = vector.extract_strided_slice %221 {offsets = [0, 32], sizes = [8, 32], strides = [1, 1]} : vector<8x96xf32> to vector<8x32xf32>
    %233 = vector.extract_strided_slice %223 {offsets = [0, 32], sizes = [8, 32], strides = [1, 1]} : vector<8x96xf32> to vector<8x32xf32>
    %234 = arith.addf %232, %233 : vector<8x32xf32>
    %235 = arith.negf %234 : vector<8x32xf32>
    %236 = math.exp %235 : vector<8x32xf32>
    %cst_56 = arith.constant 1.000000e+00 : f32
    %237 = vector.broadcast %cst_56 : f32 to vector<8x32xf32>
    %238 = arith.addf %237, %236 : vector<8x32xf32>
    %239 = arith.divf %237, %238 : vector<8x32xf32>
    %240 = vector.extract_strided_slice %221 {offsets = [0, 64], sizes = [8, 32], strides = [1, 1]} : vector<8x96xf32> to vector<8x32xf32>
    %241 = vector.extract_strided_slice %223 {offsets = [0, 64], sizes = [8, 32], strides = [1, 1]} : vector<8x96xf32> to vector<8x32xf32>
    %242 = arith.addf %241, %18 : vector<8x32xf32>
    %243 = arith.mulf %231, %242 : vector<8x32xf32>
    %244 = arith.addf %240, %243 : vector<8x32xf32>
    %245 = math.tanh %244 : vector<8x32xf32>
    %cst_57 = arith.constant 1.000000e+00 : f32
    %246 = vector.broadcast %cst_57 : f32 to vector<8x32xf32>
    %247 = arith.subf %246, %239 : vector<8x32xf32>
    %248 = arith.mulf %247, %245 : vector<8x32xf32>
    %249 = arith.mulf %239, %217 : vector<8x32xf32>
    %250 = arith.addf %248, %249 : vector<8x32xf32>
    %c7_i32 = arith.constant 7 : i32
    %c8_i32_58 = arith.constant 8 : i32
    %251 = arith.muli %c7_i32, %c8_i32_58 : i32
    %252 = tpu.assume_multiple %251, 8 : i32
    %253 = arith.index_cast %252 : i32 to index
    %c0_59 = arith.constant 0 : index
    %254 = vector.load %arg7[%253, %c0_59] : memref<64x96xf32, #tpu.memory_space<vmem>>, vector<8x96xf32>
    %255 = arith.truncf %250 : vector<8x32xf32> to vector<8x32xbf16>
    %cst_60 = arith.constant dense<0.000000e+00> : vector<8x96xf32>
    %256 = tpu.matmul %255, %8, %cst_60 {dimension_numbers = #tpu.dot_dimension_numbers<[1], [0], [0], [1], [0, 0, 1, 1], [], []>} : vector<8x32xbf16>, vector<32x96xbf16>, vector<8x96xf32> -> vector<8x96xf32>
    %257 = vector.extract_strided_slice %254 {offsets = [0, 0], sizes = [8, 32], strides = [1, 1]} : vector<8x96xf32> to vector<8x32xf32>
    %258 = vector.extract_strided_slice %256 {offsets = [0, 0], sizes = [8, 32], strides = [1, 1]} : vector<8x96xf32> to vector<8x32xf32>
    %259 = arith.addf %257, %258 : vector<8x32xf32>
    %260 = arith.negf %259 : vector<8x32xf32>
    %261 = math.exp %260 : vector<8x32xf32>
    %cst_61 = arith.constant 1.000000e+00 : f32
    %262 = vector.broadcast %cst_61 : f32 to vector<8x32xf32>
    %263 = arith.addf %262, %261 : vector<8x32xf32>
    %264 = arith.divf %262, %263 : vector<8x32xf32>
    %265 = vector.extract_strided_slice %254 {offsets = [0, 32], sizes = [8, 32], strides = [1, 1]} : vector<8x96xf32> to vector<8x32xf32>
    %266 = vector.extract_strided_slice %256 {offsets = [0, 32], sizes = [8, 32], strides = [1, 1]} : vector<8x96xf32> to vector<8x32xf32>
    %267 = arith.addf %265, %266 : vector<8x32xf32>
    %268 = arith.negf %267 : vector<8x32xf32>
    %269 = math.exp %268 : vector<8x32xf32>
    %cst_62 = arith.constant 1.000000e+00 : f32
    %270 = vector.broadcast %cst_62 : f32 to vector<8x32xf32>
    %271 = arith.addf %270, %269 : vector<8x32xf32>
    %272 = arith.divf %270, %271 : vector<8x32xf32>
    %273 = vector.extract_strided_slice %254 {offsets = [0, 64], sizes = [8, 32], strides = [1, 1]} : vector<8x96xf32> to vector<8x32xf32>
    %274 = vector.extract_strided_slice %256 {offsets = [0, 64], sizes = [8, 32], strides = [1, 1]} : vector<8x96xf32> to vector<8x32xf32>
    %275 = arith.addf %274, %18 : vector<8x32xf32>
    %276 = arith.mulf %264, %275 : vector<8x32xf32>
    %277 = arith.addf %273, %276 : vector<8x32xf32>
    %278 = math.tanh %277 : vector<8x32xf32>
    %cst_63 = arith.constant 1.000000e+00 : f32
    %279 = vector.broadcast %cst_63 : f32 to vector<8x32xf32>
    %280 = arith.subf %279, %272 : vector<8x32xf32>
    %281 = arith.mulf %280, %278 : vector<8x32xf32>
    %282 = arith.mulf %272, %250 : vector<8x32xf32>
    %283 = arith.addf %281, %282 : vector<8x32xf32>
    %c8_i32_64 = arith.constant 8 : i32
    %c0_65 = arith.constant 0 : index
    %c0_66 = arith.constant 0 : index
    %c0_67 = arith.constant 0 : index
    %284 = vector.load %arg6[%c0_65, %c0_66, %c0_67] : memref<1x8x32xf32, #tpu.memory_space<vmem>>, vector<1x8x32xf32>
    %285 = vector.shape_cast %284 : vector<1x8x32xf32> to vector<8x32xf32>
    %286 = vector.shape_cast %283 : vector<8x32xf32> to vector<1x8x32xf32>
    tpu.vector_store %arg6[%c0_65, %c0_66, %c0_67], %286 {strides = array<i32>} : memref<1x8x32xf32, #tpu.memory_space<vmem>>, vector<1x8x32xf32>,
    return
  }
  func.func @transform_0(%arg0: i32) -> (i32, i32, i32) {
    %c0_i32 = arith.constant 0 : i32
    %c0_i32_0 = arith.constant 0 : i32
    %c0_i32_1 = arith.constant 0 : i32
    return %arg0, %c0_i32, %c0_i32_0 : i32, i32, i32
  }
  func.func @transform_1(%arg0: i32) -> (i32, i32, i32) {
    %c0_i32 = arith.constant 0 : i32
    %c0_i32_0 = arith.constant 0 : i32
    %c0_i32_1 = arith.constant 0 : i32
    return %arg0, %c0_i32, %c0_i32_0 : i32, i32, i32
  }
  func.func @transform_2(%arg0: i32) -> (i32, i32, i32) {
    %c0_i32 = arith.constant 0 : i32
    %c0_i32_0 = arith.constant 0 : i32
    %c0_i32_1 = arith.constant 0 : i32
    return %arg0, %c0_i32, %c0_i32_0 : i32, i32, i32
  }
  func.func @transform_3(%arg0: i32) -> (i32, i32, i32) {
    %c0_i32 = arith.constant 0 : i32
    %c0_i32_0 = arith.constant 0 : i32
    %c0_i32_1 = arith.constant 0 : i32
    return %arg0, %c0_i32, %c0_i32_0 : i32, i32, i32
  }
  func.func @transform_4(%arg0: i32) -> (i32, i32, i32) {
    %c0_i32 = arith.constant 0 : i32
    %c0_i32_0 = arith.constant 0 : i32
    %c0_i32_1 = arith.constant 0 : i32
    return %arg0, %c0_i32, %c0_i32_0 : i32, i32, i32
  }
  func.func @transform_5(%arg0: i32) -> (i32, i32, i32) {
    %c0_i32 = arith.constant 0 : i32
    %c0_i32_0 = arith.constant 0 : i32
    %c0_i32_1 = arith.constant 0 : i32
    return %arg0, %c0_i32, %c0_i32_0 : i32, i32, i32
  }
}

module attributes {stable_mosaic.version = 11 : i64} {
  func.func @decoder_kernel(%arg0: memref<8x64xf32, #tpu.memory_space<vmem>>, %arg1: memref<8x16xf32, #tpu.memory_space<vmem>>, %arg2: memref<8x1xi32, #tpu.memory_space<vmem>>, %arg3: memref<8x16xf32, #tpu.memory_space<vmem>>, %arg4: memref<64x32xf32, #tpu.memory_space<vmem>>, %arg5: memref<1x32xf32, #tpu.memory_space<vmem>>, %arg6: memref<192x256xf32, #tpu.memory_space<vmem>>, %arg7: memref<16x256xf32, #tpu.memory_space<vmem>>, %arg8: memref<16x256xf32, #tpu.memory_space<vmem>>, %arg9: memref<1x256xf32, #tpu.memory_space<vmem>>, %arg10: memref<64x128xf32, #tpu.memory_space<vmem>>, %arg11: memref<1x128xf32, #tpu.memory_space<vmem>>, %arg12: memref<8x8x128xf32, #tpu.memory_space<vmem>>, %arg13: memref<8x16xf32, #tpu.memory_space<vmem>>, %arg14: memref<8x16xf32, #tpu.memory_space<vmem>>) attributes {dimension_semantics = [], scalar_prefetch = 0 : i64, scratch_operands = 0 : i64, tpu.core_type = #tpu.core_type<tc>} {
    %c0 = arith.constant 0 : index
    %c0_0 = arith.constant 0 : index
    %0 = vector.load %arg0[%c0, %c0_0] : memref<8x64xf32, #tpu.memory_space<vmem>>, vector<8x64xf32>
    %1 = arith.truncf %0 : vector<8x64xf32> to vector<8x64xbf16>
    %c0_1 = arith.constant 0 : index
    %c0_2 = arith.constant 0 : index
    %2 = vector.load %arg4[%c0_1, %c0_2] : memref<64x32xf32, #tpu.memory_space<vmem>>, vector<64x32xf32>
    %3 = arith.truncf %2 : vector<64x32xf32> to vector<64x32xbf16>
    %cst = arith.constant dense<0.000000e+00> : vector<8x32xf32>
    %4 = tpu.matmul %1, %3, %cst {dimension_numbers = #tpu.dot_dimension_numbers<[1], [0], [0], [1], [0, 0, 1, 1], [], []>} : vector<8x64xbf16>, vector<64x32xbf16>, vector<8x32xf32> -> vector<8x32xf32>
    %c0_3 = arith.constant 0 : index
    %c0_4 = arith.constant 0 : index
    %5 = vector.load %arg5[%c0_3, %c0_4] : memref<1x32xf32, #tpu.memory_space<vmem>>, vector<1x32xf32>
    %6 = vector.broadcast %5 : vector<1x32xf32> to vector<8x32xf32>
    %7 = arith.addf %4, %6 : vector<8x32xf32>
    %cst_5 = arith.constant 0.000000e+00 : f32
    %8 = vector.broadcast %cst_5 : f32 to vector<8x32xf32>
    %9 = arith.maximumf %7, %8 : vector<8x32xf32>
    %10 = vector.extract_strided_slice %9 {offsets = [0, 0], sizes = [8, 16], strides = [1, 1]} : vector<8x32xf32> to vector<8x16xf32>
    %11 = vector.extract_strided_slice %9 {offsets = [0, 16], sizes = [8, 16], strides = [1, 1]} : vector<8x32xf32> to vector<8x16xf32>
    %c0_6 = arith.constant 0 : index
    %c0_7 = arith.constant 0 : index
    %12 = vector.load %arg1[%c0_6, %c0_7] : memref<8x16xf32, #tpu.memory_space<vmem>>, vector<8x16xf32>
    %cst_8 = arith.constant 5.000000e-01 : f32
    %13 = vector.broadcast %cst_8 : f32 to vector<8x16xf32>
    %14 = arith.mulf %13, %11 : vector<8x16xf32>
    %15 = math.exp %14 : vector<8x16xf32>
    %16 = arith.mulf %12, %15 : vector<8x16xf32>
    %17 = arith.addf %10, %16 : vector<8x16xf32>
    %c0_9 = arith.constant 0 : index
    %c0_10 = arith.constant 0 : index
    %18 = vector.load %arg13[%c0_9, %c0_10] : memref<8x16xf32, #tpu.memory_space<vmem>>, vector<8x16xf32>
    tpu.vector_store %arg13[%c0_9, %c0_10], %10 {strides = array<i32>} : memref<8x16xf32, #tpu.memory_space<vmem>>, vector<8x16xf32>,
    %c0_11 = arith.constant 0 : index
    %c0_12 = arith.constant 0 : index
    %19 = vector.load %arg14[%c0_11, %c0_12] : memref<8x16xf32, #tpu.memory_space<vmem>>, vector<8x16xf32>
    tpu.vector_store %arg14[%c0_11, %c0_12], %11 {strides = array<i32>} : memref<8x16xf32, #tpu.memory_space<vmem>>, vector<8x16xf32>,
    %20 = arith.truncf %17 : vector<8x16xf32> to vector<8x16xbf16>
    %c0_13 = arith.constant 0 : index
    %c0_14 = arith.constant 0 : index
    %21 = vector.load %arg7[%c0_13, %c0_14] : memref<16x256xf32, #tpu.memory_space<vmem>>, vector<16x256xf32>
    %22 = arith.truncf %21 : vector<16x256xf32> to vector<16x256xbf16>
    %cst_15 = arith.constant dense<0.000000e+00> : vector<8x256xf32>
    %23 = tpu.matmul %20, %22, %cst_15 {dimension_numbers = #tpu.dot_dimension_numbers<[1], [0], [0], [1], [0, 0, 1, 1], [], []>} : vector<8x16xbf16>, vector<16x256xbf16>, vector<8x256xf32> -> vector<8x256xf32>
    %c0_16 = arith.constant 0 : index
    %c0_17 = arith.constant 0 : index
    %24 = vector.load %arg3[%c0_16, %c0_17] : memref<8x16xf32, #tpu.memory_space<vmem>>, vector<8x16xf32>
    %25 = arith.truncf %24 : vector<8x16xf32> to vector<8x16xbf16>
    %c0_18 = arith.constant 0 : index
    %c0_19 = arith.constant 0 : index
    %26 = vector.load %arg8[%c0_18, %c0_19] : memref<16x256xf32, #tpu.memory_space<vmem>>, vector<16x256xf32>
    %27 = arith.truncf %26 : vector<16x256xf32> to vector<16x256xbf16>
    %cst_20 = arith.constant dense<0.000000e+00> : vector<8x256xf32>
    %28 = tpu.matmul %25, %27, %cst_20 {dimension_numbers = #tpu.dot_dimension_numbers<[1], [0], [0], [1], [0, 0, 1, 1], [], []>} : vector<8x16xbf16>, vector<16x256xbf16>, vector<8x256xf32> -> vector<8x256xf32>
    %29 = arith.addf %23, %28 : vector<8x256xf32>
    %c0_21 = arith.constant 0 : index
    %c0_22 = arith.constant 0 : index
    %30 = vector.load %arg9[%c0_21, %c0_22] : memref<1x256xf32, #tpu.memory_space<vmem>>, vector<1x256xf32>
    %31 = vector.broadcast %30 : vector<1x256xf32> to vector<8x256xf32>
    %32 = arith.addf %29, %31 : vector<8x256xf32>
    %c0_23 = arith.constant 0 : index
    %c0_24 = arith.constant 0 : index
    %33 = vector.load %arg6[%c0_23, %c0_24] : memref<192x256xf32, #tpu.memory_space<vmem>>, vector<192x256xf32>
    %34 = arith.truncf %33 : vector<192x256xf32> to vector<192x256xbf16>
    %c0_25 = arith.constant 0 : index
    %c0_26 = arith.constant 0 : index
    %35 = vector.load %arg10[%c0_25, %c0_26] : memref<64x128xf32, #tpu.memory_space<vmem>>, vector<64x128xf32>
    %36 = arith.truncf %35 : vector<64x128xf32> to vector<64x128xbf16>
    %c0_27 = arith.constant 0 : index
    %c0_28 = arith.constant 0 : index
    %37 = vector.load %arg11[%c0_27, %c0_28] : memref<1x128xf32, #tpu.memory_space<vmem>>, vector<1x128xf32>
    %38 = vector.shape_cast %37 : vector<1x128xf32> to vector<1x128xf32>
    %39 = vector.broadcast %38 : vector<1x128xf32> to vector<8x128xf32>
    %40 = tpu.iota {dimensions = array<i32: 1>} : vector<8x128xi32>
    %cst_29 = arith.constant 0.000000e+00 : f32
    %41 = vector.broadcast %cst_29 : f32 to vector<8x128xf32>
    %c0_30 = arith.constant 0 : index
    %c0_31 = arith.constant 0 : index
    %c0_32 = arith.constant 0 : index
    %42 = vector.load %arg12[%c0_30, %c0_31, %c0_32] : memref<8x8x128xf32, #tpu.memory_space<vmem>>, vector<1x8x128xf32>
    %43 = vector.shape_cast %42 : vector<1x8x128xf32> to vector<8x128xf32>
    %44 = vector.shape_cast %41 : vector<8x128xf32> to vector<1x8x128xf32>
    tpu.vector_store %arg12[%c0_30, %c0_31, %c0_32], %44 {strides = array<i32>} : memref<8x8x128xf32, #tpu.memory_space<vmem>>, vector<1x8x128xf32>,
    %c0_33 = arith.constant 0 : index
    %c0_34 = arith.constant 0 : index
    %45 = vector.load %arg2[%c0_33, %c0_34] : memref<8x1xi32, #tpu.memory_space<vmem>>, vector<8x1xi32>
    %c1_i32 = arith.constant 1 : i32
    %46 = vector.broadcast %45 : vector<8x1xi32> to vector<8x128xi32>
    %47 = arith.cmpi eq, %40, %46 : vector<8x128xi32>
    %48 = arith.extui %47 : vector<8x128xi1> to vector<8x128xi32>
    %49 = arith.sitofp %48 : vector<8x128xi32> to vector<8x128xf32>
    %50 = arith.truncf %49 : vector<8x128xf32> to vector<8x128xbf16>
    %51 = arith.truncf %0 : vector<8x64xf32> to vector<8x64xbf16>
    %52 = tpu.concatenate %50, %51 in 1 : vector<8x128xbf16>, vector<8x64xbf16> -> vector<8x192xbf16>
    %cst_35 = arith.constant dense<0.000000e+00> : vector<8x256xf32>
    %53 = tpu.matmul %52, %34, %cst_35 {dimension_numbers = #tpu.dot_dimension_numbers<[1], [0], [0], [1], [0, 0, 1, 1], [], []>} : vector<8x192xbf16>, vector<192x256xbf16>, vector<8x256xf32> -> vector<8x256xf32>
    %54 = arith.addf %53, %32 : vector<8x256xf32>
    %55 = vector.extract_strided_slice %54 {offsets = [0, 0], sizes = [8, 64], strides = [1, 1]} : vector<8x256xf32> to vector<8x64xf32>
    %56 = arith.negf %55 : vector<8x64xf32>
    %57 = math.exp %56 : vector<8x64xf32>
    %cst_36 = arith.constant 1.000000e+00 : f32
    %58 = vector.broadcast %cst_36 : f32 to vector<8x64xf32>
    %59 = arith.addf %58, %57 : vector<8x64xf32>
    %60 = arith.divf %58, %59 : vector<8x64xf32>
    %61 = vector.extract_strided_slice %54 {offsets = [0, 64], sizes = [8, 64], strides = [1, 1]} : vector<8x256xf32> to vector<8x64xf32>
    %62 = arith.negf %61 : vector<8x64xf32>
    %63 = math.exp %62 : vector<8x64xf32>
    %cst_37 = arith.constant 1.000000e+00 : f32
    %64 = vector.broadcast %cst_37 : f32 to vector<8x64xf32>
    %65 = arith.addf %64, %63 : vector<8x64xf32>
    %66 = arith.divf %64, %65 : vector<8x64xf32>
    %67 = vector.extract_strided_slice %54 {offsets = [0, 128], sizes = [8, 64], strides = [1, 1]} : vector<8x256xf32> to vector<8x64xf32>
    %68 = vector.extract_strided_slice %54 {offsets = [0, 192], sizes = [8, 64], strides = [1, 1]} : vector<8x256xf32> to vector<8x64xf32>
    %69 = arith.mulf %60, %68 : vector<8x64xf32>
    %70 = arith.addf %67, %69 : vector<8x64xf32>
    %71 = math.tanh %70 : vector<8x64xf32>
    %cst_38 = arith.constant 1.000000e+00 : f32
    %72 = vector.broadcast %cst_38 : f32 to vector<8x64xf32>
    %73 = arith.subf %72, %66 : vector<8x64xf32>
    %74 = arith.mulf %73, %71 : vector<8x64xf32>
    %75 = arith.mulf %66, %0 : vector<8x64xf32>
    %76 = arith.addf %74, %75 : vector<8x64xf32>
    %77 = arith.truncf %76 : vector<8x64xf32> to vector<8x64xbf16>
    %cst_39 = arith.constant dense<0.000000e+00> : vector<8x128xf32>
    %78 = tpu.matmul %77, %36, %cst_39 {dimension_numbers = #tpu.dot_dimension_numbers<[1], [0], [0], [1], [0, 0, 1, 1], [], []>} : vector<8x64xbf16>, vector<64x128xbf16>, vector<8x128xf32> -> vector<8x128xf32>
    %79 = arith.addf %78, %39 : vector<8x128xf32>
    %80 = arith.index_cast %c1_i32 : i32 to index
    %c0_40 = arith.constant 0 : index
    %c0_41 = arith.constant 0 : index
    %81 = vector.load %arg12[%80, %c0_40, %c0_41] : memref<8x8x128xf32, #tpu.memory_space<vmem>>, vector<1x8x128xf32>
    %82 = vector.shape_cast %81 : vector<1x8x128xf32> to vector<8x128xf32>
    %83 = vector.shape_cast %79 : vector<8x128xf32> to vector<1x8x128xf32>
    tpu.vector_store %arg12[%80, %c0_40, %c0_41], %83 {strides = array<i32>} : memref<8x8x128xf32, #tpu.memory_space<vmem>>, vector<1x8x128xf32>,
    %cst_42 = arith.constant dense<0xFF800000> : vector<8xf32>
    %84 = vector.multi_reduction <maximumf>, %79, %cst_42 [1] : vector<8x128xf32> to vector<8xf32>
    %85 = vector.shape_cast %84 : vector<8xf32> to vector<8x1xf32>
    %86 = vector.broadcast %85 : vector<8x1xf32> to vector<8x128xf32>
    %87 = arith.cmpf oeq, %79, %86 : vector<8x128xf32>
    %c128_i32 = arith.constant 128 : i32
    %88 = vector.broadcast %c128_i32 : i32 to vector<8x128xi32>
    %89 = arith.select %87, %40, %88 : vector<8x128xi1>, vector<8x128xi32>
    %cst_43 = arith.constant dense<2147483647> : vector<8xi32>
    %90 = vector.multi_reduction <minsi>, %89, %cst_43 [1] : vector<8x128xi32> to vector<8xi32>
    %91 = vector.shape_cast %90 : vector<8xi32> to vector<8x1xi32>
    %c2_i32 = arith.constant 2 : i32
    %92 = vector.broadcast %91 : vector<8x1xi32> to vector<8x128xi32>
    %93 = arith.cmpi eq, %40, %92 : vector<8x128xi32>
    %94 = arith.extui %93 : vector<8x128xi1> to vector<8x128xi32>
    %95 = arith.sitofp %94 : vector<8x128xi32> to vector<8x128xf32>
    %96 = arith.truncf %95 : vector<8x128xf32> to vector<8x128xbf16>
    %97 = arith.truncf %76 : vector<8x64xf32> to vector<8x64xbf16>
    %98 = tpu.concatenate %96, %97 in 1 : vector<8x128xbf16>, vector<8x64xbf16> -> vector<8x192xbf16>
    %cst_44 = arith.constant dense<0.000000e+00> : vector<8x256xf32>
    %99 = tpu.matmul %98, %34, %cst_44 {dimension_numbers = #tpu.dot_dimension_numbers<[1], [0], [0], [1], [0, 0, 1, 1], [], []>} : vector<8x192xbf16>, vector<192x256xbf16>, vector<8x256xf32> -> vector<8x256xf32>
    %100 = arith.addf %99, %32 : vector<8x256xf32>
    %101 = vector.extract_strided_slice %100 {offsets = [0, 0], sizes = [8, 64], strides = [1, 1]} : vector<8x256xf32> to vector<8x64xf32>
    %102 = arith.negf %101 : vector<8x64xf32>
    %103 = math.exp %102 : vector<8x64xf32>
    %cst_45 = arith.constant 1.000000e+00 : f32
    %104 = vector.broadcast %cst_45 : f32 to vector<8x64xf32>
    %105 = arith.addf %104, %103 : vector<8x64xf32>
    %106 = arith.divf %104, %105 : vector<8x64xf32>
    %107 = vector.extract_strided_slice %100 {offsets = [0, 64], sizes = [8, 64], strides = [1, 1]} : vector<8x256xf32> to vector<8x64xf32>
    %108 = arith.negf %107 : vector<8x64xf32>
    %109 = math.exp %108 : vector<8x64xf32>
    %cst_46 = arith.constant 1.000000e+00 : f32
    %110 = vector.broadcast %cst_46 : f32 to vector<8x64xf32>
    %111 = arith.addf %110, %109 : vector<8x64xf32>
    %112 = arith.divf %110, %111 : vector<8x64xf32>
    %113 = vector.extract_strided_slice %100 {offsets = [0, 128], sizes = [8, 64], strides = [1, 1]} : vector<8x256xf32> to vector<8x64xf32>
    %114 = vector.extract_strided_slice %100 {offsets = [0, 192], sizes = [8, 64], strides = [1, 1]} : vector<8x256xf32> to vector<8x64xf32>
    %115 = arith.mulf %106, %114 : vector<8x64xf32>
    %116 = arith.addf %113, %115 : vector<8x64xf32>
    %117 = math.tanh %116 : vector<8x64xf32>
    %cst_47 = arith.constant 1.000000e+00 : f32
    %118 = vector.broadcast %cst_47 : f32 to vector<8x64xf32>
    %119 = arith.subf %118, %112 : vector<8x64xf32>
    %120 = arith.mulf %119, %117 : vector<8x64xf32>
    %121 = arith.mulf %112, %76 : vector<8x64xf32>
    %122 = arith.addf %120, %121 : vector<8x64xf32>
    %123 = arith.truncf %122 : vector<8x64xf32> to vector<8x64xbf16>
    %cst_48 = arith.constant dense<0.000000e+00> : vector<8x128xf32>
    %124 = tpu.matmul %123, %36, %cst_48 {dimension_numbers = #tpu.dot_dimension_numbers<[1], [0], [0], [1], [0, 0, 1, 1], [], []>} : vector<8x64xbf16>, vector<64x128xbf16>, vector<8x128xf32> -> vector<8x128xf32>
    %125 = arith.addf %124, %39 : vector<8x128xf32>
    %126 = arith.index_cast %c2_i32 : i32 to index
    %c0_49 = arith.constant 0 : index
    %c0_50 = arith.constant 0 : index
    %127 = vector.load %arg12[%126, %c0_49, %c0_50] : memref<8x8x128xf32, #tpu.memory_space<vmem>>, vector<1x8x128xf32>
    %128 = vector.shape_cast %127 : vector<1x8x128xf32> to vector<8x128xf32>
    %129 = vector.shape_cast %125 : vector<8x128xf32> to vector<1x8x128xf32>
    tpu.vector_store %arg12[%126, %c0_49, %c0_50], %129 {strides = array<i32>} : memref<8x8x128xf32, #tpu.memory_space<vmem>>, vector<1x8x128xf32>,
    %cst_51 = arith.constant dense<0xFF800000> : vector<8xf32>
    %130 = vector.multi_reduction <maximumf>, %125, %cst_51 [1] : vector<8x128xf32> to vector<8xf32>
    %131 = vector.shape_cast %130 : vector<8xf32> to vector<8x1xf32>
    %132 = vector.broadcast %131 : vector<8x1xf32> to vector<8x128xf32>
    %133 = arith.cmpf oeq, %125, %132 : vector<8x128xf32>
    %c128_i32_52 = arith.constant 128 : i32
    %134 = vector.broadcast %c128_i32_52 : i32 to vector<8x128xi32>
    %135 = arith.select %133, %40, %134 : vector<8x128xi1>, vector<8x128xi32>
    %cst_53 = arith.constant dense<2147483647> : vector<8xi32>
    %136 = vector.multi_reduction <minsi>, %135, %cst_53 [1] : vector<8x128xi32> to vector<8xi32>
    %137 = vector.shape_cast %136 : vector<8xi32> to vector<8x1xi32>
    %c3_i32 = arith.constant 3 : i32
    %138 = vector.broadcast %137 : vector<8x1xi32> to vector<8x128xi32>
    %139 = arith.cmpi eq, %40, %138 : vector<8x128xi32>
    %140 = arith.extui %139 : vector<8x128xi1> to vector<8x128xi32>
    %141 = arith.sitofp %140 : vector<8x128xi32> to vector<8x128xf32>
    %142 = arith.truncf %141 : vector<8x128xf32> to vector<8x128xbf16>
    %143 = arith.truncf %122 : vector<8x64xf32> to vector<8x64xbf16>
    %144 = tpu.concatenate %142, %143 in 1 : vector<8x128xbf16>, vector<8x64xbf16> -> vector<8x192xbf16>
    %cst_54 = arith.constant dense<0.000000e+00> : vector<8x256xf32>
    %145 = tpu.matmul %144, %34, %cst_54 {dimension_numbers = #tpu.dot_dimension_numbers<[1], [0], [0], [1], [0, 0, 1, 1], [], []>} : vector<8x192xbf16>, vector<192x256xbf16>, vector<8x256xf32> -> vector<8x256xf32>
    %146 = arith.addf %145, %32 : vector<8x256xf32>
    %147 = vector.extract_strided_slice %146 {offsets = [0, 0], sizes = [8, 64], strides = [1, 1]} : vector<8x256xf32> to vector<8x64xf32>
    %148 = arith.negf %147 : vector<8x64xf32>
    %149 = math.exp %148 : vector<8x64xf32>
    %cst_55 = arith.constant 1.000000e+00 : f32
    %150 = vector.broadcast %cst_55 : f32 to vector<8x64xf32>
    %151 = arith.addf %150, %149 : vector<8x64xf32>
    %152 = arith.divf %150, %151 : vector<8x64xf32>
    %153 = vector.extract_strided_slice %146 {offsets = [0, 64], sizes = [8, 64], strides = [1, 1]} : vector<8x256xf32> to vector<8x64xf32>
    %154 = arith.negf %153 : vector<8x64xf32>
    %155 = math.exp %154 : vector<8x64xf32>
    %cst_56 = arith.constant 1.000000e+00 : f32
    %156 = vector.broadcast %cst_56 : f32 to vector<8x64xf32>
    %157 = arith.addf %156, %155 : vector<8x64xf32>
    %158 = arith.divf %156, %157 : vector<8x64xf32>
    %159 = vector.extract_strided_slice %146 {offsets = [0, 128], sizes = [8, 64], strides = [1, 1]} : vector<8x256xf32> to vector<8x64xf32>
    %160 = vector.extract_strided_slice %146 {offsets = [0, 192], sizes = [8, 64], strides = [1, 1]} : vector<8x256xf32> to vector<8x64xf32>
    %161 = arith.mulf %152, %160 : vector<8x64xf32>
    %162 = arith.addf %159, %161 : vector<8x64xf32>
    %163 = math.tanh %162 : vector<8x64xf32>
    %cst_57 = arith.constant 1.000000e+00 : f32
    %164 = vector.broadcast %cst_57 : f32 to vector<8x64xf32>
    %165 = arith.subf %164, %158 : vector<8x64xf32>
    %166 = arith.mulf %165, %163 : vector<8x64xf32>
    %167 = arith.mulf %158, %122 : vector<8x64xf32>
    %168 = arith.addf %166, %167 : vector<8x64xf32>
    %169 = arith.truncf %168 : vector<8x64xf32> to vector<8x64xbf16>
    %cst_58 = arith.constant dense<0.000000e+00> : vector<8x128xf32>
    %170 = tpu.matmul %169, %36, %cst_58 {dimension_numbers = #tpu.dot_dimension_numbers<[1], [0], [0], [1], [0, 0, 1, 1], [], []>} : vector<8x64xbf16>, vector<64x128xbf16>, vector<8x128xf32> -> vector<8x128xf32>
    %171 = arith.addf %170, %39 : vector<8x128xf32>
    %172 = arith.index_cast %c3_i32 : i32 to index
    %c0_59 = arith.constant 0 : index
    %c0_60 = arith.constant 0 : index
    %173 = vector.load %arg12[%172, %c0_59, %c0_60] : memref<8x8x128xf32, #tpu.memory_space<vmem>>, vector<1x8x128xf32>
    %174 = vector.shape_cast %173 : vector<1x8x128xf32> to vector<8x128xf32>
    %175 = vector.shape_cast %171 : vector<8x128xf32> to vector<1x8x128xf32>
    tpu.vector_store %arg12[%172, %c0_59, %c0_60], %175 {strides = array<i32>} : memref<8x8x128xf32, #tpu.memory_space<vmem>>, vector<1x8x128xf32>,
    %cst_61 = arith.constant dense<0xFF800000> : vector<8xf32>
    %176 = vector.multi_reduction <maximumf>, %171, %cst_61 [1] : vector<8x128xf32> to vector<8xf32>
    %177 = vector.shape_cast %176 : vector<8xf32> to vector<8x1xf32>
    %178 = vector.broadcast %177 : vector<8x1xf32> to vector<8x128xf32>
    %179 = arith.cmpf oeq, %171, %178 : vector<8x128xf32>
    %c128_i32_62 = arith.constant 128 : i32
    %180 = vector.broadcast %c128_i32_62 : i32 to vector<8x128xi32>
    %181 = arith.select %179, %40, %180 : vector<8x128xi1>, vector<8x128xi32>
    %cst_63 = arith.constant dense<2147483647> : vector<8xi32>
    %182 = vector.multi_reduction <minsi>, %181, %cst_63 [1] : vector<8x128xi32> to vector<8xi32>
    %183 = vector.shape_cast %182 : vector<8xi32> to vector<8x1xi32>
    %c4_i32 = arith.constant 4 : i32
    %184 = vector.broadcast %183 : vector<8x1xi32> to vector<8x128xi32>
    %185 = arith.cmpi eq, %40, %184 : vector<8x128xi32>
    %186 = arith.extui %185 : vector<8x128xi1> to vector<8x128xi32>
    %187 = arith.sitofp %186 : vector<8x128xi32> to vector<8x128xf32>
    %188 = arith.truncf %187 : vector<8x128xf32> to vector<8x128xbf16>
    %189 = arith.truncf %168 : vector<8x64xf32> to vector<8x64xbf16>
    %190 = tpu.concatenate %188, %189 in 1 : vector<8x128xbf16>, vector<8x64xbf16> -> vector<8x192xbf16>
    %cst_64 = arith.constant dense<0.000000e+00> : vector<8x256xf32>
    %191 = tpu.matmul %190, %34, %cst_64 {dimension_numbers = #tpu.dot_dimension_numbers<[1], [0], [0], [1], [0, 0, 1, 1], [], []>} : vector<8x192xbf16>, vector<192x256xbf16>, vector<8x256xf32> -> vector<8x256xf32>
    %192 = arith.addf %191, %32 : vector<8x256xf32>
    %193 = vector.extract_strided_slice %192 {offsets = [0, 0], sizes = [8, 64], strides = [1, 1]} : vector<8x256xf32> to vector<8x64xf32>
    %194 = arith.negf %193 : vector<8x64xf32>
    %195 = math.exp %194 : vector<8x64xf32>
    %cst_65 = arith.constant 1.000000e+00 : f32
    %196 = vector.broadcast %cst_65 : f32 to vector<8x64xf32>
    %197 = arith.addf %196, %195 : vector<8x64xf32>
    %198 = arith.divf %196, %197 : vector<8x64xf32>
    %199 = vector.extract_strided_slice %192 {offsets = [0, 64], sizes = [8, 64], strides = [1, 1]} : vector<8x256xf32> to vector<8x64xf32>
    %200 = arith.negf %199 : vector<8x64xf32>
    %201 = math.exp %200 : vector<8x64xf32>
    %cst_66 = arith.constant 1.000000e+00 : f32
    %202 = vector.broadcast %cst_66 : f32 to vector<8x64xf32>
    %203 = arith.addf %202, %201 : vector<8x64xf32>
    %204 = arith.divf %202, %203 : vector<8x64xf32>
    %205 = vector.extract_strided_slice %192 {offsets = [0, 128], sizes = [8, 64], strides = [1, 1]} : vector<8x256xf32> to vector<8x64xf32>
    %206 = vector.extract_strided_slice %192 {offsets = [0, 192], sizes = [8, 64], strides = [1, 1]} : vector<8x256xf32> to vector<8x64xf32>
    %207 = arith.mulf %198, %206 : vector<8x64xf32>
    %208 = arith.addf %205, %207 : vector<8x64xf32>
    %209 = math.tanh %208 : vector<8x64xf32>
    %cst_67 = arith.constant 1.000000e+00 : f32
    %210 = vector.broadcast %cst_67 : f32 to vector<8x64xf32>
    %211 = arith.subf %210, %204 : vector<8x64xf32>
    %212 = arith.mulf %211, %209 : vector<8x64xf32>
    %213 = arith.mulf %204, %168 : vector<8x64xf32>
    %214 = arith.addf %212, %213 : vector<8x64xf32>
    %215 = arith.truncf %214 : vector<8x64xf32> to vector<8x64xbf16>
    %cst_68 = arith.constant dense<0.000000e+00> : vector<8x128xf32>
    %216 = tpu.matmul %215, %36, %cst_68 {dimension_numbers = #tpu.dot_dimension_numbers<[1], [0], [0], [1], [0, 0, 1, 1], [], []>} : vector<8x64xbf16>, vector<64x128xbf16>, vector<8x128xf32> -> vector<8x128xf32>
    %217 = arith.addf %216, %39 : vector<8x128xf32>
    %218 = arith.index_cast %c4_i32 : i32 to index
    %c0_69 = arith.constant 0 : index
    %c0_70 = arith.constant 0 : index
    %219 = vector.load %arg12[%218, %c0_69, %c0_70] : memref<8x8x128xf32, #tpu.memory_space<vmem>>, vector<1x8x128xf32>
    %220 = vector.shape_cast %219 : vector<1x8x128xf32> to vector<8x128xf32>
    %221 = vector.shape_cast %217 : vector<8x128xf32> to vector<1x8x128xf32>
    tpu.vector_store %arg12[%218, %c0_69, %c0_70], %221 {strides = array<i32>} : memref<8x8x128xf32, #tpu.memory_space<vmem>>, vector<1x8x128xf32>,
    %cst_71 = arith.constant dense<0xFF800000> : vector<8xf32>
    %222 = vector.multi_reduction <maximumf>, %217, %cst_71 [1] : vector<8x128xf32> to vector<8xf32>
    %223 = vector.shape_cast %222 : vector<8xf32> to vector<8x1xf32>
    %224 = vector.broadcast %223 : vector<8x1xf32> to vector<8x128xf32>
    %225 = arith.cmpf oeq, %217, %224 : vector<8x128xf32>
    %c128_i32_72 = arith.constant 128 : i32
    %226 = vector.broadcast %c128_i32_72 : i32 to vector<8x128xi32>
    %227 = arith.select %225, %40, %226 : vector<8x128xi1>, vector<8x128xi32>
    %cst_73 = arith.constant dense<2147483647> : vector<8xi32>
    %228 = vector.multi_reduction <minsi>, %227, %cst_73 [1] : vector<8x128xi32> to vector<8xi32>
    %229 = vector.shape_cast %228 : vector<8xi32> to vector<8x1xi32>
    %c5_i32 = arith.constant 5 : i32
    %230 = vector.broadcast %229 : vector<8x1xi32> to vector<8x128xi32>
    %231 = arith.cmpi eq, %40, %230 : vector<8x128xi32>
    %232 = arith.extui %231 : vector<8x128xi1> to vector<8x128xi32>
    %233 = arith.sitofp %232 : vector<8x128xi32> to vector<8x128xf32>
    %234 = arith.truncf %233 : vector<8x128xf32> to vector<8x128xbf16>
    %235 = arith.truncf %214 : vector<8x64xf32> to vector<8x64xbf16>
    %236 = tpu.concatenate %234, %235 in 1 : vector<8x128xbf16>, vector<8x64xbf16> -> vector<8x192xbf16>
    %cst_74 = arith.constant dense<0.000000e+00> : vector<8x256xf32>
    %237 = tpu.matmul %236, %34, %cst_74 {dimension_numbers = #tpu.dot_dimension_numbers<[1], [0], [0], [1], [0, 0, 1, 1], [], []>} : vector<8x192xbf16>, vector<192x256xbf16>, vector<8x256xf32> -> vector<8x256xf32>
    %238 = arith.addf %237, %32 : vector<8x256xf32>
    %239 = vector.extract_strided_slice %238 {offsets = [0, 0], sizes = [8, 64], strides = [1, 1]} : vector<8x256xf32> to vector<8x64xf32>
    %240 = arith.negf %239 : vector<8x64xf32>
    %241 = math.exp %240 : vector<8x64xf32>
    %cst_75 = arith.constant 1.000000e+00 : f32
    %242 = vector.broadcast %cst_75 : f32 to vector<8x64xf32>
    %243 = arith.addf %242, %241 : vector<8x64xf32>
    %244 = arith.divf %242, %243 : vector<8x64xf32>
    %245 = vector.extract_strided_slice %238 {offsets = [0, 64], sizes = [8, 64], strides = [1, 1]} : vector<8x256xf32> to vector<8x64xf32>
    %246 = arith.negf %245 : vector<8x64xf32>
    %247 = math.exp %246 : vector<8x64xf32>
    %cst_76 = arith.constant 1.000000e+00 : f32
    %248 = vector.broadcast %cst_76 : f32 to vector<8x64xf32>
    %249 = arith.addf %248, %247 : vector<8x64xf32>
    %250 = arith.divf %248, %249 : vector<8x64xf32>
    %251 = vector.extract_strided_slice %238 {offsets = [0, 128], sizes = [8, 64], strides = [1, 1]} : vector<8x256xf32> to vector<8x64xf32>
    %252 = vector.extract_strided_slice %238 {offsets = [0, 192], sizes = [8, 64], strides = [1, 1]} : vector<8x256xf32> to vector<8x64xf32>
    %253 = arith.mulf %244, %252 : vector<8x64xf32>
    %254 = arith.addf %251, %253 : vector<8x64xf32>
    %255 = math.tanh %254 : vector<8x64xf32>
    %cst_77 = arith.constant 1.000000e+00 : f32
    %256 = vector.broadcast %cst_77 : f32 to vector<8x64xf32>
    %257 = arith.subf %256, %250 : vector<8x64xf32>
    %258 = arith.mulf %257, %255 : vector<8x64xf32>
    %259 = arith.mulf %250, %214 : vector<8x64xf32>
    %260 = arith.addf %258, %259 : vector<8x64xf32>
    %261 = arith.truncf %260 : vector<8x64xf32> to vector<8x64xbf16>
    %cst_78 = arith.constant dense<0.000000e+00> : vector<8x128xf32>
    %262 = tpu.matmul %261, %36, %cst_78 {dimension_numbers = #tpu.dot_dimension_numbers<[1], [0], [0], [1], [0, 0, 1, 1], [], []>} : vector<8x64xbf16>, vector<64x128xbf16>, vector<8x128xf32> -> vector<8x128xf32>
    %263 = arith.addf %262, %39 : vector<8x128xf32>
    %264 = arith.index_cast %c5_i32 : i32 to index
    %c0_79 = arith.constant 0 : index
    %c0_80 = arith.constant 0 : index
    %265 = vector.load %arg12[%264, %c0_79, %c0_80] : memref<8x8x128xf32, #tpu.memory_space<vmem>>, vector<1x8x128xf32>
    %266 = vector.shape_cast %265 : vector<1x8x128xf32> to vector<8x128xf32>
    %267 = vector.shape_cast %263 : vector<8x128xf32> to vector<1x8x128xf32>
    tpu.vector_store %arg12[%264, %c0_79, %c0_80], %267 {strides = array<i32>} : memref<8x8x128xf32, #tpu.memory_space<vmem>>, vector<1x8x128xf32>,
    %cst_81 = arith.constant dense<0xFF800000> : vector<8xf32>
    %268 = vector.multi_reduction <maximumf>, %263, %cst_81 [1] : vector<8x128xf32> to vector<8xf32>
    %269 = vector.shape_cast %268 : vector<8xf32> to vector<8x1xf32>
    %270 = vector.broadcast %269 : vector<8x1xf32> to vector<8x128xf32>
    %271 = arith.cmpf oeq, %263, %270 : vector<8x128xf32>
    %c128_i32_82 = arith.constant 128 : i32
    %272 = vector.broadcast %c128_i32_82 : i32 to vector<8x128xi32>
    %273 = arith.select %271, %40, %272 : vector<8x128xi1>, vector<8x128xi32>
    %cst_83 = arith.constant dense<2147483647> : vector<8xi32>
    %274 = vector.multi_reduction <minsi>, %273, %cst_83 [1] : vector<8x128xi32> to vector<8xi32>
    %275 = vector.shape_cast %274 : vector<8xi32> to vector<8x1xi32>
    %c6_i32 = arith.constant 6 : i32
    %276 = vector.broadcast %275 : vector<8x1xi32> to vector<8x128xi32>
    %277 = arith.cmpi eq, %40, %276 : vector<8x128xi32>
    %278 = arith.extui %277 : vector<8x128xi1> to vector<8x128xi32>
    %279 = arith.sitofp %278 : vector<8x128xi32> to vector<8x128xf32>
    %280 = arith.truncf %279 : vector<8x128xf32> to vector<8x128xbf16>
    %281 = arith.truncf %260 : vector<8x64xf32> to vector<8x64xbf16>
    %282 = tpu.concatenate %280, %281 in 1 : vector<8x128xbf16>, vector<8x64xbf16> -> vector<8x192xbf16>
    %cst_84 = arith.constant dense<0.000000e+00> : vector<8x256xf32>
    %283 = tpu.matmul %282, %34, %cst_84 {dimension_numbers = #tpu.dot_dimension_numbers<[1], [0], [0], [1], [0, 0, 1, 1], [], []>} : vector<8x192xbf16>, vector<192x256xbf16>, vector<8x256xf32> -> vector<8x256xf32>
    %284 = arith.addf %283, %32 : vector<8x256xf32>
    %285 = vector.extract_strided_slice %284 {offsets = [0, 0], sizes = [8, 64], strides = [1, 1]} : vector<8x256xf32> to vector<8x64xf32>
    %286 = arith.negf %285 : vector<8x64xf32>
    %287 = math.exp %286 : vector<8x64xf32>
    %cst_85 = arith.constant 1.000000e+00 : f32
    %288 = vector.broadcast %cst_85 : f32 to vector<8x64xf32>
    %289 = arith.addf %288, %287 : vector<8x64xf32>
    %290 = arith.divf %288, %289 : vector<8x64xf32>
    %291 = vector.extract_strided_slice %284 {offsets = [0, 64], sizes = [8, 64], strides = [1, 1]} : vector<8x256xf32> to vector<8x64xf32>
    %292 = arith.negf %291 : vector<8x64xf32>
    %293 = math.exp %292 : vector<8x64xf32>
    %cst_86 = arith.constant 1.000000e+00 : f32
    %294 = vector.broadcast %cst_86 : f32 to vector<8x64xf32>
    %295 = arith.addf %294, %293 : vector<8x64xf32>
    %296 = arith.divf %294, %295 : vector<8x64xf32>
    %297 = vector.extract_strided_slice %284 {offsets = [0, 128], sizes = [8, 64], strides = [1, 1]} : vector<8x256xf32> to vector<8x64xf32>
    %298 = vector.extract_strided_slice %284 {offsets = [0, 192], sizes = [8, 64], strides = [1, 1]} : vector<8x256xf32> to vector<8x64xf32>
    %299 = arith.mulf %290, %298 : vector<8x64xf32>
    %300 = arith.addf %297, %299 : vector<8x64xf32>
    %301 = math.tanh %300 : vector<8x64xf32>
    %cst_87 = arith.constant 1.000000e+00 : f32
    %302 = vector.broadcast %cst_87 : f32 to vector<8x64xf32>
    %303 = arith.subf %302, %296 : vector<8x64xf32>
    %304 = arith.mulf %303, %301 : vector<8x64xf32>
    %305 = arith.mulf %296, %260 : vector<8x64xf32>
    %306 = arith.addf %304, %305 : vector<8x64xf32>
    %307 = arith.truncf %306 : vector<8x64xf32> to vector<8x64xbf16>
    %cst_88 = arith.constant dense<0.000000e+00> : vector<8x128xf32>
    %308 = tpu.matmul %307, %36, %cst_88 {dimension_numbers = #tpu.dot_dimension_numbers<[1], [0], [0], [1], [0, 0, 1, 1], [], []>} : vector<8x64xbf16>, vector<64x128xbf16>, vector<8x128xf32> -> vector<8x128xf32>
    %309 = arith.addf %308, %39 : vector<8x128xf32>
    %310 = arith.index_cast %c6_i32 : i32 to index
    %c0_89 = arith.constant 0 : index
    %c0_90 = arith.constant 0 : index
    %311 = vector.load %arg12[%310, %c0_89, %c0_90] : memref<8x8x128xf32, #tpu.memory_space<vmem>>, vector<1x8x128xf32>
    %312 = vector.shape_cast %311 : vector<1x8x128xf32> to vector<8x128xf32>
    %313 = vector.shape_cast %309 : vector<8x128xf32> to vector<1x8x128xf32>
    tpu.vector_store %arg12[%310, %c0_89, %c0_90], %313 {strides = array<i32>} : memref<8x8x128xf32, #tpu.memory_space<vmem>>, vector<1x8x128xf32>,
    %cst_91 = arith.constant dense<0xFF800000> : vector<8xf32>
    %314 = vector.multi_reduction <maximumf>, %309, %cst_91 [1] : vector<8x128xf32> to vector<8xf32>
    %315 = vector.shape_cast %314 : vector<8xf32> to vector<8x1xf32>
    %316 = vector.broadcast %315 : vector<8x1xf32> to vector<8x128xf32>
    %317 = arith.cmpf oeq, %309, %316 : vector<8x128xf32>
    %c128_i32_92 = arith.constant 128 : i32
    %318 = vector.broadcast %c128_i32_92 : i32 to vector<8x128xi32>
    %319 = arith.select %317, %40, %318 : vector<8x128xi1>, vector<8x128xi32>
    %cst_93 = arith.constant dense<2147483647> : vector<8xi32>
    %320 = vector.multi_reduction <minsi>, %319, %cst_93 [1] : vector<8x128xi32> to vector<8xi32>
    %321 = vector.shape_cast %320 : vector<8xi32> to vector<8x1xi32>
    %c7_i32 = arith.constant 7 : i32
    %322 = vector.broadcast %321 : vector<8x1xi32> to vector<8x128xi32>
    %323 = arith.cmpi eq, %40, %322 : vector<8x128xi32>
    %324 = arith.extui %323 : vector<8x128xi1> to vector<8x128xi32>
    %325 = arith.sitofp %324 : vector<8x128xi32> to vector<8x128xf32>
    %326 = arith.truncf %325 : vector<8x128xf32> to vector<8x128xbf16>
    %327 = arith.truncf %306 : vector<8x64xf32> to vector<8x64xbf16>
    %328 = tpu.concatenate %326, %327 in 1 : vector<8x128xbf16>, vector<8x64xbf16> -> vector<8x192xbf16>
    %cst_94 = arith.constant dense<0.000000e+00> : vector<8x256xf32>
    %329 = tpu.matmul %328, %34, %cst_94 {dimension_numbers = #tpu.dot_dimension_numbers<[1], [0], [0], [1], [0, 0, 1, 1], [], []>} : vector<8x192xbf16>, vector<192x256xbf16>, vector<8x256xf32> -> vector<8x256xf32>
    %330 = arith.addf %329, %32 : vector<8x256xf32>
    %331 = vector.extract_strided_slice %330 {offsets = [0, 0], sizes = [8, 64], strides = [1, 1]} : vector<8x256xf32> to vector<8x64xf32>
    %332 = arith.negf %331 : vector<8x64xf32>
    %333 = math.exp %332 : vector<8x64xf32>
    %cst_95 = arith.constant 1.000000e+00 : f32
    %334 = vector.broadcast %cst_95 : f32 to vector<8x64xf32>
    %335 = arith.addf %334, %333 : vector<8x64xf32>
    %336 = arith.divf %334, %335 : vector<8x64xf32>
    %337 = vector.extract_strided_slice %330 {offsets = [0, 64], sizes = [8, 64], strides = [1, 1]} : vector<8x256xf32> to vector<8x64xf32>
    %338 = arith.negf %337 : vector<8x64xf32>
    %339 = math.exp %338 : vector<8x64xf32>
    %cst_96 = arith.constant 1.000000e+00 : f32
    %340 = vector.broadcast %cst_96 : f32 to vector<8x64xf32>
    %341 = arith.addf %340, %339 : vector<8x64xf32>
    %342 = arith.divf %340, %341 : vector<8x64xf32>
    %343 = vector.extract_strided_slice %330 {offsets = [0, 128], sizes = [8, 64], strides = [1, 1]} : vector<8x256xf32> to vector<8x64xf32>
    %344 = vector.extract_strided_slice %330 {offsets = [0, 192], sizes = [8, 64], strides = [1, 1]} : vector<8x256xf32> to vector<8x64xf32>
    %345 = arith.mulf %336, %344 : vector<8x64xf32>
    %346 = arith.addf %343, %345 : vector<8x64xf32>
    %347 = math.tanh %346 : vector<8x64xf32>
    %cst_97 = arith.constant 1.000000e+00 : f32
    %348 = vector.broadcast %cst_97 : f32 to vector<8x64xf32>
    %349 = arith.subf %348, %342 : vector<8x64xf32>
    %350 = arith.mulf %349, %347 : vector<8x64xf32>
    %351 = arith.mulf %342, %306 : vector<8x64xf32>
    %352 = arith.addf %350, %351 : vector<8x64xf32>
    %353 = arith.truncf %352 : vector<8x64xf32> to vector<8x64xbf16>
    %cst_98 = arith.constant dense<0.000000e+00> : vector<8x128xf32>
    %354 = tpu.matmul %353, %36, %cst_98 {dimension_numbers = #tpu.dot_dimension_numbers<[1], [0], [0], [1], [0, 0, 1, 1], [], []>} : vector<8x64xbf16>, vector<64x128xbf16>, vector<8x128xf32> -> vector<8x128xf32>
    %355 = arith.addf %354, %39 : vector<8x128xf32>
    %356 = arith.index_cast %c7_i32 : i32 to index
    %c0_99 = arith.constant 0 : index
    %c0_100 = arith.constant 0 : index
    %357 = vector.load %arg12[%356, %c0_99, %c0_100] : memref<8x8x128xf32, #tpu.memory_space<vmem>>, vector<1x8x128xf32>
    %358 = vector.shape_cast %357 : vector<1x8x128xf32> to vector<8x128xf32>
    %359 = vector.shape_cast %355 : vector<8x128xf32> to vector<1x8x128xf32>
    tpu.vector_store %arg12[%356, %c0_99, %c0_100], %359 {strides = array<i32>} : memref<8x8x128xf32, #tpu.memory_space<vmem>>, vector<1x8x128xf32>,
    %cst_101 = arith.constant dense<0xFF800000> : vector<8xf32>
    %360 = vector.multi_reduction <maximumf>, %355, %cst_101 [1] : vector<8x128xf32> to vector<8xf32>
    %361 = vector.shape_cast %360 : vector<8xf32> to vector<8x1xf32>
    %362 = vector.broadcast %361 : vector<8x1xf32> to vector<8x128xf32>
    %363 = arith.cmpf oeq, %355, %362 : vector<8x128xf32>
    %c128_i32_102 = arith.constant 128 : i32
    %364 = vector.broadcast %c128_i32_102 : i32 to vector<8x128xi32>
    %365 = arith.select %363, %40, %364 : vector<8x128xi1>, vector<8x128xi32>
    %cst_103 = arith.constant dense<2147483647> : vector<8xi32>
    %366 = vector.multi_reduction <minsi>, %365, %cst_103 [1] : vector<8x128xi32> to vector<8xi32>
    %367 = vector.shape_cast %366 : vector<8xi32> to vector<8x1xi32>
    %c7_i32_104 = arith.constant 7 : i32
    return
  }
}

</mosaic_0001>

<llo_original>
// kernel: l_msvae_forward.2
$region0: #{l_msvae_forward.2}
  #allocation0 [shape = 'u32[]', space=smem, size = 0x4, offset = 0x4, fixed_abs, tag = 'smem constant byte address 0x4 - core index']
  #allocation1 [shape = 'u32[144,128]{1,0:T(1,128)}', space=vmem, size = 0x12000, scoped, tag = 'internal scratch']
  #allocation2 [shape = 'f32[64,96]{1,0:T(8,128)}', space=vmem, size = 0x8000, scoped, tag = 'scratch operand']
  %s0 = inlined_call_operand.vmem [shape: f32[2,64,32], index: 0, kind: input, shape index: {}]
  %s1 = inlined_call_operand.vmem [shape: f32[2,32,96], index: 1, kind: input, shape index: {}]
  %s2 = inlined_call_operand.vmem [shape: f32[2,32,96], index: 2, kind: input, shape index: {}]
  %s3 = inlined_call_operand.vmem [shape: f32[2,1,96], index: 3, kind: input, shape index: {}]
  %s4 = inlined_call_operand.vmem [shape: f32[2,1,32], index: 4, kind: input, shape index: {}]
  %s5 = inlined_call_operand.vmem [shape: f32[2,8,32], index: 5, kind: output, shape index: {}]
  %s6 = sld [smem:[#allocation0]]
  $region53: #{l_msvae_forward.2} parent=0
    _
  %s8 = ssub.s32 1, %s6
  %s9 = scalar_select 0, %s8, %s6
  loop: start=0, step=1, limit=4
  $region2: #{l_msvae_forward.2} parent=0 // loop_pre_header
    _
  $region3: #{l_msvae_forward.2} parent=0 // loop_header
    %s11 = sphi 0, %s15
    %p12 = scmp.ge.s32.totalorder %s11, 4
    %s21 = sphi 0, %s23
    %s24 = sphi 0, %s21
    %s25 = sphi 0, %s24
    %s41 = sphi 0, %s25
    %s47 = sphi 0, %s49
    %s50 = sphi 0, %s47
    %s51 = sphi 0, %s50
    %s67 = sphi 0, %s51
    %s73 = sphi 0, %s75
    %s76 = sphi 0, %s73
    %s77 = sphi 0, %s76
    %s93 = sphi 0, %s77
    %s99 = sphi 0, %s101
    %s102 = sphi 0, %s99
    %s103 = sphi 0, %s102
    %s119 = sphi 0, %s103
    %s125 = sphi 0, %s127
    %s128 = sphi 0, %s125
    %s129 = sphi 0, %s128
    %s145 = sphi 0, %s129
    %s151 = sphi 0, %s153
    %s154 = sphi 0, %s151
    %s155 = sphi 0, %s154
    %s171 = sphi 0, %s155
  $region4: #{l_msvae_forward.2} parent=0 // loop_header_branch
    %14 = sbr.rel (%p12) target = $region8
  $region5: #{l_msvae_forward.2} parent=0 // loop_body
    %s16 = ssub.s32 %s11, 1
    %s17 = ssub.s32 %s11, 2
    %s18 = sadd.s32 %s11, 1
    %s19 = ssub.s32 %s11, %s18
    %p20 = scmp.eq.s32.totalorder %s19, 0
    %s22 = sadd.s32 %s21, 1
    %s23 = scalar_select %p20, %s21, %s22
    %p26 = pneg %p20
    %p27 = scmp.eq.s32.totalorder %s11, 1
    %p28 = por %p26, %p27
    %p29 = scmp.ne.s32.totalorder %s21, %s24
    %p30 = scmp.eq.s32.totalorder %s11, 0
    %p31 = por %p29, %p30
    %p32 = scmp.ne.s32.totalorder %s21, %s24
    %p33 = scmp.eq.s32.totalorder %s16, 1
    %p34 = por %p32, %p33
    %p35 = scmp.ne.s32.totalorder %s24, %s25
    %p36 = scmp.eq.s32.totalorder %s16, 0
    %p37 = por %p35, %p36
    %p38 = scmp.ne.s32.totalorder %s24, %s25
    %p39 = scmp.eq.s32.totalorder %s17, 1
    %p40 = por %p38, %p39
    %p42 = scmp.ne.s32.totalorder %s25, %s41
    %p43 = scmp.eq.s32.totalorder %s17, 0
    %p44 = por %p42, %p43
    %s45 = ssub.s32 %s11, %s18
    %p46 = scmp.eq.s32.totalorder %s45, 0
    %s48 = sadd.s32 %s47, 1
    %s49 = scalar_select %p46, %s47, %s48
    %p52 = pneg %p46
    %p53 = scmp.eq.s32.totalorder %s11, 1
    %p54 = por %p52, %p53
    %p55 = scmp.ne.s32.totalorder %s47, %s50
    %p56 = scmp.eq.s32.totalorder %s11, 0
    %p57 = por %p55, %p56
    %p58 = scmp.ne.s32.totalorder %s47, %s50
    %p59 = scmp.eq.s32.totalorder %s16, 1
    %p60 = por %p58, %p59
    %p61 = scmp.ne.s32.totalorder %s50, %s51
    %p62 = scmp.eq.s32.totalorder %s16, 0
    %p63 = por %p61, %p62
    %p64 = scmp.ne.s32.totalorder %s50, %s51
    %p65 = scmp.eq.s32.totalorder %s17, 1
    %p66 = por %p64, %p65
    %p68 = scmp.ne.s32.totalorder %s51, %s67
    %p69 = scmp.eq.s32.totalorder %s17, 0
    %p70 = por %p68, %p69
    %s71 = ssub.s32 %s11, %s18
    %p72 = scmp.eq.s32.totalorder %s71, 0
    %s74 = sadd.s32 %s73, 1
    %s75 = scalar_select %p72, %s73, %s74
    %p78 = pneg %p72
    %p79 = scmp.eq.s32.totalorder %s11, 1
    %p80 = por %p78, %p79
    %p81 = scmp.ne.s32.totalorder %s73, %s76
    %p82 = scmp.eq.s32.totalorder %s11, 0
    %p83 = por %p81, %p82
    %p84 = scmp.ne.s32.totalorder %s73, %s76
    %p85 = scmp.eq.s32.totalorder %s16, 1
    %p86 = por %p84, %p85
    %p87 = scmp.ne.s32.totalorder %s76, %s77
    %p88 = scmp.eq.s32.totalorder %s16, 0
    %p89 = por %p87, %p88
    %p90 = scmp.ne.s32.totalorder %s76, %s77
    %p91 = scmp.eq.s32.totalorder %s17, 1
    %p92 = por %p90, %p91
    %p94 = scmp.ne.s32.totalorder %s77, %s93
    %p95 = scmp.eq.s32.totalorder %s17, 0
    %p96 = por %p94, %p95
    %s97 = ssub.s32 %s11, %s18
    %p98 = scmp.eq.s32.totalorder %s97, 0
    %s100 = sadd.s32 %s99, 1
    %s101 = scalar_select %p98, %s99, %s100
    %p104 = pneg %p98
    %p105 = scmp.eq.s32.totalorder %s11, 1
    %p106 = por %p104, %p105
    %p107 = scmp.ne.s32.totalorder %s99, %s102
    %p108 = scmp.eq.s32.totalorder %s11, 0
    %p109 = por %p107, %p108
    %p110 = scmp.ne.s32.totalorder %s99, %s102
    %p111 = scmp.eq.s32.totalorder %s16, 1
    %p112 = por %p110, %p111
    %p113 = scmp.ne.s32.totalorder %s102, %s103
    %p114 = scmp.eq.s32.totalorder %s16, 0
    %p115 = por %p113, %p114
    %p116 = scmp.ne.s32.totalorder %s102, %s103
    %p117 = scmp.eq.s32.totalorder %s17, 1
    %p118 = por %p116, %p117
    %p120 = scmp.ne.s32.totalorder %s103, %s119
    %p121 = scmp.eq.s32.totalorder %s17, 0
    %p122 = por %p120, %p121
    %s123 = ssub.s32 %s11, %s18
    %p124 = scmp.eq.s32.totalorder %s123, 0
    %s126 = sadd.s32 %s125, 1
    %s127 = scalar_select %p124, %s125, %s126
    %p130 = pneg %p124
    %p131 = scmp.eq.s32.totalorder %s11, 1
    %p132 = por %p130, %p131
    %p133 = scmp.ne.s32.totalorder %s125, %s128
    %p134 = scmp.eq.s32.totalorder %s11, 0
    %p135 = por %p133, %p134
    %p136 = scmp.ne.s32.totalorder %s125, %s128
    %p137 = scmp.eq.s32.totalorder %s16, 1
    %p138 = por %p136, %p137
    %p139 = scmp.ne.s32.totalorder %s128, %s129
    %p140 = scmp.eq.s32.totalorder %s16, 0
    %p141 = por %p139, %p140
    %p142 = scmp.ne.s32.totalorder %s128, %s129
    %p143 = scmp.eq.s32.totalorder %s17, 1
    %p144 = por %p142, %p143
    %p146 = scmp.ne.s32.totalorder %s129, %s145
    %p147 = scmp.eq.s32.totalorder %s17, 0
    %p148 = por %p146, %p147
    %s149 = ssub.s32 %s11, %s18
    %p150 = scmp.eq.s32.totalorder %s149, 0
    %s152 = sadd.s32 %s151, 1
    %s153 = scalar_select %p150, %s151, %s152
    %p156 = pneg %p150
    %p157 = scmp.eq.s32.totalorder %s11, 1
    %p158 = por %p156, %p157
    %p159 = scmp.ne.s32.totalorder %s151, %s154
    %p160 = scmp.eq.s32.totalorder %s11, 0
    %p161 = por %p159, %p160
    %p162 = scmp.ne.s32.totalorder %s151, %s154
    %p163 = scmp.eq.s32.totalorder %s16, 1
    %p164 = por %p162, %p163
    %p165 = scmp.ne.s32.totalorder %s154, %s155
    %p166 = scmp.eq.s32.totalorder %s16, 0
    %p167 = por %p165, %p166
    %p168 = scmp.ne.s32.totalorder %s154, %s155
    %p169 = scmp.eq.s32.totalorder %s17, 1
    %p170 = por %p168, %p169
    %p172 = scmp.ne.s32.totalorder %s155, %s171
    %p173 = scmp.eq.s32.totalorder %s17, 0
    %p174 = por %p172, %p173
    %p175 = scmp.le.s32.totalorder 1, %s11
    %p176 = scmp.lt.s32.totalorder %s11, 3
    %p177 = pnand %p175, %p176
    %p178 = pneg %p177
    // Predicated region
    $region9: #{l_msvae_forward.2} parent=5 // pred_check
      _
    $region10: #{l_msvae_forward.2} parent=5 // pred_check_branch
      %180 = sbr.rel (%p177) target = $region12
    $region11: #{l_msvae_forward.2} parent=5 // pred_region
      %s181 = ssub.s32 %s11, 1
    $region12: #{l_msvae_forward.2} parent=5 // pred_fallthru
      _
    %p182 = scmp.lt.s32.totalorder %s11, 2
    // Predicated region
    $region13: #{l_msvae_forward.2} parent=5 // pred_check
      %p183 = pneg %p182
    $region14: #{l_msvae_forward.2} parent=5 // pred_check_branch
      %185 = sbr.rel (%p183) target = $region16
    $region15: #{l_msvae_forward.2} parent=5 // pred_region
      // Predicated region
      $region17: #{l_msvae_forward.2} parent=15 // pred_check
        %p186 = pneg %p31
      $region18: #{l_msvae_forward.2} parent=15 // pred_check_branch
        %188 = sbr.rel (%p186) target = $region20
      $region19: #{l_msvae_forward.2} parent=15 // pred_region
        %p189 = scmp.lt.s32.totalorder %s11, 1
        %s190 = scalar_select %p189, %s11, 1
        %s191 = smul.addr %s190, 8
        %s192 = smul.addr %s191, 8
        %s193 = scalar_lea.vmem %s0, %s192
      $region20: #{l_msvae_forward.2} parent=15 // pred_fallthru
        _
      // Predicated region
      $region21: #{l_msvae_forward.2} parent=15 // pred_check
        %p194 = pneg %p57
      $region22: #{l_msvae_forward.2} parent=15 // pred_check_branch
        %196 = sbr.rel (%p194) target = $region24
      $region23: #{l_msvae_forward.2} parent=15 // pred_region
        %p197 = scmp.lt.s32.totalorder %s11, 1
        %s198 = scalar_select %p197, %s11, 1
        %s199 = smul.addr %s198, 4
        %s200 = smul.addr %s199, 8
        %s201 = scalar_lea.vmem %s1, %s200
      $region24: #{l_msvae_forward.2} parent=15 // pred_fallthru
        _
      // Predicated region
      $region25: #{l_msvae_forward.2} parent=15 // pred_check
        %p202 = pneg %p83
      $region26: #{l_msvae_forward.2} parent=15 // pred_check_branch
        %204 = sbr.rel (%p202) target = $region28
      $region27: #{l_msvae_forward.2} parent=15 // pred_region
        %p205 = scmp.lt.s32.totalorder %s11, 1
        %s206 = scalar_select %p205, %s11, 1
        %s207 = smul.addr %s206, 4
        %s208 = smul.addr %s207, 8
        %s209 = scalar_lea.vmem %s2, %s208
      $region28: #{l_msvae_forward.2} parent=15 // pred_fallthru
        _
      // Predicated region
      $region29: #{l_msvae_forward.2} parent=15 // pred_check
        %p210 = pneg %p109
      $region30: #{l_msvae_forward.2} parent=15 // pred_check_branch
        %212 = sbr.rel (%p210) target = $region32
      $region31: #{l_msvae_forward.2} parent=15 // pred_region
        %p213 = scmp.lt.s32.totalorder %s11, 1
        %s214 = scalar_select %p213, %s11, 1
        %s215 = scalar_lea.vmem %s3, %s214
      $region32: #{l_msvae_forward.2} parent=15 // pred_fallthru
        _
      // Predicated region
      $region33: #{l_msvae_forward.2} parent=15 // pred_check
        %p216 = pneg %p135
      $region34: #{l_msvae_forward.2} parent=15 // pred_check_branch
        %218 = sbr.rel (%p216) target = $region36
      $region35: #{l_msvae_forward.2} parent=15 // pred_region
        %p219 = scmp.lt.s32.totalorder %s11, 1
        %s220 = scalar_select %p219, %s11, 1
        %s221 = scalar_lea.vmem %s4, %s220
      $region36: #{l_msvae_forward.2} parent=15 // pred_fallthru
        _
    $region16: #{l_msvae_forward.2} parent=5 // pred_fallthru
      _
    %p222 = scmp.le.s32.totalorder 1, %s11
    %p223 = scmp.lt.s32.totalorder %s11, 3
    %p224 = pnand %p222, %p223
    %p225 = pneg %p224
    // Predicated region
    $region37: #{l_msvae_forward.2} parent=5 // pred_check
      _
    $region38: #{l_msvae_forward.2} parent=5 // pred_check_branch
      %227 = sbr.rel (%p224) target = $region40
    $region39: #{l_msvae_forward.2} parent=5 // pred_region
      %s228 = ssub.s32 %s11, 1
      %p229 = scmp.lt.s32.totalorder %s16, 1
      %s230 = scalar_select %p229, %s16, 1
      %s231 = smul.addr %s230, 8
      %s232 = smul.addr %s231, 8
      %s233 = scalar_lea.vmem %s0, %s232
      %p234 = pneg %p37
      %p235 = pneg %p34
      %p236 = scmp.lt.s32.totalorder %s16, 1
      %s237 = scalar_select %p236, %s16, 1
      %s238 = smul.addr %s237, 4
      %s239 = smul.addr %s238, 8
      %s240 = scalar_lea.vmem %s1, %s239
      %p241 = pneg %p63
      %p242 = pneg %p60
      %p243 = scmp.lt.s32.totalorder %s16, 1
      %s244 = scalar_select %p243, %s16, 1
      %s245 = smul.addr %s244, 4
      %s246 = smul.addr %s245, 8
      %s247 = scalar_lea.vmem %s2, %s246
      %p248 = pneg %p89
      %p249 = pneg %p86
      %p250 = scmp.lt.s32.totalorder %s16, 1
      %s251 = scalar_select %p250, %s16, 1
      %s252 = scalar_lea.vmem %s3, %s251
      %p253 = pneg %p115
      %p254 = pneg %p112
      %p255 = scmp.lt.s32.totalorder %s16, 1
      %s256 = scalar_select %p255, %s16, 1
      %s257 = scalar_lea.vmem %s4, %s256
      %p258 = pneg %p141
      %p259 = pneg %p138
      %p260 = pneg %p167
      %p261 = pneg %p164
      %p262 = scmp.lt.s32.totalorder %s16, 1
      %s263 = scalar_select %p262, %s16, 1
      %s264 = smul.addr %s263, 8
      %s265 = scalar_lea.vmem %s5, %s264
      %p266 = scmp.lt.s32.totalorder %s16, 1
      %s267 = scalar_select %p266, %s16, 1
      %s268 = smul.addr %s267, 8
      %s269 = smul.addr %s268, 8
      %s270 = scalar_lea.vmem %s0, %s269
      %p271 = scmp.lt.s32.totalorder %s16, 1
      %s272 = scalar_select %p271, %s16, 1
      %s273 = smul.addr %s272, 4
      %s274 = smul.addr %s273, 8
      %s275 = scalar_lea.vmem %s1, %s274
      %p276 = scmp.lt.s32.totalorder %s16, 1
      %s277 = scalar_select %p276, %s16, 1
      %s278 = smul.addr %s277, 4
      %s279 = smul.addr %s278, 8
      %s280 = scalar_lea.vmem %s2, %s279
      %p281 = scmp.lt.s32.totalorder %s16, 1
      %s282 = scalar_select %p281, %s16, 1
      %s283 = scalar_lea.vmem %s3, %s282
      %p284 = scmp.lt.s32.totalorder %s16, 1
      %s285 = scalar_select %p284, %s16, 1
      %s286 = scalar_lea.vmem %s4, %s285
      %p287 = scmp.lt.s32.totalorder %s16, 1
      %s288 = scalar_select %p287, %s16, 1
      %s289 = smul.addr %s288, 8
      %s290 = scalar_lea.vmem %s5, %s289
      %v292 = vld [vmem:[%s270] sm:$0xff]
      %v293 = vld [vmem:[%s270 + $0x8] sm:$0xff]
      %v294 = vld [vmem:[%s270 + $0x10] sm:$0xff]
      %v295 = vld [vmem:[%s270 + $0x18] sm:$0xff]
      %v296 = vld [vmem:[%s270 + $0x20] sm:$0xff]
      %v297 = vld [vmem:[%s270 + $0x28] sm:$0xff]
      %v298 = vld [vmem:[%s270 + $0x30] sm:$0xff]
      %v299 = vld [vmem:[%s270 + $0x38] sm:$0xff]
      %v300 = vpack.c.bf16 %v293, %v292
      %v301 = vpack.c.bf16 %v295, %v294
      %v302 = vpack.c.bf16 %v297, %v296
      %v303 = vpack.c.bf16 %v299, %v298
      %v304 = vld [vmem:[%s275] sm:$0xff]
      %v305 = vld [vmem:[%s275 + $0x8] sm:$0xff]
      %v306 = vld [vmem:[%s275 + $0x10] sm:$0xff]
      %v307 = vld [vmem:[%s275 + $0x18] sm:$0xff]
      %v308 = vpack.c.bf16 %v305, %v304
      %v309 = vpack.c.bf16 %v307, %v306
      %v310 = vld [vmem:[%s280] sm:$0xff]
      %v311 = vld [vmem:[%s280 + $0x8] sm:$0xff]
      %v312 = vld [vmem:[%s280 + $0x10] sm:$0xff]
      %v313 = vld [vmem:[%s280 + $0x18] sm:$0xff]
      %v314 = vpack.c.bf16 %v311, %v310
      %v315 = vpack.c.bf16 %v313, %v312
      %v316 = vld [vmem:[%s283] sm:$0x1]
      %v318 = vlaneseq
      %v319 = vshrl.u32 %v318, 7
      %v320 = vsub.s32 0, %v319
      %v321 = vrot.slane %v316, %v320
      %vm323 = vcmask 261120
      %v325 = vsel %vm323, %v300, 0
      %v328 = vsel %vm323, %v301, 0
      %v331 = vsel %vm323, %v302, 0
      %v334 = vsel %vm323, %v303, 0
      %336 = vmatprep.subr.bf16.mxu0 0
      %337 = vmatpush1.bf16.msra.mxu0 %v308
      %338 = vmatprep.subr.bf16.mxu0 0
      %339 = vmatpush1.bf16.msra.mxu0 %v309
      %340 = vmatprep.subr.bf16.mxu0 0
      %341 = vmatpush1.bf16.msra.mxu0 0
      %342 = vmatprep.subr.bf16.mxu0 0
      %343 = vmatpush1.bf16.msra.mxu0 0
      %344 = vmatprep.subr.bf16.mxu0 0
      %345 = vmatpush1.bf16.msra.mxu0 0
      %346 = vmatprep.subr.bf16.mxu0 0
      %347 = vmatpush1.bf16.msra.mxu0 0
      %348 = vmatprep.subr.bf16.mxu0 0
      %349 = vmatpush1.bf16.msra.mxu0 0
      %350 = vmatprep.subr.bf16.mxu0 0
      %351 = vmatpush1.bf16.msra.mxu0 0
      %352 = vmatprep.subr.bf16.mxu0 0
      %353 = vmatpush1.bf16.msra.mxu0 0
      %354 = vmatprep.subr.bf16.mxu0 0
      %355 = vmatpush1.bf16.msra.mxu0 0
      %356 = vmatprep.subr.bf16.mxu0 0
      %357 = vmatpush1.bf16.msra.mxu0 0
      %358 = vmatprep.subr.bf16.mxu0 0
      %359 = vmatpush1.bf16.msra.mxu0 0
      %360 = vmatprep.subr.bf16.mxu0 0
      %361 = vmatpush1.bf16.msra.mxu0 0
      %362 = vmatprep.subr.bf16.mxu0 0
      %363 = vmatpush1.bf16.msra.mxu0 0
      %364 = vmatprep.subr.bf16.mxu0 0
      %365 = vmatpush1.bf16.msra.mxu0 0
      %366 = vmatprep.subr.bf16.mxu0 0
      %367 = vmatpush1.bf16.msra.mxu0 0
      %368 = vmatprep.mubr.bf16.mxu0 0
      %369 = vmatmul.mubr.bf16.gmra.mrb[0].mxu0 %v325
      %v370 = vpop.f32.mrb[0].mxu0
      %v371 = vadd.f32 %v321, %v370
      %v372 = vpop.f32.mrb[0].mxu0
      %v373 = vpop.f32.mrb[0].mxu0
      %v374 = vadd.f32 %v321, %v373
      %v375 = vpop.f32.mrb[0].mxu0
      %376 = vmatprep.mubr.bf16.mxu0 0
      %377 = vmatmul.mubr.bf16.gmra.mrb[0].mxu0 %v328
      %v378 = vpop.f32.mrb[0].mxu0
      %v379 = vadd.f32 %v321, %v378
      %v380 = vpop.f32.mrb[0].mxu0
      %v381 = vpop.f32.mrb[0].mxu0
      %v382 = vadd.f32 %v321, %v381
      %v383 = vpop.f32.mrb[0].mxu0
      %384 = vmatprep.mubr.bf16.mxu0 0
      %385 = vmatmul.mubr.bf16.gmra.mrb[0].mxu0 %v331
      %v386 = vpop.f32.mrb[0].mxu0
      %v387 = vadd.f32 %v321, %v386
      %v388 = vpop.f32.mrb[0].mxu0
      %v389 = vpop.f32.mrb[0].mxu0
      %v390 = vadd.f32 %v321, %v389
      %v391 = vpop.f32.mrb[0].mxu0
      %392 = vmatprep.mubr.bf16.mxu0 0
      %393 = vmatmul.mubr.bf16.gmra.mrb[0].mxu0 %v334
      %v394 = vpop.f32.mrb[0].mxu0
      %v395 = vadd.f32 %v321, %v394
      %v396 = vpop.f32.mrb[0].mxu0
      %v397 = vpop.f32.mrb[0].mxu0
      %v398 = vadd.f32 %v321, %v397
      %v399 = vpop.f32.mrb[0].mxu0
      %400 = vdwg.mxu0
      %vm401 = vcmask 785408
      %402 = vst.msk [vmem:[#allocation2] sm:$0xff] %vm401, %v371
      %403 = vst.msk [vmem:[#allocation2 + $0x8] sm:$0xff] %vm401, %v374
      %404 = vst.msk [vmem:[#allocation2 + $0x10] sm:$0xff] %vm401, %v379
      %405 = vst.msk [vmem:[#allocation2 + $0x18] sm:$0xff] %vm401, %v382
      %406 = vst.msk [vmem:[#allocation2 + $0x20] sm:$0xff] %vm401, %v387
      %407 = vst.msk [vmem:[#allocation2 + $0x28] sm:$0xff] %vm401, %v390
      %408 = vst.msk [vmem:[#allocation2 + $0x30] sm:$0xff] %vm401, %v395
      %409 = vst.msk [vmem:[#allocation2 + $0x38] sm:$0xff] %vm401, %v398
      %v410 = vld [vmem:[%s286] sm:$0x1]
      %v412 = vlaneseq
      %v413 = vshrl.u32 %v412, 7
      %v414 = vsub.s32 0, %v413
      %v415 = vrot.slane %v410, %v414
      %v416 = vld [vmem:[#allocation2] sm:$0xff]
      %v418 = vsel %vm323, 0, 0
      %420 = vmatprep.subr.bf16.mxu0 0
      %421 = vmatpush1.bf16.msra.mxu0 %v314
      %422 = vmatprep.subr.bf16.mxu0 0
      %423 = vmatpush1.bf16.msra.mxu0 %v315
      %424 = vmatprep.subr.bf16.mxu0 0
      %425 = vmatpush1.bf16.msra.mxu0 0
      %426 = vmatprep.subr.bf16.mxu0 0
      %427 = vmatpush1.bf16.msra.mxu0 0
      %428 = vmatprep.subr.bf16.mxu0 0
      %429 = vmatpush1.bf16.msra.mxu0 0
      %430 = vmatprep.subr.bf16.mxu0 0
      %431 = vmatpush1.bf16.msra.mxu0 0
      %432 = vmatprep.subr.bf16.mxu0 0
      %433 = vmatpush1.bf16.msra.mxu0 0
      %434 = vmatprep.subr.bf16.mxu0 0
      %435 = vmatpush1.bf16.msra.mxu0 0
      %436 = vmatprep.subr.bf16.mxu0 0
      %437 = vmatpush1.bf16.msra.mxu0 0
      %438 = vmatprep.subr.bf16.mxu0 0
      %439 = vmatpush1.bf16.msra.mxu0 0
      %440 = vmatprep.subr.bf16.mxu0 0
      %441 = vmatpush1.bf16.msra.mxu0 0
      %442 = vmatprep.subr.bf16.mxu0 0
      %443 = vmatpush1.bf16.msra.mxu0 0
      %444 = vmatprep.subr.bf16.mxu0 0
      %445 = vmatpush1.bf16.msra.mxu0 0
      %446 = vmatprep.subr.bf16.mxu0 0
      %447 = vmatpush1.bf16.msra.mxu0 0
      %448 = vmatprep.subr.bf16.mxu0 0
      %449 = vmatpush1.bf16.msra.mxu0 0
      %450 = vmatprep.subr.bf16.mxu0 0
      %451 = vmatpush1.bf16.msra.mxu0 0
      %452 = vmatprep.mubr.bf16.mxu0 0
      %453 = vmatmul.mubr.bf16.gmra.mrb[0].mxu0 %v418
      %v454 = vpop.f32.mrb[0].mxu0
      %v455 = vadd.f32 0.0, %v454
      %v456 = vpop.f32.mrb[0].mxu0
      %v457 = vpop.f32.mrb[0].mxu0
      %v458 = vpop.f32.mrb[0].mxu0
      %459 = vdwg.mxu0
      %v460 = vadd.f32 %v416, %v455
      %v461 = vxor.u32 %v460, 2147483648
      %v462 = vmul.f32 %v461, 1.442695
      %v463 = vpow.pop %v462
      %v464 = vadd.f32 %v463, 1.0
      %v465 = vrcp.pop %v464
      %v466 = vmul.f32 1.0, %v465
      %467 = vrot.lane.b32.xlu0 %v415, 64
      %v468 = vpop.permute.xlu0 %467
      %v470 = vadd.f32 %v455, %v468
      %472 = vrot.lane.b32.xlu0 %v470, 64
      %v473 = vpop.permute.xlu0 %472
      %v475 = vmul.f32 %v466, %v473
      %477 = vrot.lane.b32.xlu0 %v475, 64
      %v478 = vpop.permute.xlu0 %477
      %v480 = vadd.f32 %v416, %v478
      %v481 = vtanh.pop %v480
      %v482 = vsub.f32 1.0, %v466
      %484 = vrot.lane.b32.xlu0 %v481, 96
      %v485 = vpop.permute.xlu0 %484
      %v487 = vmul.f32 %v482, %v485
      %v488 = vmul.f32 %v466, 0.0
      %v489 = vadd.f32 %v487, %v488
      %s490 = scalar_lea.vmem [#allocation2], 8
      %v491 = vld [vmem:[%s490] sm:$0xff]
      %v492 = vpack.c.bf16 %v489, %v489
      %494 = vrot.lane.b32.xlu0 %v492, 96
      %v495 = vpop.permute.xlu0 %494
      %v497 = vsel %vm323, %v495, 0
      %499 = vmatprep.subr.bf16.mxu0 0
      %500 = vmatpush1.bf16.msra.mxu0 %v314
      %501 = vmatprep.subr.bf16.mxu0 0
      %502 = vmatpush1.bf16.msra.mxu0 %v315
      %503 = vmatprep.subr.bf16.mxu0 0
      %504 = vmatpush1.bf16.msra.mxu0 0
      %505 = vmatprep.subr.bf16.mxu0 0
      %506 = vmatpush1.bf16.msra.mxu0 0
      %507 = vmatprep.subr.bf16.mxu0 0
      %508 = vmatpush1.bf16.msra.mxu0 0
      %509 = vmatprep.subr.bf16.mxu0 0
      %510 = vmatpush1.bf16.msra.mxu0 0
      %511 = vmatprep.subr.bf16.mxu0 0
      %512 = vmatpush1.bf16.msra.mxu0 0
      %513 = vmatprep.subr.bf16.mxu0 0
      %514 = vmatpush1.bf16.msra.mxu0 0
      %515 = vmatprep.subr.bf16.mxu0 0
      %516 = vmatpush1.bf16.msra.mxu0 0
      %517 = vmatprep.subr.bf16.mxu0 0
      %518 = vmatpush1.bf16.msra.mxu0 0
      %519 = vmatprep.subr.bf16.mxu0 0
      %520 = vmatpush1.bf16.msra.mxu0 0
      %521 = vmatprep.subr.bf16.mxu0 0
      %522 = vmatpush1.bf16.msra.mxu0 0
      %523 = vmatprep.subr.bf16.mxu0 0
      %524 = vmatpush1.bf16.msra.mxu0 0
      %525 = vmatprep.subr.bf16.mxu0 0
      %526 = vmatpush1.bf16.msra.mxu0 0
      %527 = vmatprep.subr.bf16.mxu0 0
      %528 = vmatpush1.bf16.msra.mxu0 0
      %529 = vmatprep.subr.bf16.mxu0 0
      %530 = vmatpush1.bf16.msra.mxu0 0
      %531 = vmatprep.mubr.bf16.mxu0 0
      %532 = vmatmul.mubr.bf16.gmra.mrb[0].mxu0 %v497
      %v533 = vpop.f32.mrb[0].mxu0
      %v534 = vadd.f32 0.0, %v533
      %v535 = vpop.f32.mrb[0].mxu0
      %v536 = vpop.f32.mrb[0].mxu0
      %v537 = vpop.f32.mrb[0].mxu0
      %538 = vdwg.mxu0
      %v539 = vadd.f32 %v491, %v534
      %v540 = vxor.u32 %v539, 2147483648
      %v541 = vmul.f32 %v540, 1.442695
      %v542 = vpow.pop %v541
      %v543 = vadd.f32 %v542, 1.0
      %v544 = vrcp.pop %v543
      %v545 = vmul.f32 1.0, %v544
      %v546 = vadd.f32 %v534, %v468
      %548 = vrot.lane.b32.xlu0 %v546, 64
      %v549 = vpop.permute.xlu0 %548
      %v551 = vmul.f32 %v545, %v549
      %553 = vrot.lane.b32.xlu0 %v551, 64
      %v554 = vpop.permute.xlu0 %553
      %v556 = vadd.f32 %v491, %v554
      %v557 = vtanh.pop %v556
      %v558 = vsub.f32 1.0, %v545
      %560 = vrot.lane.b32.xlu0 %v557, 96
      %v561 = vpop.permute.xlu0 %560
      %v563 = vmul.f32 %v558, %v561
      %v564 = vmul.f32 %v545, %v489
      %v565 = vadd.f32 %v563, %v564
      %s566 = scalar_lea.vmem [#allocation2], 16
      %v567 = vld [vmem:[%s566] sm:$0xff]
      %v568 = vpack.c.bf16 %v565, %v565
      %570 = vrot.lane.b32.xlu0 %v568, 96
      %v571 = vpop.permute.xlu0 %570
      %v573 = vsel %vm323, %v571, 0
      %575 = vmatprep.subr.bf16.mxu0 0
      %576 = vmatpush1.bf16.msra.mxu0 %v314
      %577 = vmatprep.subr.bf16.mxu0 0
      %578 = vmatpush1.bf16.msra.mxu0 %v315
      %579 = vmatprep.subr.bf16.mxu0 0
      %580 = vmatpush1.bf16.msra.mxu0 0
      %581 = vmatprep.subr.bf16.mxu0 0
      %582 = vmatpush1.bf16.msra.mxu0 0
      %583 = vmatprep.subr.bf16.mxu0 0
      %584 = vmatpush1.bf16.msra.mxu0 0
      %585 = vmatprep.subr.bf16.mxu0 0
      %586 = vmatpush1.bf16.msra.mxu0 0
      %587 = vmatprep.subr.bf16.mxu0 0
      %588 = vmatpush1.bf16.msra.mxu0 0
      %589 = vmatprep.subr.bf16.mxu0 0
      %590 = vmatpush1.bf16.msra.mxu0 0
      %591 = vmatprep.subr.bf16.mxu0 0
      %592 = vmatpush1.bf16.msra.mxu0 0
      %593 = vmatprep.subr.bf16.mxu0 0
      %594 = vmatpush1.bf16.msra.mxu0 0
      %595 = vmatprep.subr.bf16.mxu0 0
      %596 = vmatpush1.bf16.msra.mxu0 0
      %597 = vmatprep.subr.bf16.mxu0 0
      %598 = vmatpush1.bf16.msra.mxu0 0
      %599 = vmatprep.subr.bf16.mxu0 0
      %600 = vmatpush1.bf16.msra.mxu0 0
      %601 = vmatprep.subr.bf16.mxu0 0
      %602 = vmatpush1.bf16.msra.mxu0 0
      %603 = vmatprep.subr.bf16.mxu0 0
      %604 = vmatpush1.bf16.msra.mxu0 0
      %605 = vmatprep.subr.bf16.mxu0 0
      %606 = vmatpush1.bf16.msra.mxu0 0
      %607 = vmatprep.mubr.bf16.mxu0 0
      %608 = vmatmul.mubr.bf16.gmra.mrb[0].mxu0 %v573
      %v609 = vpop.f32.mrb[0].mxu0
      %v610 = vadd.f32 0.0, %v609
      %v611 = vpop.f32.mrb[0].mxu0
      %v612 = vpop.f32.mrb[0].mxu0
      %v613 = vpop.f32.mrb[0].mxu0
      %614 = vdwg.mxu0
      %v615 = vadd.f32 %v567, %v610
      %v616 = vxor.u32 %v615, 2147483648
      %v617 = vmul.f32 %v616, 1.442695
      %v618 = vpow.pop %v617
      %v619 = vadd.f32 %v618, 1.0
      %v620 = vrcp.pop %v619
      %v621 = vmul.f32 1.0, %v620
      %v622 = vadd.f32 %v610, %v468
      %624 = vrot.lane.b32.xlu0 %v622, 64
      %v625 = vpop.permute.xlu0 %624
      %v627 = vmul.f32 %v621, %v625
      %629 = vrot.lane.b32.xlu0 %v627, 64
      %v630 = vpop.permute.xlu0 %629
      %v632 = vadd.f32 %v567, %v630
      %v633 = vtanh.pop %v632
      %v634 = vsub.f32 1.0, %v621
      %636 = vrot.lane.b32.xlu0 %v633, 96
      %v637 = vpop.permute.xlu0 %636
      %v639 = vmul.f32 %v634, %v637
      %v640 = vmul.f32 %v621, %v565
      %v641 = vadd.f32 %v639, %v640
      %s642 = scalar_lea.vmem [#allocation2], 24
      %v643 = vld [vmem:[%s642] sm:$0xff]
      %v644 = vpack.c.bf16 %v641, %v641
      %646 = vrot.lane.b32.xlu0 %v644, 96
      %v647 = vpop.permute.xlu0 %646
      %v649 = vsel %vm323, %v647, 0
      %651 = vmatprep.subr.bf16.mxu0 0
      %652 = vmatpush1.bf16.msra.mxu0 %v314
      %653 = vmatprep.subr.bf16.mxu0 0
      %654 = vmatpush1.bf16.msra.mxu0 %v315
      %655 = vmatprep.subr.bf16.mxu0 0
      %656 = vmatpush1.bf16.msra.mxu0 0
      %657 = vmatprep.subr.bf16.mxu0 0
      %658 = vmatpush1.bf16.msra.mxu0 0
      %659 = vmatprep.subr.bf16.mxu0 0
      %660 = vmatpush1.bf16.msra.mxu0 0
      %661 = vmatprep.subr.bf16.mxu0 0
      %662 = vmatpush1.bf16.msra.mxu0 0
      %663 = vmatprep.subr.bf16.mxu0 0
      %664 = vmatpush1.bf16.msra.mxu0 0
      %665 = vmatprep.subr.bf16.mxu0 0
      %666 = vmatpush1.bf16.msra.mxu0 0
      %667 = vmatprep.subr.bf16.mxu0 0
      %668 = vmatpush1.bf16.msra.mxu0 0
      %669 = vmatprep.subr.bf16.mxu0 0
      %670 = vmatpush1.bf16.msra.mxu0 0
      %671 = vmatprep.subr.bf16.mxu0 0
      %672 = vmatpush1.bf16.msra.mxu0 0
      %673 = vmatprep.subr.bf16.mxu0 0
      %674 = vmatpush1.bf16.msra.mxu0 0
      %675 = vmatprep.subr.bf16.mxu0 0
      %676 = vmatpush1.bf16.msra.mxu0 0
      %677 = vmatprep.subr.bf16.mxu0 0
      %678 = vmatpush1.bf16.msra.mxu0 0
      %679 = vmatprep.subr.bf16.mxu0 0
      %680 = vmatpush1.bf16.msra.mxu0 0
      %681 = vmatprep.subr.bf16.mxu0 0
      %682 = vmatpush1.bf16.msra.mxu0 0
      %683 = vmatprep.mubr.bf16.mxu0 0
      %684 = vmatmul.mubr.bf16.gmra.mrb[0].mxu0 %v649
      %v685 = vpop.f32.mrb[0].mxu0
      %v686 = vadd.f32 0.0, %v685
      %v687 = vpop.f32.mrb[0].mxu0
      %v688 = vpop.f32.mrb[0].mxu0
      %v689 = vpop.f32.mrb[0].mxu0
      %690 = vdwg.mxu0
      %v691 = vadd.f32 %v643, %v686
      %v692 = vxor.u32 %v691, 2147483648
      %v693 = vmul.f32 %v692, 1.442695
      %v694 = vpow.pop %v693
      %v695 = vadd.f32 %v694, 1.0
      %v696 = vrcp.pop %v695
      %v697 = vmul.f32 1.0, %v696
      %v698 = vadd.f32 %v686, %v468
      %700 = vrot.lane.b32.xlu0 %v698, 64
      %v701 = vpop.permute.xlu0 %700
      %v703 = vmul.f32 %v697, %v701
      %705 = vrot.lane.b32.xlu0 %v703, 64
      %v706 = vpop.permute.xlu0 %705
      %v708 = vadd.f32 %v643, %v706
      %v709 = vtanh.pop %v708
      %v710 = vsub.f32 1.0, %v697
      %712 = vrot.lane.b32.xlu0 %v709, 96
      %v713 = vpop.permute.xlu0 %712
      %v715 = vmul.f32 %v710, %v713
      %v716 = vmul.f32 %v697, %v641
      %v717 = vadd.f32 %v715, %v716
      %s718 = scalar_lea.vmem [#allocation2], 32
      %v719 = vld [vmem:[%s718] sm:$0xff]
      %v720 = vpack.c.bf16 %v717, %v717
      %722 = vrot.lane.b32.xlu0 %v720, 96
      %v723 = vpop.permute.xlu0 %722
      %v725 = vsel %vm323, %v723, 0
      %727 = vmatprep.subr.bf16.mxu0 0
      %728 = vmatpush1.bf16.msra.mxu0 %v314
      %729 = vmatprep.subr.bf16.mxu0 0
      %730 = vmatpush1.bf16.msra.mxu0 %v315
      %731 = vmatprep.subr.bf16.mxu0 0
      %732 = vmatpush1.bf16.msra.mxu0 0
      %733 = vmatprep.subr.bf16.mxu0 0
      %734 = vmatpush1.bf16.msra.mxu0 0
      %735 = vmatprep.subr.bf16.mxu0 0
      %736 = vmatpush1.bf16.msra.mxu0 0
      %737 = vmatprep.subr.bf16.mxu0 0
      %738 = vmatpush1.bf16.msra.mxu0 0
      %739 = vmatprep.subr.bf16.mxu0 0
      %740 = vmatpush1.bf16.msra.mxu0 0
      %741 = vmatprep.subr.bf16.mxu0 0
      %742 = vmatpush1.bf16.msra.mxu0 0
      %743 = vmatprep.subr.bf16.mxu0 0
      %744 = vmatpush1.bf16.msra.mxu0 0
      %745 = vmatprep.subr.bf16.mxu0 0
      %746 = vmatpush1.bf16.msra.mxu0 0
      %747 = vmatprep.subr.bf16.mxu0 0
      %748 = vmatpush1.bf16.msra.mxu0 0
      %749 = vmatprep.subr.bf16.mxu0 0
      %750 = vmatpush1.bf16.msra.mxu0 0
      %751 = vmatprep.subr.bf16.mxu0 0
      %752 = vmatpush1.bf16.msra.mxu0 0
      %753 = vmatprep.subr.bf16.mxu0 0
      %754 = vmatpush1.bf16.msra.mxu0 0
      %755 = vmatprep.subr.bf16.mxu0 0
      %756 = vmatpush1.bf16.msra.mxu0 0
      %757 = vmatprep.subr.bf16.mxu0 0
      %758 = vmatpush1.bf16.msra.mxu0 0
      %759 = vmatprep.mubr.bf16.mxu0 0
      %760 = vmatmul.mubr.bf16.gmra.mrb[0].mxu0 %v725
      %v761 = vpop.f32.mrb[0].mxu0
      %v762 = vadd.f32 0.0, %v761
      %v763 = vpop.f32.mrb[0].mxu0
      %v764 = vpop.f32.mrb[0].mxu0
      %v765 = vpop.f32.mrb[0].mxu0
      %766 = vdwg.mxu0
      %v767 = vadd.f32 %v719, %v762
      %v768 = vxor.u32 %v767, 2147483648
      %v769 = vmul.f32 %v768, 1.442695
      %v770 = vpow.pop %v769
      %v771 = vadd.f32 %v770, 1.0
      %v772 = vrcp.pop %v771
      %v773 = vmul.f32 1.0, %v772
      %v774 = vadd.f32 %v762, %v468
      %776 = vrot.lane.b32.xlu0 %v774, 64
      %v777 = vpop.permute.xlu0 %776
      %v779 = vmul.f32 %v773, %v777
      %781 = vrot.lane.b32.xlu0 %v779, 64
      %v782 = vpop.permute.xlu0 %781
      %v784 = vadd.f32 %v719, %v782
      %v785 = vtanh.pop %v784
      %v786 = vsub.f32 1.0, %v773
      %788 = vrot.lane.b32.xlu0 %v785, 96
      %v789 = vpop.permute.xlu0 %788
      %v791 = vmul.f32 %v786, %v789
      %v792 = vmul.f32 %v773, %v717
      %v793 = vadd.f32 %v791, %v792
      %s794 = scalar_lea.vmem [#allocation2], 40
      %v795 = vld [vmem:[%s794] sm:$0xff]
      %v796 = vpack.c.bf16 %v793, %v793
      %798 = vrot.lane.b32.xlu0 %v796, 96
      %v799 = vpop.permute.xlu0 %798
      %v801 = vsel %vm323, %v799, 0
      %803 = vmatprep.subr.bf16.mxu0 0
      %804 = vmatpush1.bf16.msra.mxu0 %v314
      %805 = vmatprep.subr.bf16.mxu0 0
      %806 = vmatpush1.bf16.msra.mxu0 %v315
      %807 = vmatprep.subr.bf16.mxu0 0
      %808 = vmatpush1.bf16.msra.mxu0 0
      %809 = vmatprep.subr.bf16.mxu0 0
      %810 = vmatpush1.bf16.msra.mxu0 0
      %811 = vmatprep.subr.bf16.mxu0 0
      %812 = vmatpush1.bf16.msra.mxu0 0
      %813 = vmatprep.subr.bf16.mxu0 0
      %814 = vmatpush1.bf16.msra.mxu0 0
      %815 = vmatprep.subr.bf16.mxu0 0
      %816 = vmatpush1.bf16.msra.mxu0 0
      %817 = vmatprep.subr.bf16.mxu0 0
      %818 = vmatpush1.bf16.msra.mxu0 0
      %819 = vmatprep.subr.bf16.mxu0 0
      %820 = vmatpush1.bf16.msra.mxu0 0
      %821 = vmatprep.subr.bf16.mxu0 0
      %822 = vmatpush1.bf16.msra.mxu0 0
      %823 = vmatprep.subr.bf16.mxu0 0
      %824 = vmatpush1.bf16.msra.mxu0 0
      %825 = vmatprep.subr.bf16.mxu0 0
      %826 = vmatpush1.bf16.msra.mxu0 0
      %827 = vmatprep.subr.bf16.mxu0 0
      %828 = vmatpush1.bf16.msra.mxu0 0
      %829 = vmatprep.subr.bf16.mxu0 0
      %830 = vmatpush1.bf16.msra.mxu0 0
      %831 = vmatprep.subr.bf16.mxu0 0
      %832 = vmatpush1.bf16.msra.mxu0 0
      %833 = vmatprep.subr.bf16.mxu0 0
      %834 = vmatpush1.bf16.msra.mxu0 0
      %835 = vmatprep.mubr.bf16.mxu0 0
      %836 = vmatmul.mubr.bf16.gmra.mrb[0].mxu0 %v801
      %v837 = vpop.f32.mrb[0].mxu0
      %v838 = vadd.f32 0.0, %v837
      %v839 = vpop.f32.mrb[0].mxu0
      %v840 = vpop.f32.mrb[0].mxu0
      %v841 = vpop.f32.mrb[0].mxu0
      %842 = vdwg.mxu0
      %v843 = vadd.f32 %v795, %v838
      %v844 = vxor.u32 %v843, 2147483648
      %v845 = vmul.f32 %v844, 1.442695
      %v846 = vpow.pop %v845
      %v847 = vadd.f32 %v846, 1.0
      %v848 = vrcp.pop %v847
      %v849 = vmul.f32 1.0, %v848
      %v850 = vadd.f32 %v838, %v468
      %852 = vrot.lane.b32.xlu0 %v850, 64
      %v853 = vpop.permute.xlu0 %852
      %v855 = vmul.f32 %v849, %v853
      %857 = vrot.lane.b32.xlu0 %v855, 64
      %v858 = vpop.permute.xlu0 %857
      %v860 = vadd.f32 %v795, %v858
      %v861 = vtanh.pop %v860
      %v862 = vsub.f32 1.0, %v849
      %864 = vrot.lane.b32.xlu0 %v861, 96
      %v865 = vpop.permute.xlu0 %864
      %v867 = vmul.f32 %v862, %v865
      %v868 = vmul.f32 %v849, %v793
      %v869 = vadd.f32 %v867, %v868
      %s870 = scalar_lea.vmem [#allocation2], 48
      %v871 = vld [vmem:[%s870] sm:$0xff]
      %v872 = vpack.c.bf16 %v869, %v869
      %874 = vrot.lane.b32.xlu0 %v872, 96
      %v875 = vpop.permute.xlu0 %874
      %v877 = vsel %vm323, %v875, 0
      %879 = vmatprep.subr.bf16.mxu0 0
      %880 = vmatpush1.bf16.msra.mxu0 %v314
      %881 = vmatprep.subr.bf16.mxu0 0
      %882 = vmatpush1.bf16.msra.mxu0 %v315
      %883 = vmatprep.subr.bf16.mxu0 0
      %884 = vmatpush1.bf16.msra.mxu0 0
      %885 = vmatprep.subr.bf16.mxu0 0
      %886 = vmatpush1.bf16.msra.mxu0 0
      %887 = vmatprep.subr.bf16.mxu0 0
      %888 = vmatpush1.bf16.msra.mxu0 0
      %889 = vmatprep.subr.bf16.mxu0 0
      %890 = vmatpush1.bf16.msra.mxu0 0
      %891 = vmatprep.subr.bf16.mxu0 0
      %892 = vmatpush1.bf16.msra.mxu0 0
      %893 = vmatprep.subr.bf16.mxu0 0
      %894 = vmatpush1.bf16.msra.mxu0 0
      %895 = vmatprep.subr.bf16.mxu0 0
      %896 = vmatpush1.bf16.msra.mxu0 0
      %897 = vmatprep.subr.bf16.mxu0 0
      %898 = vmatpush1.bf16.msra.mxu0 0
      %899 = vmatprep.subr.bf16.mxu0 0
      %900 = vmatpush1.bf16.msra.mxu0 0
      %901 = vmatprep.subr.bf16.mxu0 0
      %902 = vmatpush1.bf16.msra.mxu0 0
      %903 = vmatprep.subr.bf16.mxu0 0
      %904 = vmatpush1.bf16.msra.mxu0 0
      %905 = vmatprep.subr.bf16.mxu0 0
      %906 = vmatpush1.bf16.msra.mxu0 0
      %907 = vmatprep.subr.bf16.mxu0 0
      %908 = vmatpush1.bf16.msra.mxu0 0
      %909 = vmatprep.subr.bf16.mxu0 0
      %910 = vmatpush1.bf16.msra.mxu0 0
      %911 = vmatprep.mubr.bf16.mxu0 0
      %912 = vmatmul.mubr.bf16.gmra.mrb[0].mxu0 %v877
      %v913 = vpop.f32.mrb[0].mxu0
      %v914 = vadd.f32 0.0, %v913
      %v915 = vpop.f32.mrb[0].mxu0
      %v916 = vpop.f32.mrb[0].mxu0
      %v917 = vpop.f32.mrb[0].mxu0
      %918 = vdwg.mxu0
      %v919 = vadd.f32 %v871, %v914
      %v920 = vxor.u32 %v919, 2147483648
      %v921 = vmul.f32 %v920, 1.442695
      %v922 = vpow.pop %v921
      %v923 = vadd.f32 %v922, 1.0
      %v924 = vrcp.pop %v923
      %v925 = vmul.f32 1.0, %v924
      %v926 = vadd.f32 %v914, %v468
      %928 = vrot.lane.b32.xlu0 %v926, 64
      %v929 = vpop.permute.xlu0 %928
      %v931 = vmul.f32 %v925, %v929
      %933 = vrot.lane.b32.xlu0 %v931, 64
      %v934 = vpop.permute.xlu0 %933
      %v936 = vadd.f32 %v871, %v934
      %v937 = vtanh.pop %v936
      %v938 = vsub.f32 1.0, %v925
      %940 = vrot.lane.b32.xlu0 %v937, 96
      %v941 = vpop.permute.xlu0 %940
      %v943 = vmul.f32 %v938, %v941
      %v944 = vmul.f32 %v925, %v869
      %v945 = vadd.f32 %v943, %v944
      %s946 = scalar_lea.vmem [#allocation2], 56
      %v947 = vld [vmem:[%s946] sm:$0xff]
      %v948 = vpack.c.bf16 %v945, %v945
      %950 = vrot.lane.b32.xlu0 %v948, 96
      %v951 = vpop.permute.xlu0 %950
      %v953 = vsel %vm323, %v951, 0
      %955 = vmatprep.subr.bf16.mxu0 0
      %956 = vmatpush1.bf16.msra.mxu0 %v314
      %957 = vmatprep.subr.bf16.mxu0 0
      %958 = vmatpush1.bf16.msra.mxu0 %v315
      %959 = vmatprep.subr.bf16.mxu0 0
      %960 = vmatpush1.bf16.msra.mxu0 0
      %961 = vmatprep.subr.bf16.mxu0 0
      %962 = vmatpush1.bf16.msra.mxu0 0
      %963 = vmatprep.subr.bf16.mxu0 0
      %964 = vmatpush1.bf16.msra.mxu0 0
      %965 = vmatprep.subr.bf16.mxu0 0
      %966 = vmatpush1.bf16.msra.mxu0 0
      %967 = vmatprep.subr.bf16.mxu0 0
      %968 = vmatpush1.bf16.msra.mxu0 0
      %969 = vmatprep.subr.bf16.mxu0 0
      %970 = vmatpush1.bf16.msra.mxu0 0
      %971 = vmatprep.subr.bf16.mxu0 0
      %972 = vmatpush1.bf16.msra.mxu0 0
      %973 = vmatprep.subr.bf16.mxu0 0
      %974 = vmatpush1.bf16.msra.mxu0 0
      %975 = vmatprep.subr.bf16.mxu0 0
      %976 = vmatpush1.bf16.msra.mxu0 0
      %977 = vmatprep.subr.bf16.mxu0 0
      %978 = vmatpush1.bf16.msra.mxu0 0
      %979 = vmatprep.subr.bf16.mxu0 0
      %980 = vmatpush1.bf16.msra.mxu0 0
      %981 = vmatprep.subr.bf16.mxu0 0
      %982 = vmatpush1.bf16.msra.mxu0 0
      %983 = vmatprep.subr.bf16.mxu0 0
      %984 = vmatpush1.bf16.msra.mxu0 0
      %985 = vmatprep.subr.bf16.mxu0 0
      %986 = vmatpush1.bf16.msra.mxu0 0
      %987 = vmatprep.mubr.bf16.mxu0 0
      %988 = vmatmul.mubr.bf16.gmra.mrb[0].mxu0 %v953
      %v989 = vpop.f32.mrb[0].mxu0
      %v990 = vadd.f32 0.0, %v989
      %v991 = vpop.f32.mrb[0].mxu0
      %v992 = vpop.f32.mrb[0].mxu0
      %v993 = vpop.f32.mrb[0].mxu0
      %994 = vdwg.mxu0
      %v995 = vadd.f32 %v947, %v990
      %v996 = vxor.u32 %v995, 2147483648
      %v997 = vmul.f32 %v996, 1.442695
      %v998 = vpow.pop %v997
      %v999 = vadd.f32 %v998, 1.0
      %v1000 = vrcp.pop %v999
      %v1001 = vmul.f32 1.0, %v1000
      %v1002 = vadd.f32 %v990, %v468
      %1004 = vrot.lane.b32.xlu0 %v1002, 64
      %v1005 = vpop.permute.xlu0 %1004
      %v1007 = vmul.f32 %v1001, %v1005
      %1009 = vrot.lane.b32.xlu0 %v1007, 64
      %v1010 = vpop.permute.xlu0 %1009
      %v1012 = vadd.f32 %v947, %v1010
      %v1013 = vtanh.pop %v1012
      %v1014 = vsub.f32 1.0, %v1001
      %1016 = vrot.lane.b32.xlu0 %v1013, 96
      %v1017 = vpop.permute.xlu0 %1016
      %v1019 = vmul.f32 %v1014, %v1017
      %v1020 = vmul.f32 %v1001, %v945
      %v1021 = vadd.f32 %v1019, %v1020
      %1023 = vrot.lane.b32.xlu0 %v1021, 96
      %v1024 = vpop.permute.xlu0 %1023
      %1026 = vst.msk [vmem:[%s290] sm:$0xff] %vm323, %v1024
      %p1027 = scmp.lt.s32.totalorder %s16, 1
      %s1028 = scalar_select %p1027, %s16, 1
      %s1029 = smul.addr %s1028, 8
      %s1030 = scalar_lea.vmem %s5, %s1029
      // Predicated region
      $region41: #{l_msvae_forward.2} parent=39 // pred_check
        %p1031 = pneg %p164
      $region42: #{l_msvae_forward.2} parent=39 // pred_check_branch
        %1033 = sbr.rel (%p1031) target = $region44
      $region43: #{l_msvae_forward.2} parent=39 // pred_region
        _
      $region44: #{l_msvae_forward.2} parent=39 // pred_fallthru
        _
    $region40: #{l_msvae_forward.2} parent=5 // pred_fallthru
      _
    %p1034 = scmp.le.s32.totalorder 2, %s11
    // Predicated region
    $region45: #{l_msvae_forward.2} parent=5 // pred_check
      %p1035 = pneg %p1034
    $region46: #{l_msvae_forward.2} parent=5 // pred_check_branch
      %1037 = sbr.rel (%p1035) target = $region48
    $region47: #{l_msvae_forward.2} parent=5 // pred_region
      %s1038 = ssub.s32 %s11, 2
      // Predicated region
      $region49: #{l_msvae_forward.2} parent=47 // pred_check
        %p1039 = pneg %p170
      $region50: #{l_msvae_forward.2} parent=47 // pred_check_branch
        %1041 = sbr.rel (%p1039) target = $region52
      $region51: #{l_msvae_forward.2} parent=47 // pred_region
        %p1042 = scmp.lt.s32.totalorder %s17, 1
        %s1043 = scalar_select %p1042, %s17, 1
        %s1044 = smul.addr %s1043, 8
        %s1045 = scalar_lea.vmem %s5, %s1044
      $region52: #{l_msvae_forward.2} parent=47 // pred_fallthru
        _
    $region48: #{l_msvae_forward.2} parent=5 // pred_fallthru
      _
  $region6: #{l_msvae_forward.2} parent=0 // loop_footer
    %s15 = sadd.s32 1, %s11
  $region7: #{l_msvae_forward.2} parent=0 // loop_footer_branch
    %10 = sbr.rel target = $region3
  $region8: #{l_msvae_forward.2} parent=0 // loop_exit
    _

// kernel: l_msvae_forward.3
$region0: #{l_msvae_forward.3}
  #allocation0 [shape = 'u32[]', space=smem, size = 0x4, offset = 0x4, fixed_abs, tag = 'smem constant byte address 0x4 - core index']
  #allocation1 [shape = 'u32[144,128]{1,0:T(1,128)}', space=vmem, size = 0x12000, scoped, tag = 'internal scratch']
  %s0 = inlined_call_operand.vmem [shape: f32[8,64], index: 0, kind: input, shape index: {}]
  %s1 = inlined_call_operand.vmem [shape: f32[8,16], index: 1, kind: input, shape index: {}]
  %s2 = inlined_call_operand.vmem [shape: s32[8,1], index: 2, kind: input, shape index: {}]
  %s3 = inlined_call_operand.vmem [shape: f32[8,16], index: 3, kind: input, shape index: {}]
  %s4 = inlined_call_operand.vmem [shape: f32[64,32], index: 4, kind: input, shape index: {}]
  %s5 = inlined_call_operand.vmem [shape: f32[1,32], index: 5, kind: input, shape index: {}]
  %s6 = inlined_call_operand.vmem [shape: f32[192,256], index: 6, kind: input, shape index: {}]
  %s7 = inlined_call_operand.vmem [shape: f32[16,256], index: 7, kind: input, shape index: {}]
  %s8 = inlined_call_operand.vmem [shape: f32[16,256], index: 8, kind: input, shape index: {}]
  %s9 = inlined_call_operand.vmem [shape: f32[1,256], index: 9, kind: input, shape index: {}]
  %s10 = inlined_call_operand.vmem [shape: f32[64,128], index: 10, kind: input, shape index: {}]
  %s11 = inlined_call_operand.vmem [shape: f32[1,128], index: 11, kind: input, shape index: {}]
  %s12 = inlined_call_operand.vmem [shape: f32[8,8,128], index: 12, kind: output, shape index: {0}]
  %s13 = inlined_call_operand.vmem [shape: f32[8,16], index: 13, kind: output, shape index: {1}]
  %s14 = inlined_call_operand.vmem [shape: f32[8,16], index: 14, kind: output, shape index: {2}]
  %15 = xla_tuple %s12, %s13, %s14
  %s16 = sld [smem:[#allocation0]]
  $region74: #{l_msvae_forward.3} parent=0
    _
  %s18 = ssub.s32 1, %s16
  %s19 = scalar_select 0, %s18, %s16
  // Predicated region
  $region2: #{l_msvae_forward.3} parent=0 // pred_check
    _
  $region3: #{l_msvae_forward.3} parent=0 // pred_check_branch
    %21 = sbr.rel (0) target = $region5
  $region4: #{l_msvae_forward.3} parent=0 // pred_region
    _
  $region5: #{l_msvae_forward.3} parent=0 // pred_fallthru
    _
  // Predicated region
  $region6: #{l_msvae_forward.3} parent=0 // pred_check
    _
  $region7: #{l_msvae_forward.3} parent=0 // pred_check_branch
    %23 = sbr.rel (0) target = $region9
  $region8: #{l_msvae_forward.3} parent=0 // pred_region
    _
  $region9: #{l_msvae_forward.3} parent=0 // pred_fallthru
    _
  // Predicated region
  $region10: #{l_msvae_forward.3} parent=0 // pred_check
    _
  $region11: #{l_msvae_forward.3} parent=0 // pred_check_branch
    %25 = sbr.rel (0) target = $region13
  $region12: #{l_msvae_forward.3} parent=0 // pred_region
    _
  $region13: #{l_msvae_forward.3} parent=0 // pred_fallthru
    _
  // Predicated region
  $region14: #{l_msvae_forward.3} parent=0 // pred_check
    _
  $region15: #{l_msvae_forward.3} parent=0 // pred_check_branch
    %27 = sbr.rel (0) target = $region17
  $region16: #{l_msvae_forward.3} parent=0 // pred_region
    _
  $region17: #{l_msvae_forward.3} parent=0 // pred_fallthru
    _
  // Predicated region
  $region18: #{l_msvae_forward.3} parent=0 // pred_check
    _
  $region19: #{l_msvae_forward.3} parent=0 // pred_check_branch
    %29 = sbr.rel (0) target = $region21
  $region20: #{l_msvae_forward.3} parent=0 // pred_region
    _
  $region21: #{l_msvae_forward.3} parent=0 // pred_fallthru
    _
  // Predicated region
  $region22: #{l_msvae_forward.3} parent=0 // pred_check
    _
  $region23: #{l_msvae_forward.3} parent=0 // pred_check_branch
    %31 = sbr.rel (0) target = $region25
  $region24: #{l_msvae_forward.3} parent=0 // pred_region
    _
  $region25: #{l_msvae_forward.3} parent=0 // pred_fallthru
    _
  // Predicated region
  $region26: #{l_msvae_forward.3} parent=0 // pred_check
    _
  $region27: #{l_msvae_forward.3} parent=0 // pred_check_branch
    %33 = sbr.rel (0) target = $region29
  $region28: #{l_msvae_forward.3} parent=0 // pred_region
    _
  $region29: #{l_msvae_forward.3} parent=0 // pred_fallthru
    _
  // Predicated region
  $region30: #{l_msvae_forward.3} parent=0 // pred_check
    _
  $region31: #{l_msvae_forward.3} parent=0 // pred_check_branch
    %35 = sbr.rel (0) target = $region33
  $region32: #{l_msvae_forward.3} parent=0 // pred_region
    _
  $region33: #{l_msvae_forward.3} parent=0 // pred_fallthru
    _
  // Predicated region
  $region34: #{l_msvae_forward.3} parent=0 // pred_check
    _
  $region35: #{l_msvae_forward.3} parent=0 // pred_check_branch
    %37 = sbr.rel (0) target = $region37
  $region36: #{l_msvae_forward.3} parent=0 // pred_region
    _
  $region37: #{l_msvae_forward.3} parent=0 // pred_fallthru
    _
  // Predicated region
  $region38: #{l_msvae_forward.3} parent=0 // pred_check
    _
  $region39: #{l_msvae_forward.3} parent=0 // pred_check_branch
    %39 = sbr.rel (0) target = $region41
  $region40: #{l_msvae_forward.3} parent=0 // pred_region
    _
  $region41: #{l_msvae_forward.3} parent=0 // pred_fallthru
    _
  // Predicated region
  $region42: #{l_msvae_forward.3} parent=0 // pred_check
    _
  $region43: #{l_msvae_forward.3} parent=0 // pred_check_branch
    %41 = sbr.rel (0) target = $region45
  $region44: #{l_msvae_forward.3} parent=0 // pred_region
    _
  $region45: #{l_msvae_forward.3} parent=0 // pred_fallthru
    _
  // Predicated region
  $region46: #{l_msvae_forward.3} parent=0 // pred_check
    _
  $region47: #{l_msvae_forward.3} parent=0 // pred_check_branch
    %43 = sbr.rel (0) target = $region49
  $region48: #{l_msvae_forward.3} parent=0 // pred_region
    _
  $region49: #{l_msvae_forward.3} parent=0 // pred_fallthru
    _
  %v45 = vld [vmem:[%s0] sm:$0xff]
  %v46 = vpack.c.bf16 %v45, %v45
  %v47 = vld [vmem:[%s4] sm:$0xff]
  %v48 = vld [vmem:[%s4 + $0x8] sm:$0xff]
  %v49 = vld [vmem:[%s4 + $0x10] sm:$0xff]
  %v50 = vld [vmem:[%s4 + $0x18] sm:$0xff]
  %v51 = vld [vmem:[%s4 + $0x20] sm:$0xff]
  %v52 = vld [vmem:[%s4 + $0x28] sm:$0xff]
  %v53 = vld [vmem:[%s4 + $0x30] sm:$0xff]
  %v54 = vld [vmem:[%s4 + $0x38] sm:$0xff]
  %v55 = vpack.c.bf16 %v48, %v47
  %v56 = vpack.c.bf16 %v50, %v49
  %v57 = vpack.c.bf16 %v52, %v51
  %v58 = vpack.c.bf16 %v54, %v53
  %v59 = vld [vmem:[%s5] sm:$0x1]
  %v61 = vlaneseq
  %v62 = vshrl.u32 %v61, 7
  %v63 = vsub.s32 0, %v62
  %v64 = vrot.slane %v59, %v63
  %vm66 = vcmask 523264
  %v68 = vsel %vm66, %v46, 0
  %70 = vmatprep.subr.bf16.mxu0 0
  %71 = vmatpush1.bf16.msra.mxu0 %v55
  %72 = vmatprep.subr.bf16.mxu0 0
  %73 = vmatpush1.bf16.msra.mxu0 %v56
  %74 = vmatprep.subr.bf16.mxu0 0
  %75 = vmatpush1.bf16.msra.mxu0 %v57
  %76 = vmatprep.subr.bf16.mxu0 0
  %77 = vmatpush1.bf16.msra.mxu0 %v58
  %78 = vmatprep.subr.bf16.mxu0 0
  %79 = vmatpush1.bf16.msra.mxu0 0
  %80 = vmatprep.subr.bf16.mxu0 0
  %81 = vmatpush1.bf16.msra.mxu0 0
  %82 = vmatprep.subr.bf16.mxu0 0
  %83 = vmatpush1.bf16.msra.mxu0 0
  %84 = vmatprep.subr.bf16.mxu0 0
  %85 = vmatpush1.bf16.msra.mxu0 0
  %86 = vmatprep.subr.bf16.mxu0 0
  %87 = vmatpush1.bf16.msra.mxu0 0
  %88 = vmatprep.subr.bf16.mxu0 0
  %89 = vmatpush1.bf16.msra.mxu0 0
  %90 = vmatprep.subr.bf16.mxu0 0
  %91 = vmatpush1.bf16.msra.mxu0 0
  %92 = vmatprep.subr.bf16.mxu0 0
  %93 = vmatpush1.bf16.msra.mxu0 0
  %94 = vmatprep.subr.bf16.mxu0 0
  %95 = vmatpush1.bf16.msra.mxu0 0
  %96 = vmatprep.subr.bf16.mxu0 0
  %97 = vmatpush1.bf16.msra.mxu0 0
  %98 = vmatprep.subr.bf16.mxu0 0
  %99 = vmatpush1.bf16.msra.mxu0 0
  %100 = vmatprep.subr.bf16.mxu0 0
  %101 = vmatpush1.bf16.msra.mxu0 0
  %102 = vmatprep.mubr.bf16.mxu0 0
  %103 = vmatmul.mubr.bf16.gmra.mrb[0].mxu0 %v68
  %v104 = vpop.f32.mrb[0].mxu0
  %v105 = vadd.f32 %v64, %v104
  %v106 = vpop.f32.mrb[0].mxu0
  %v107 = vpop.f32.mrb[0].mxu0
  %v108 = vpop.f32.mrb[0].mxu0
  %109 = vdwg.mxu0
  %v110 = vmax.f32 %v105, 0.0
  %v111 = vld [vmem:[%s1] sm:$0xff]
  %v112 = vmul.f32 %v110, 0.5
  %v113 = vmul.f32 %v112, 1.442695
  %v114 = vpow.pop %v113
  %116 = vrot.lane.b32.xlu0 %v114, 112
  %v117 = vpop.permute.xlu0 %116
  %v119 = vmul.f32 %v111, %v117
  %v120 = vadd.f32 %v110, %v119
  %vm121 = vcmask 130048
  %122 = vst.msk [vmem:[%s13] sm:$0xff] %vm121, %v110
  %124 = vrot.lane.b32.xlu0 %v110, 112
  %v125 = vpop.permute.xlu0 %124
  %127 = vst.msk [vmem:[%s14] sm:$0xff] %vm121, %v125
  %v128 = vpack.c.bf16 %v120, %v120
  %v129 = vld [vmem:[%s7] sm:$0xff]
  %v130 = vld [vmem:[%s7 + $0x8] sm:$0xff]
  %v131 = vld [vmem:[%s7 + $0x10] sm:$0xff]
  %v132 = vld [vmem:[%s7 + $0x18] sm:$0xff]
  %v133 = vpack.c.bf16 %v131, %v129
  %v134 = vpack.c.bf16 %v132, %v130
  %v135 = vld [vmem:[%s3] sm:$0xff]
  %v136 = vpack.c.bf16 %v135, %v135
  %v137 = vld [vmem:[%s8] sm:$0xff]
  %v138 = vld [vmem:[%s8 + $0x8] sm:$0xff]
  %v139 = vld [vmem:[%s8 + $0x10] sm:$0xff]
  %v140 = vld [vmem:[%s8 + $0x18] sm:$0xff]
  %v141 = vpack.c.bf16 %v139, %v137
  %v142 = vpack.c.bf16 %v140, %v138
  %v144 = vsel %vm121, %v136, 0
  %146 = vmatprep.subr.bf16.mxu0 %v142
  %147 = vmatpush1.bf16.msra.mxu0 %v141
  %148 = vmatprep.subr.bf16.mxu0 0
  %149 = vmatpush1.bf16.msra.mxu0 0
  %150 = vmatprep.subr.bf16.mxu0 0
  %151 = vmatpush1.bf16.msra.mxu0 0
  %152 = vmatprep.subr.bf16.mxu0 0
  %153 = vmatpush1.bf16.msra.mxu0 0
  %154 = vmatprep.subr.bf16.mxu0 0
  %155 = vmatpush1.bf16.msra.mxu0 0
  %156 = vmatprep.subr.bf16.mxu0 0
  %157 = vmatpush1.bf16.msra.mxu0 0
  %158 = vmatprep.subr.bf16.mxu0 0
  %159 = vmatpush1.bf16.msra.mxu0 0
  %160 = vmatprep.subr.bf16.mxu0 0
  %161 = vmatpush1.bf16.msra.mxu0 0
  %162 = vmatprep.subr.bf16.mxu0 0
  %163 = vmatpush1.bf16.msra.mxu0 0
  %164 = vmatprep.subr.bf16.mxu0 0
  %165 = vmatpush1.bf16.msra.mxu0 0
  %166 = vmatprep.subr.bf16.mxu0 0
  %167 = vmatpush1.bf16.msra.mxu0 0
  %168 = vmatprep.subr.bf16.mxu0 0
  %169 = vmatpush1.bf16.msra.mxu0 0
  %170 = vmatprep.subr.bf16.mxu0 0
  %171 = vmatpush1.bf16.msra.mxu0 0
  %172 = vmatprep.subr.bf16.mxu0 0
  %173 = vmatpush1.bf16.msra.mxu0 0
  %174 = vmatprep.subr.bf16.mxu0 0
  %175 = vmatpush1.bf16.msra.mxu0 0
  %176 = vmatprep.subr.bf16.mxu0 0
  %177 = vmatpush1.bf16.msra.mxu0 0
  %178 = vmatprep.mubr.bf16.mxu0 0
  %179 = vmatmul.mubr.bf16.gmra.mrb[0].mxu0 %v144
  %v180 = vpop.f32.mrb[0].mxu0
  %v181 = vadd.f32 0.0, %v180
  %v182 = vpop.f32.mrb[0].mxu0
  %v183 = vadd.f32 0.0, %v182
  %v184 = vpop.f32.mrb[0].mxu0
  %v185 = vpop.f32.mrb[0].mxu0
  %186 = vdwg.mxu0
  %v188 = vsel %vm121, %v128, 0
  %190 = vmatprep.subr.bf16.mxu0 %v134
  %191 = vmatpush1.bf16.msra.mxu0 %v133
  %192 = vmatprep.subr.bf16.mxu0 0
  %193 = vmatpush1.bf16.msra.mxu0 0
  %194 = vmatprep.subr.bf16.mxu0 0
  %195 = vmatpush1.bf16.msra.mxu0 0
  %196 = vmatprep.subr.bf16.mxu0 0
  %197 = vmatpush1.bf16.msra.mxu0 0
  %198 = vmatprep.subr.bf16.mxu0 0
  %199 = vmatpush1.bf16.msra.mxu0 0
  %200 = vmatprep.subr.bf16.mxu0 0
  %201 = vmatpush1.bf16.msra.mxu0 0
  %202 = vmatprep.subr.bf16.mxu0 0
  %203 = vmatpush1.bf16.msra.mxu0 0
  %204 = vmatprep.subr.bf16.mxu0 0
  %205 = vmatpush1.bf16.msra.mxu0 0
  %206 = vmatprep.subr.bf16.mxu0 0
  %207 = vmatpush1.bf16.msra.mxu0 0
  %208 = vmatprep.subr.bf16.mxu0 0
  %209 = vmatpush1.bf16.msra.mxu0 0
  %210 = vmatprep.subr.bf16.mxu0 0
  %211 = vmatpush1.bf16.msra.mxu0 0
  %212 = vmatprep.subr.bf16.mxu0 0
  %213 = vmatpush1.bf16.msra.mxu0 0
  %214 = vmatprep.subr.bf16.mxu0 0
  %215 = vmatpush1.bf16.msra.mxu0 0
  %216 = vmatprep.subr.bf16.mxu0 0
  %217 = vmatpush1.bf16.msra.mxu0 0
  %218 = vmatprep.subr.bf16.mxu0 0
  %219 = vmatpush1.bf16.msra.mxu0 0
  %220 = vmatprep.subr.bf16.mxu0 0
  %221 = vmatpush1.bf16.msra.mxu0 0
  %222 = vmatprep.mubr.bf16.mxu0 0
  %223 = vmatmul.mubr.bf16.gmra.mrb[0].mxu0 %v188
  %v224 = vpop.f32.mrb[0].mxu0
  %v225 = vadd.f32 %v181, %v224
  %v226 = vpop.f32.mrb[0].mxu0
  %v227 = vadd.f32 %v183, %v226
  %v228 = vpop.f32.mrb[0].mxu0
  %v229 = vpop.f32.mrb[0].mxu0
  %230 = vdwg.mxu0
  %v231 = vld [vmem:[%s9] sm:$0x3]
  %v233 = vlaneseq
  %v234 = vshrl.u32 %v233, 7
  %v235 = vsub.s32 0, %v234
  %v236 = vrot.slane %v231, %v235
  %v237 = vlaneseq
  %v238 = vshrl.u32 %v237, 7
  %v239 = vsub.s32 1, %v238
  %v240 = vrot.slane %v231, %v239
  %v243 = vadd.f32 %v225, %v236
  %v244 = vadd.f32 %v227, %v240
  %v245 = vld [vmem:[%s6] sm:$0xff]
  %v246 = vld [vmem:[%s6 + $0x8] sm:$0xff]
  %v247 = vld [vmem:[%s6 + $0x10] sm:$0xff]
  %v248 = vld [vmem:[%s6 + $0x18] sm:$0xff]
  %v249 = vld [vmem:[%s6 + $0x20] sm:$0xff]
  %v250 = vld [vmem:[%s6 + $0x28] sm:$0xff]
  %v251 = vld [vmem:[%s6 + $0x30] sm:$0xff]
  %v252 = vld [vmem:[%s6 + $0x38] sm:$0xff]
  %v253 = vld [vmem:[%s6 + $0x40] sm:$0xff]
  %v254 = vld [vmem:[%s6 + $0x48] sm:$0xff]
  %v255 = vld [vmem:[%s6 + $0x50] sm:$0xff]
  %v256 = vld [vmem:[%s6 + $0x58] sm:$0xff]
  %v257 = vld [vmem:[%s6 + $0x60] sm:$0xff]
  %v258 = vld [vmem:[%s6 + $0x68] sm:$0xff]
  %v259 = vld [vmem:[%s6 + $0x70] sm:$0xff]
  %v260 = vld [vmem:[%s6 + $0x78] sm:$0xff]
  %v261 = vld [vmem:[%s6 + $0x80] sm:$0xff]
  %v262 = vld [vmem:[%s6 + $0x88] sm:$0xff]
  %v263 = vld [vmem:[%s6 + $0x90] sm:$0xff]
  %v264 = vld [vmem:[%s6 + $0x98] sm:$0xff]
  %v265 = vld [vmem:[%s6 + $0xa0] sm:$0xff]
  %v266 = vld [vmem:[%s6 + $0xa8] sm:$0xff]
  %v267 = vld [vmem:[%s6 + $0xb0] sm:$0xff]
  %v268 = vld [vmem:[%s6 + $0xb8] sm:$0xff]
  %v269 = vld [vmem:[%s6 + $0xc0] sm:$0xff]
  %v270 = vld [vmem:[%s6 + $0xc8] sm:$0xff]
  %v271 = vld [vmem:[%s6 + $0xd0] sm:$0xff]
  %v272 = vld [vmem:[%s6 + $0xd8] sm:$0xff]
  %v273 = vld [vmem:[%s6 + $0xe0] sm:$0xff]
  %v274 = vld [vmem:[%s6 + $0xe8] sm:$0xff]
  %v275 = vld [vmem:[%s6 + $0xf0] sm:$0xff]
  %v276 = vld [vmem:[%s6 + $0xf8] sm:$0xff]
  %v277 = vld [vmem:[%s6 + $0x100] sm:$0xff]
  %v278 = vld [vmem:[%s6 + $0x108] sm:$0xff]
  %v279 = vld [vmem:[%s6 + $0x110] sm:$0xff]
  %v280 = vld [vmem:[%s6 + $0x118] sm:$0xff]
  %v281 = vld [vmem:[%s6 + $0x120] sm:$0xff]
  %v282 = vld [vmem:[%s6 + $0x128] sm:$0xff]
  %v283 = vld [vmem:[%s6 + $0x130] sm:$0xff]
  %v284 = vld [vmem:[%s6 + $0x138] sm:$0xff]
  %v285 = vld [vmem:[%s6 + $0x140] sm:$0xff]
  %v286 = vld [vmem:[%s6 + $0x148] sm:$0xff]
  %v287 = vld [vmem:[%s6 + $0x150] sm:$0xff]
  %v288 = vld [vmem:[%s6 + $0x158] sm:$0xff]
  %v289 = vld [vmem:[%s6 + $0x160] sm:$0xff]
  %v290 = vld [vmem:[%s6 + $0x168] sm:$0xff]
  %v291 = vld [vmem:[%s6 + $0x170] sm:$0xff]
  %v292 = vld [vmem:[%s6 + $0x178] sm:$0xff]
  %v293 = vpack.c.bf16 %v247, %v245
  %v294 = vpack.c.bf16 %v248, %v246
  %v295 = vpack.c.bf16 %v251, %v249
  %v296 = vpack.c.bf16 %v252, %v250
  %v297 = vpack.c.bf16 %v255, %v253
  %v298 = vpack.c.bf16 %v256, %v254
  %v299 = vpack.c.bf16 %v259, %v257
  %v300 = vpack.c.bf16 %v260, %v258
  %v301 = vpack.c.bf16 %v263, %v261
  %v302 = vpack.c.bf16 %v264, %v262
  %v303 = vpack.c.bf16 %v267, %v265
  %v304 = vpack.c.bf16 %v268, %v266
  %v305 = vpack.c.bf16 %v271, %v269
  %v306 = vpack.c.bf16 %v272, %v270
  %v307 = vpack.c.bf16 %v275, %v273
  %v308 = vpack.c.bf16 %v276, %v274
  %v309 = vpack.c.bf16 %v279, %v277
  %v310 = vpack.c.bf16 %v280, %v278
  %v311 = vpack.c.bf16 %v283, %v281
  %v312 = vpack.c.bf16 %v284, %v282
  %v313 = vpack.c.bf16 %v287, %v285
  %v314 = vpack.c.bf16 %v288, %v286
  %v315 = vpack.c.bf16 %v291, %v289
  %v316 = vpack.c.bf16 %v292, %v290
  %v317 = vld [vmem:[%s10] sm:$0xff]
  %v318 = vld [vmem:[%s10 + $0x8] sm:$0xff]
  %v319 = vld [vmem:[%s10 + $0x10] sm:$0xff]
  %v320 = vld [vmem:[%s10 + $0x18] sm:$0xff]
  %v321 = vld [vmem:[%s10 + $0x20] sm:$0xff]
  %v322 = vld [vmem:[%s10 + $0x28] sm:$0xff]
  %v323 = vld [vmem:[%s10 + $0x30] sm:$0xff]
  %v324 = vld [vmem:[%s10 + $0x38] sm:$0xff]
  %v325 = vpack.c.bf16 %v318, %v317
  %v326 = vpack.c.bf16 %v320, %v319
  %v327 = vpack.c.bf16 %v322, %v321
  %v328 = vpack.c.bf16 %v324, %v323
  %v329 = vld [vmem:[%s11] sm:$0x1]
  %v331 = vlaneseq
  %v332 = vshrl.u32 %v331, 7
  %v333 = vsub.s32 0, %v332
  %v334 = vrot.slane %v329, %v333
  %v336 = vlaneseq
  %v337 = vand.u32 %v336, 127
  %338 = vst [vmem:[%s12] sm:$0xff] 0.0
  %v339 = vld [vmem:[%s2] sm:$0xff]
  %340 = vset.pattern.permute.xlu0 0
  %341 = vperm.xlu0 %340, %v339
  %v342 = vpop.permute.xlu0 %341
  %vm343 = vcmp.eq.s32.totalorder %v337, %v342
  %v344 = vsel %vm343, 1, 0
  %v345 = vcvt.s32.f32 %v344
  %v346 = vpack.c.bf16 %v345, %v345
  %347 = vmatprep.subr.bf16.mxu0 %v294
  %348 = vmatpush1.bf16.msra.mxu0 %v293
  %349 = vmatprep.subr.bf16.mxu0 %v296
  %350 = vmatpush1.bf16.msra.mxu0 %v295
  %351 = vmatprep.subr.bf16.mxu0 %v298
  %352 = vmatpush1.bf16.msra.mxu0 %v297
  %353 = vmatprep.subr.bf16.mxu0 %v300
  %354 = vmatpush1.bf16.msra.mxu0 %v299
  %355 = vmatprep.subr.bf16.mxu0 %v302
  %356 = vmatpush1.bf16.msra.mxu0 %v301
  %357 = vmatprep.subr.bf16.mxu0 %v304
  %358 = vmatpush1.bf16.msra.mxu0 %v303
  %359 = vmatprep.subr.bf16.mxu0 %v306
  %360 = vmatpush1.bf16.msra.mxu0 %v305
  %361 = vmatprep.subr.bf16.mxu0 %v308
  %362 = vmatpush1.bf16.msra.mxu0 %v307
  %363 = vmatprep.subr.bf16.mxu0 %v310
  %364 = vmatpush1.bf16.msra.mxu0 %v309
  %365 = vmatprep.subr.bf16.mxu0 %v312
  %366 = vmatpush1.bf16.msra.mxu0 %v311
  %367 = vmatprep.subr.bf16.mxu0 %v314
  %368 = vmatpush1.bf16.msra.mxu0 %v313
  %369 = vmatprep.subr.bf16.mxu0 %v316
  %370 = vmatpush1.bf16.msra.mxu0 %v315
  %371 = vmatprep.subr.bf16.mxu0 0
  %372 = vmatpush1.bf16.msra.mxu0 0
  %373 = vmatprep.subr.bf16.mxu0 0
  %374 = vmatpush1.bf16.msra.mxu0 0
  %375 = vmatprep.subr.bf16.mxu0 0
  %376 = vmatpush1.bf16.msra.mxu0 0
  %377 = vmatprep.subr.bf16.mxu0 0
  %378 = vmatpush1.bf16.msra.mxu0 0
  %379 = vmatprep.mubr.bf16.mxu0 %v68
  %380 = vmatmul.mubr.bf16.gmra.mrb[0].mxu0 %v346
  %v381 = vpop.f32.mrb[0].mxu0
  %v382 = vadd.f32 %v243, %v381
  %v383 = vpop.f32.mrb[0].mxu0
  %v384 = vadd.f32 %v244, %v383
  %v385 = vpop.f32.mrb[0].mxu0
  %v386 = vpop.f32.mrb[0].mxu0
  %387 = vdwg.mxu0
  %v388 = vxor.u32 %v382, 2147483648
  %v389 = vmul.f32 %v388, 1.442695
  %v390 = vpow.pop %v389
  %v391 = vadd.f32 %v390, 1.0
  %v392 = vrcp.pop %v391
  %v393 = vmul.f32 1.0, %v392
  %395 = vrot.lane.b32.xlu0 %v384, 64
  %v396 = vpop.permute.xlu0 %395
  %v398 = vmul.f32 %v393, %v396
  %v399 = vadd.f32 %v384, %v398
  %v400 = vtanh.pop %v399
  %v401 = vsub.f32 1.0, %v393
  %403 = vrot.lane.b32.xlu0 %v400, 64
  %v404 = vpop.permute.xlu0 %403
  %v406 = vmul.f32 %v401, %v404
  %408 = vrot.lane.b32.xlu0 %v45, 64
  %v409 = vpop.permute.xlu0 %408
  %v411 = vmul.f32 %v393, %v409
  %v412 = vadd.f32 %v406, %v411
  %v413 = vpack.c.bf16 %v412, %v412
  %415 = vrot.lane.b32.xlu0 %v413, 64
  %v416 = vpop.permute.xlu0 %415
  %v418 = vsel %vm66, %v416, 0
  %420 = vmatprep.subr.bf16.mxu0 0
  %421 = vmatpush1.bf16.msra.mxu0 %v325
  %422 = vmatprep.subr.bf16.mxu0 0
  %423 = vmatpush1.bf16.msra.mxu0 %v326
  %424 = vmatprep.subr.bf16.mxu0 0
  %425 = vmatpush1.bf16.msra.mxu0 %v327
  %426 = vmatprep.subr.bf16.mxu0 0
  %427 = vmatpush1.bf16.msra.mxu0 %v328
  %428 = vmatprep.subr.bf16.mxu0 0
  %429 = vmatpush1.bf16.msra.mxu0 0
  %430 = vmatprep.subr.bf16.mxu0 0
  %431 = vmatpush1.bf16.msra.mxu0 0
  %432 = vmatprep.subr.bf16.mxu0 0
  %433 = vmatpush1.bf16.msra.mxu0 0
  %434 = vmatprep.subr.bf16.mxu0 0
  %435 = vmatpush1.bf16.msra.mxu0 0
  %436 = vmatprep.subr.bf16.mxu0 0
  %437 = vmatpush1.bf16.msra.mxu0 0
  %438 = vmatprep.subr.bf16.mxu0 0
  %439 = vmatpush1.bf16.msra.mxu0 0
  %440 = vmatprep.subr.bf16.mxu0 0
  %441 = vmatpush1.bf16.msra.mxu0 0
  %442 = vmatprep.subr.bf16.mxu0 0
  %443 = vmatpush1.bf16.msra.mxu0 0
  %444 = vmatprep.subr.bf16.mxu0 0
  %445 = vmatpush1.bf16.msra.mxu0 0
  %446 = vmatprep.subr.bf16.mxu0 0
  %447 = vmatpush1.bf16.msra.mxu0 0
  %448 = vmatprep.subr.bf16.mxu0 0
  %449 = vmatpush1.bf16.msra.mxu0 0
  %450 = vmatprep.subr.bf16.mxu0 0
  %451 = vmatpush1.bf16.msra.mxu0 0
  %452 = vmatprep.mubr.bf16.mxu0 0
  %453 = vmatmul.mubr.bf16.gmra.mrb[0].mxu0 %v418
  %v454 = vpop.f32.mrb[0].mxu0
  %v455 = vadd.f32 %v334, %v454
  %v456 = vpop.f32.mrb[0].mxu0
  %v457 = vpop.f32.mrb[0].mxu0
  %v458 = vpop.f32.mrb[0].mxu0
  %459 = vdwg.mxu0
  %s460 = scalar_lea.vmem %s12, 8
  %461 = vst [vmem:[%s460] sm:$0xff] %v455
  %462 = vmax.xlane.f32.xlu0 %v455
  %v463 = vpop.xlane.xlu0 %462
  %vm464 = vcmp.eq.f32.partialorder %v455, %v463
  %v465 = vsel %vm464, %v337, 128
  %v466 = vand.u32 %v465, 65535
  %v467 = vshra.s32 %v465, 16
  %v468 = vcvt.s32.f32 %v466
  %v469 = vcvt.s32.f32 %v467
  %470 = vmin.xlane.f32.xlu0 %v469
  %v471 = vpop.xlane.xlu0 %470
  %vm472 = vcmp.eq.f32.partialorder %v469, %v471
  %v473 = vsel %vm472, %v468, inf
  %474 = vmin.xlane.f32.xlu0 %v473
  %v475 = vpop.xlane.xlu0 %474
  %v476 = vcvt.f32.s32 %v475
  %v477 = vcvt.f32.s32 %v471
  %v478 = vshll.u32 %v477, 16
  %v479 = vadd.s32 %v478, %v476
  %vm480 = vcmp.eq.s32.totalorder %v337, %v479
  %v481 = vsel %vm480, 1, 0
  %v482 = vcvt.s32.f32 %v481
  %v483 = vpack.c.bf16 %v482, %v482
  %484 = vmatprep.subr.bf16.mxu0 %v294
  %485 = vmatpush1.bf16.msra.mxu0 %v293
  %486 = vmatprep.subr.bf16.mxu0 %v296
  %487 = vmatpush1.bf16.msra.mxu0 %v295
  %488 = vmatprep.subr.bf16.mxu0 %v298
  %489 = vmatpush1.bf16.msra.mxu0 %v297
  %490 = vmatprep.subr.bf16.mxu0 %v300
  %491 = vmatpush1.bf16.msra.mxu0 %v299
  %492 = vmatprep.subr.bf16.mxu0 %v302
  %493 = vmatpush1.bf16.msra.mxu0 %v301
  %494 = vmatprep.subr.bf16.mxu0 %v304
  %495 = vmatpush1.bf16.msra.mxu0 %v303
  %496 = vmatprep.subr.bf16.mxu0 %v306
  %497 = vmatpush1.bf16.msra.mxu0 %v305
  %498 = vmatprep.subr.bf16.mxu0 %v308
  %499 = vmatpush1.bf16.msra.mxu0 %v307
  %500 = vmatprep.subr.bf16.mxu0 %v310
  %501 = vmatpush1.bf16.msra.mxu0 %v309
  %502 = vmatprep.subr.bf16.mxu0 %v312
  %503 = vmatpush1.bf16.msra.mxu0 %v311
  %504 = vmatprep.subr.bf16.mxu0 %v314
  %505 = vmatpush1.bf16.msra.mxu0 %v313
  %506 = vmatprep.subr.bf16.mxu0 %v316
  %507 = vmatpush1.bf16.msra.mxu0 %v315
  %508 = vmatprep.subr.bf16.mxu0 0
  %509 = vmatpush1.bf16.msra.mxu0 0
  %510 = vmatprep.subr.bf16.mxu0 0
  %511 = vmatpush1.bf16.msra.mxu0 0
  %512 = vmatprep.subr.bf16.mxu0 0
  %513 = vmatpush1.bf16.msra.mxu0 0
  %514 = vmatprep.subr.bf16.mxu0 0
  %515 = vmatpush1.bf16.msra.mxu0 0
  %516 = vmatprep.mubr.bf16.mxu0 %v418
  %517 = vmatmul.mubr.bf16.gmra.mrb[0].mxu0 %v483
  %v518 = vpop.f32.mrb[0].mxu0
  %v519 = vadd.f32 %v243, %v518
  %v520 = vpop.f32.mrb[0].mxu0
  %v521 = vadd.f32 %v244, %v520
  %v522 = vpop.f32.mrb[0].mxu0
  %v523 = vpop.f32.mrb[0].mxu0
  %524 = vdwg.mxu0
  %v525 = vxor.u32 %v519, 2147483648
  %v526 = vmul.f32 %v525, 1.442695
  %v527 = vpow.pop %v526
  %v528 = vadd.f32 %v527, 1.0
  %v529 = vrcp.pop %v528
  %v530 = vmul.f32 1.0, %v529
  %532 = vrot.lane.b32.xlu0 %v521, 64
  %v533 = vpop.permute.xlu0 %532
  %v535 = vmul.f32 %v530, %v533
  %v536 = vadd.f32 %v521, %v535
  %v537 = vtanh.pop %v536
  %v538 = vsub.f32 1.0, %v530
  %540 = vrot.lane.b32.xlu0 %v537, 64
  %v541 = vpop.permute.xlu0 %540
  %v543 = vmul.f32 %v538, %v541
  %v544 = vmul.f32 %v530, %v412
  %v545 = vadd.f32 %v543, %v544
  %v546 = vpack.c.bf16 %v545, %v545
  %548 = vrot.lane.b32.xlu0 %v546, 64
  %v549 = vpop.permute.xlu0 %548
  %v551 = vsel %vm66, %v549, 0
  %553 = vmatprep.subr.bf16.mxu0 0
  %554 = vmatpush1.bf16.msra.mxu0 %v325
  %555 = vmatprep.subr.bf16.mxu0 0
  %556 = vmatpush1.bf16.msra.mxu0 %v326
  %557 = vmatprep.subr.bf16.mxu0 0
  %558 = vmatpush1.bf16.msra.mxu0 %v327
  %559 = vmatprep.subr.bf16.mxu0 0
  %560 = vmatpush1.bf16.msra.mxu0 %v328
  %561 = vmatprep.subr.bf16.mxu0 0
  %562 = vmatpush1.bf16.msra.mxu0 0
  %563 = vmatprep.subr.bf16.mxu0 0
  %564 = vmatpush1.bf16.msra.mxu0 0
  %565 = vmatprep.subr.bf16.mxu0 0
  %566 = vmatpush1.bf16.msra.mxu0 0
  %567 = vmatprep.subr.bf16.mxu0 0
  %568 = vmatpush1.bf16.msra.mxu0 0
  %569 = vmatprep.subr.bf16.mxu0 0
  %570 = vmatpush1.bf16.msra.mxu0 0
  %571 = vmatprep.subr.bf16.mxu0 0
  %572 = vmatpush1.bf16.msra.mxu0 0
  %573 = vmatprep.subr.bf16.mxu0 0
  %574 = vmatpush1.bf16.msra.mxu0 0
  %575 = vmatprep.subr.bf16.mxu0 0
  %576 = vmatpush1.bf16.msra.mxu0 0
  %577 = vmatprep.subr.bf16.mxu0 0
  %578 = vmatpush1.bf16.msra.mxu0 0
  %579 = vmatprep.subr.bf16.mxu0 0
  %580 = vmatpush1.bf16.msra.mxu0 0
  %581 = vmatprep.subr.bf16.mxu0 0
  %582 = vmatpush1.bf16.msra.mxu0 0
  %583 = vmatprep.subr.bf16.mxu0 0
  %584 = vmatpush1.bf16.msra.mxu0 0
  %585 = vmatprep.mubr.bf16.mxu0 0
  %586 = vmatmul.mubr.bf16.gmra.mrb[0].mxu0 %v551
  %v587 = vpop.f32.mrb[0].mxu0
  %v588 = vadd.f32 %v334, %v587
  %v589 = vpop.f32.mrb[0].mxu0
  %v590 = vpop.f32.mrb[0].mxu0
  %v591 = vpop.f32.mrb[0].mxu0
  %592 = vdwg.mxu0
  %s593 = scalar_lea.vmem %s12, 16
  %594 = vst [vmem:[%s593] sm:$0xff] %v588
  %595 = vmax.xlane.f32.xlu0 %v588
  %v596 = vpop.xlane.xlu0 %595
  %vm597 = vcmp.eq.f32.partialorder %v588, %v596
  %v598 = vsel %vm597, %v337, 128
  %v599 = vand.u32 %v598, 65535
  %v600 = vshra.s32 %v598, 16
  %v601 = vcvt.s32.f32 %v599
  %v602 = vcvt.s32.f32 %v600
  %603 = vmin.xlane.f32.xlu0 %v602
  %v604 = vpop.xlane.xlu0 %603
  %vm605 = vcmp.eq.f32.partialorder %v602, %v604
  %v606 = vsel %vm605, %v601, inf
  %607 = vmin.xlane.f32.xlu0 %v606
  %v608 = vpop.xlane.xlu0 %607
  %v609 = vcvt.f32.s32 %v608
  %v610 = vcvt.f32.s32 %v604
  %v611 = vshll.u32 %v610, 16
  %v612 = vadd.s32 %v611, %v609
  %vm613 = vcmp.eq.s32.totalorder %v337, %v612
  %v614 = vsel %vm613, 1, 0
  %v615 = vcvt.s32.f32 %v614
  %v616 = vpack.c.bf16 %v615, %v615
  %617 = vmatprep.subr.bf16.mxu0 %v294
  %618 = vmatpush1.bf16.msra.mxu0 %v293
  %619 = vmatprep.subr.bf16.mxu0 %v296
  %620 = vmatpush1.bf16.msra.mxu0 %v295
  %621 = vmatprep.subr.bf16.mxu0 %v298
  %622 = vmatpush1.bf16.msra.mxu0 %v297
  %623 = vmatprep.subr.bf16.mxu0 %v300
  %624 = vmatpush1.bf16.msra.mxu0 %v299
  %625 = vmatprep.subr.bf16.mxu0 %v302
  %626 = vmatpush1.bf16.msra.mxu0 %v301
  %627 = vmatprep.subr.bf16.mxu0 %v304
  %628 = vmatpush1.bf16.msra.mxu0 %v303
  %629 = vmatprep.subr.bf16.mxu0 %v306
  %630 = vmatpush1.bf16.msra.mxu0 %v305
  %631 = vmatprep.subr.bf16.mxu0 %v308
  %632 = vmatpush1.bf16.msra.mxu0 %v307
  %633 = vmatprep.subr.bf16.mxu0 %v310
  %634 = vmatpush1.bf16.msra.mxu0 %v309
  %635 = vmatprep.subr.bf16.mxu0 %v312
  %636 = vmatpush1.bf16.msra.mxu0 %v311
  %637 = vmatprep.subr.bf16.mxu0 %v314
  %638 = vmatpush1.bf16.msra.mxu0 %v313
  %639 = vmatprep.subr.bf16.mxu0 %v316
  %640 = vmatpush1.bf16.msra.mxu0 %v315
  %641 = vmatprep.subr.bf16.mxu0 0
  %642 = vmatpush1.bf16.msra.mxu0 0
  %643 = vmatprep.subr.bf16.mxu0 0
  %644 = vmatpush1.bf16.msra.mxu0 0
  %645 = vmatprep.subr.bf16.mxu0 0
  %646 = vmatpush1.bf16.msra.mxu0 0
  %647 = vmatprep.subr.bf16.mxu0 0
  %648 = vmatpush1.bf16.msra.mxu0 0
  %649 = vmatprep.mubr.bf16.mxu0 %v551
  %650 = vmatmul.mubr.bf16.gmra.mrb[0].mxu0 %v616
  %v651 = vpop.f32.mrb[0].mxu0
  %v652 = vadd.f32 %v243, %v651
  %v653 = vpop.f32.mrb[0].mxu0
  %v654 = vadd.f32 %v244, %v653
  %v655 = vpop.f32.mrb[0].mxu0
  %v656 = vpop.f32.mrb[0].mxu0
  %657 = vdwg.mxu0
  %v658 = vxor.u32 %v652, 2147483648
  %v659 = vmul.f32 %v658, 1.442695
  %v660 = vpow.pop %v659
  %v661 = vadd.f32 %v660, 1.0
  %v662 = vrcp.pop %v661
  %v663 = vmul.f32 1.0, %v662
  %665 = vrot.lane.b32.xlu0 %v654, 64
  %v666 = vpop.permute.xlu0 %665
  %v668 = vmul.f32 %v663, %v666
  %v669 = vadd.f32 %v654, %v668
  %v670 = vtanh.pop %v669
  %v671 = vsub.f32 1.0, %v663
  %673 = vrot.lane.b32.xlu0 %v670, 64
  %v674 = vpop.permute.xlu0 %673
  %v676 = vmul.f32 %v671, %v674
  %v677 = vmul.f32 %v663, %v545
  %v678 = vadd.f32 %v676, %v677
  %v679 = vpack.c.bf16 %v678, %v678
  %681 = vrot.lane.b32.xlu0 %v679, 64
  %v682 = vpop.permute.xlu0 %681
  %v684 = vsel %vm66, %v682, 0
  %686 = vmatprep.subr.bf16.mxu0 0
  %687 = vmatpush1.bf16.msra.mxu0 %v325
  %688 = vmatprep.subr.bf16.mxu0 0
  %689 = vmatpush1.bf16.msra.mxu0 %v326
  %690 = vmatprep.subr.bf16.mxu0 0
  %691 = vmatpush1.bf16.msra.mxu0 %v327
  %692 = vmatprep.subr.bf16.mxu0 0
  %693 = vmatpush1.bf16.msra.mxu0 %v328
  %694 = vmatprep.subr.bf16.mxu0 0
  %695 = vmatpush1.bf16.msra.mxu0 0
  %696 = vmatprep.subr.bf16.mxu0 0
  %697 = vmatpush1.bf16.msra.mxu0 0
  %698 = vmatprep.subr.bf16.mxu0 0
  %699 = vmatpush1.bf16.msra.mxu0 0
  %700 = vmatprep.subr.bf16.mxu0 0
  %701 = vmatpush1.bf16.msra.mxu0 0
  %702 = vmatprep.subr.bf16.mxu0 0
  %703 = vmatpush1.bf16.msra.mxu0 0
  %704 = vmatprep.subr.bf16.mxu0 0
  %705 = vmatpush1.bf16.msra.mxu0 0
  %706 = vmatprep.subr.bf16.mxu0 0
  %707 = vmatpush1.bf16.msra.mxu0 0
  %708 = vmatprep.subr.bf16.mxu0 0
  %709 = vmatpush1.bf16.msra.mxu0 0
  %710 = vmatprep.subr.bf16.mxu0 0
  %711 = vmatpush1.bf16.msra.mxu0 0
  %712 = vmatprep.subr.bf16.mxu0 0
  %713 = vmatpush1.bf16.msra.mxu0 0
  %714 = vmatprep.subr.bf16.mxu0 0
  %715 = vmatpush1.bf16.msra.mxu0 0
  %716 = vmatprep.subr.bf16.mxu0 0
  %717 = vmatpush1.bf16.msra.mxu0 0
  %718 = vmatprep.mubr.bf16.mxu0 0
  %719 = vmatmul.mubr.bf16.gmra.mrb[0].mxu0 %v684
  %v720 = vpop.f32.mrb[0].mxu0
  %v721 = vadd.f32 %v334, %v720
  %v722 = vpop.f32.mrb[0].mxu0
  %v723 = vpop.f32.mrb[0].mxu0
  %v724 = vpop.f32.mrb[0].mxu0
  %725 = vdwg.mxu0
  %s726 = scalar_lea.vmem %s12, 24
  %727 = vst [vmem:[%s726] sm:$0xff] %v721
  %728 = vmax.xlane.f32.xlu0 %v721
  %v729 = vpop.xlane.xlu0 %728
  %vm730 = vcmp.eq.f32.partialorder %v721, %v729
  %v731 = vsel %vm730, %v337, 128
  %v732 = vand.u32 %v731, 65535
  %v733 = vshra.s32 %v731, 16
  %v734 = vcvt.s32.f32 %v732
  %v735 = vcvt.s32.f32 %v733
  %736 = vmin.xlane.f32.xlu0 %v735
  %v737 = vpop.xlane.xlu0 %736
  %vm738 = vcmp.eq.f32.partialorder %v735, %v737
  %v739 = vsel %vm738, %v734, inf
  %740 = vmin.xlane.f32.xlu0 %v739
  %v741 = vpop.xlane.xlu0 %740
  %v742 = vcvt.f32.s32 %v741
  %v743 = vcvt.f32.s32 %v737
  %v744 = vshll.u32 %v743, 16
  %v745 = vadd.s32 %v744, %v742
  %vm746 = vcmp.eq.s32.totalorder %v337, %v745
  %v747 = vsel %vm746, 1, 0
  %v748 = vcvt.s32.f32 %v747
  %v749 = vpack.c.bf16 %v748, %v748
  %750 = vmatprep.subr.bf16.mxu0 %v294
  %751 = vmatpush1.bf16.msra.mxu0 %v293
  %752 = vmatprep.subr.bf16.mxu0 %v296
  %753 = vmatpush1.bf16.msra.mxu0 %v295
  %754 = vmatprep.subr.bf16.mxu0 %v298
  %755 = vmatpush1.bf16.msra.mxu0 %v297
  %756 = vmatprep.subr.bf16.mxu0 %v300
  %757 = vmatpush1.bf16.msra.mxu0 %v299
  %758 = vmatprep.subr.bf16.mxu0 %v302
  %759 = vmatpush1.bf16.msra.mxu0 %v301
  %760 = vmatprep.subr.bf16.mxu0 %v304
  %761 = vmatpush1.bf16.msra.mxu0 %v303
  %762 = vmatprep.subr.bf16.mxu0 %v306
  %763 = vmatpush1.bf16.msra.mxu0 %v305
  %764 = vmatprep.subr.bf16.mxu0 %v308
  %765 = vmatpush1.bf16.msra.mxu0 %v307
  %766 = vmatprep.subr.bf16.mxu0 %v310
  %767 = vmatpush1.bf16.msra.mxu0 %v309
  %768 = vmatprep.subr.bf16.mxu0 %v312
  %769 = vmatpush1.bf16.msra.mxu0 %v311
  %770 = vmatprep.subr.bf16.mxu0 %v314
  %771 = vmatpush1.bf16.msra.mxu0 %v313
  %772 = vmatprep.subr.bf16.mxu0 %v316
  %773 = vmatpush1.bf16.msra.mxu0 %v315
  %774 = vmatprep.subr.bf16.mxu0 0
  %775 = vmatpush1.bf16.msra.mxu0 0
  %776 = vmatprep.subr.bf16.mxu0 0
  %777 = vmatpush1.bf16.msra.mxu0 0
  %778 = vmatprep.subr.bf16.mxu0 0
  %779 = vmatpush1.bf16.msra.mxu0 0
  %780 = vmatprep.subr.bf16.mxu0 0
  %781 = vmatpush1.bf16.msra.mxu0 0
  %782 = vmatprep.mubr.bf16.mxu0 %v684
  %783 = vmatmul.mubr.bf16.gmra.mrb[0].mxu0 %v749
  %v784 = vpop.f32.mrb[0].mxu0
  %v785 = vadd.f32 %v243, %v784
  %v786 = vpop.f32.mrb[0].mxu0
  %v787 = vadd.f32 %v244, %v786
  %v788 = vpop.f32.mrb[0].mxu0
  %v789 = vpop.f32.mrb[0].mxu0
  %790 = vdwg.mxu0
  %v791 = vxor.u32 %v785, 2147483648
  %v792 = vmul.f32 %v791, 1.442695
  %v793 = vpow.pop %v792
  %v794 = vadd.f32 %v793, 1.0
  %v795 = vrcp.pop %v794
  %v796 = vmul.f32 1.0, %v795
  %798 = vrot.lane.b32.xlu0 %v787, 64
  %v799 = vpop.permute.xlu0 %798
  %v801 = vmul.f32 %v796, %v799
  %v802 = vadd.f32 %v787, %v801
  %v803 = vtanh.pop %v802
  %v804 = vsub.f32 1.0, %v796
  %806 = vrot.lane.b32.xlu0 %v803, 64
  %v807 = vpop.permute.xlu0 %806
  %v809 = vmul.f32 %v804, %v807
  %v810 = vmul.f32 %v796, %v678
  %v811 = vadd.f32 %v809, %v810
  %v812 = vpack.c.bf16 %v811, %v811
  %814 = vrot.lane.b32.xlu0 %v812, 64
  %v815 = vpop.permute.xlu0 %814
  %v817 = vsel %vm66, %v815, 0
  %819 = vmatprep.subr.bf16.mxu0 0
  %820 = vmatpush1.bf16.msra.mxu0 %v325
  %821 = vmatprep.subr.bf16.mxu0 0
  %822 = vmatpush1.bf16.msra.mxu0 %v326
  %823 = vmatprep.subr.bf16.mxu0 0
  %824 = vmatpush1.bf16.msra.mxu0 %v327
  %825 = vmatprep.subr.bf16.mxu0 0
  %826 = vmatpush1.bf16.msra.mxu0 %v328
  %827 = vmatprep.subr.bf16.mxu0 0
  %828 = vmatpush1.bf16.msra.mxu0 0
  %829 = vmatprep.subr.bf16.mxu0 0
  %830 = vmatpush1.bf16.msra.mxu0 0
  %831 = vmatprep.subr.bf16.mxu0 0
  %832 = vmatpush1.bf16.msra.mxu0 0
  %833 = vmatprep.subr.bf16.mxu0 0
  %834 = vmatpush1.bf16.msra.mxu0 0
  %835 = vmatprep.subr.bf16.mxu0 0
  %836 = vmatpush1.bf16.msra.mxu0 0
  %837 = vmatprep.subr.bf16.mxu0 0
  %838 = vmatpush1.bf16.msra.mxu0 0
  %839 = vmatprep.subr.bf16.mxu0 0
  %840 = vmatpush1.bf16.msra.mxu0 0
  %841 = vmatprep.subr.bf16.mxu0 0
  %842 = vmatpush1.bf16.msra.mxu0 0
  %843 = vmatprep.subr.bf16.mxu0 0
  %844 = vmatpush1.bf16.msra.mxu0 0
  %845 = vmatprep.subr.bf16.mxu0 0
  %846 = vmatpush1.bf16.msra.mxu0 0
  %847 = vmatprep.subr.bf16.mxu0 0
  %848 = vmatpush1.bf16.msra.mxu0 0
  %849 = vmatprep.subr.bf16.mxu0 0
  %850 = vmatpush1.bf16.msra.mxu0 0
  %851 = vmatprep.mubr.bf16.mxu0 0
  %852 = vmatmul.mubr.bf16.gmra.mrb[0].mxu0 %v817
  %v853 = vpop.f32.mrb[0].mxu0
  %v854 = vadd.f32 %v334, %v853
  %v855 = vpop.f32.mrb[0].mxu0
  %v856 = vpop.f32.mrb[0].mxu0
  %v857 = vpop.f32.mrb[0].mxu0
  %858 = vdwg.mxu0
  %s859 = scalar_lea.vmem %s12, 32
  %860 = vst [vmem:[%s859] sm:$0xff] %v854
  %861 = vmax.xlane.f32.xlu0 %v854
  %v862 = vpop.xlane.xlu0 %861
  %vm863 = vcmp.eq.f32.partialorder %v854, %v862
  %v864 = vsel %vm863, %v337, 128
  %v865 = vand.u32 %v864, 65535
  %v866 = vshra.s32 %v864, 16
  %v867 = vcvt.s32.f32 %v865
  %v868 = vcvt.s32.f32 %v866
  %869 = vmin.xlane.f32.xlu0 %v868
  %v870 = vpop.xlane.xlu0 %869
  %vm871 = vcmp.eq.f32.partialorder %v868, %v870
  %v872 = vsel %vm871, %v867, inf
  %873 = vmin.xlane.f32.xlu0 %v872
  %v874 = vpop.xlane.xlu0 %873
  %v875 = vcvt.f32.s32 %v874
  %v876 = vcvt.f32.s32 %v870
  %v877 = vshll.u32 %v876, 16
  %v878 = vadd.s32 %v877, %v875
  %vm879 = vcmp.eq.s32.totalorder %v337, %v878
  %v880 = vsel %vm879, 1, 0
  %v881 = vcvt.s32.f32 %v880
  %v882 = vpack.c.bf16 %v881, %v881
  %883 = vmatprep.subr.bf16.mxu0 %v294
  %884 = vmatpush1.bf16.msra.mxu0 %v293
  %885 = vmatprep.subr.bf16.mxu0 %v296
  %886 = vmatpush1.bf16.msra.mxu0 %v295
  %887 = vmatprep.subr.bf16.mxu0 %v298
  %888 = vmatpush1.bf16.msra.mxu0 %v297
  %889 = vmatprep.subr.bf16.mxu0 %v300
  %890 = vmatpush1.bf16.msra.mxu0 %v299
  %891 = vmatprep.subr.bf16.mxu0 %v302
  %892 = vmatpush1.bf16.msra.mxu0 %v301
  %893 = vmatprep.subr.bf16.mxu0 %v304
  %894 = vmatpush1.bf16.msra.mxu0 %v303
  %895 = vmatprep.subr.bf16.mxu0 %v306
  %896 = vmatpush1.bf16.msra.mxu0 %v305
  %897 = vmatprep.subr.bf16.mxu0 %v308
  %898 = vmatpush1.bf16.msra.mxu0 %v307
  %899 = vmatprep.subr.bf16.mxu0 %v310
  %900 = vmatpush1.bf16.msra.mxu0 %v309
  %901 = vmatprep.subr.bf16.mxu0 %v312
  %902 = vmatpush1.bf16.msra.mxu0 %v311
  %903 = vmatprep.subr.bf16.mxu0 %v314
  %904 = vmatpush1.bf16.msra.mxu0 %v313
  %905 = vmatprep.subr.bf16.mxu0 %v316
  %906 = vmatpush1.bf16.msra.mxu0 %v315
  %907 = vmatprep.subr.bf16.mxu0 0
  %908 = vmatpush1.bf16.msra.mxu0 0
  %909 = vmatprep.subr.bf16.mxu0 0
  %910 = vmatpush1.bf16.msra.mxu0 0
  %911 = vmatprep.subr.bf16.mxu0 0
  %912 = vmatpush1.bf16.msra.mxu0 0
  %913 = vmatprep.subr.bf16.mxu0 0
  %914 = vmatpush1.bf16.msra.mxu0 0
  %915 = vmatprep.mubr.bf16.mxu0 %v817
  %916 = vmatmul.mubr.bf16.gmra.mrb[0].mxu0 %v882
  %v917 = vpop.f32.mrb[0].mxu0
  %v918 = vadd.f32 %v243, %v917
  %v919 = vpop.f32.mrb[0].mxu0
  %v920 = vadd.f32 %v244, %v919
  %v921 = vpop.f32.mrb[0].mxu0
  %v922 = vpop.f32.mrb[0].mxu0
  %923 = vdwg.mxu0
  %v924 = vxor.u32 %v918, 2147483648
  %v925 = vmul.f32 %v924, 1.442695
  %v926 = vpow.pop %v925
  %v927 = vadd.f32 %v926, 1.0
  %v928 = vrcp.pop %v927
  %v929 = vmul.f32 1.0, %v928
  %931 = vrot.lane.b32.xlu0 %v920, 64
  %v932 = vpop.permute.xlu0 %931
  %v934 = vmul.f32 %v929, %v932
  %v935 = vadd.f32 %v920, %v934
  %v936 = vtanh.pop %v935
  %v937 = vsub.f32 1.0, %v929
  %939 = vrot.lane.b32.xlu0 %v936, 64
  %v940 = vpop.permute.xlu0 %939
  %v942 = vmul.f32 %v937, %v940
  %v943 = vmul.f32 %v929, %v811
  %v944 = vadd.f32 %v942, %v943
  %v945 = vpack.c.bf16 %v944, %v944
  %947 = vrot.lane.b32.xlu0 %v945, 64
  %v948 = vpop.permute.xlu0 %947
  %v950 = vsel %vm66, %v948, 0
  %952 = vmatprep.subr.bf16.mxu0 0
  %953 = vmatpush1.bf16.msra.mxu0 %v325
  %954 = vmatprep.subr.bf16.mxu0 0
  %955 = vmatpush1.bf16.msra.mxu0 %v326
  %956 = vmatprep.subr.bf16.mxu0 0
  %957 = vmatpush1.bf16.msra.mxu0 %v327
  %958 = vmatprep.subr.bf16.mxu0 0
  %959 = vmatpush1.bf16.msra.mxu0 %v328
  %960 = vmatprep.subr.bf16.mxu0 0
  %961 = vmatpush1.bf16.msra.mxu0 0
  %962 = vmatprep.subr.bf16.mxu0 0
  %963 = vmatpush1.bf16.msra.mxu0 0
  %964 = vmatprep.subr.bf16.mxu0 0
  %965 = vmatpush1.bf16.msra.mxu0 0
  %966 = vmatprep.subr.bf16.mxu0 0
  %967 = vmatpush1.bf16.msra.mxu0 0
  %968 = vmatprep.subr.bf16.mxu0 0
  %969 = vmatpush1.bf16.msra.mxu0 0
  %970 = vmatprep.subr.bf16.mxu0 0
  %971 = vmatpush1.bf16.msra.mxu0 0
  %972 = vmatprep.subr.bf16.mxu0 0
  %973 = vmatpush1.bf16.msra.mxu0 0
  %974 = vmatprep.subr.bf16.mxu0 0
  %975 = vmatpush1.bf16.msra.mxu0 0
  %976 = vmatprep.subr.bf16.mxu0 0
  %977 = vmatpush1.bf16.msra.mxu0 0
  %978 = vmatprep.subr.bf16.mxu0 0
  %979 = vmatpush1.bf16.msra.mxu0 0
  %980 = vmatprep.subr.bf16.mxu0 0
  %981 = vmatpush1.bf16.msra.mxu0 0
  %982 = vmatprep.subr.bf16.mxu0 0
  %983 = vmatpush1.bf16.msra.mxu0 0
  %984 = vmatprep.mubr.bf16.mxu0 0
  %985 = vmatmul.mubr.bf16.gmra.mrb[0].mxu0 %v950
  %v986 = vpop.f32.mrb[0].mxu0
  %v987 = vadd.f32 %v334, %v986
  %v988 = vpop.f32.mrb[0].mxu0
  %v989 = vpop.f32.mrb[0].mxu0
  %v990 = vpop.f32.mrb[0].mxu0
  %991 = vdwg.mxu0
  %s992 = scalar_lea.vmem %s12, 40
  %993 = vst [vmem:[%s992] sm:$0xff] %v987
  %994 = vmax.xlane.f32.xlu0 %v987
  %v995 = vpop.xlane.xlu0 %994
  %vm996 = vcmp.eq.f32.partialorder %v987, %v995
  %v997 = vsel %vm996, %v337, 128
  %v998 = vand.u32 %v997, 65535
  %v999 = vshra.s32 %v997, 16
  %v1000 = vcvt.s32.f32 %v998
  %v1001 = vcvt.s32.f32 %v999
  %1002 = vmin.xlane.f32.xlu0 %v1001
  %v1003 = vpop.xlane.xlu0 %1002
  %vm1004 = vcmp.eq.f32.partialorder %v1001, %v1003
  %v1005 = vsel %vm1004, %v1000, inf
  %1006 = vmin.xlane.f32.xlu0 %v1005
  %v1007 = vpop.xlane.xlu0 %1006
  %v1008 = vcvt.f32.s32 %v1007
  %v1009 = vcvt.f32.s32 %v1003
  %v1010 = vshll.u32 %v1009, 16
  %v1011 = vadd.s32 %v1010, %v1008
  %vm1012 = vcmp.eq.s32.totalorder %v337, %v1011
  %v1013 = vsel %vm1012, 1, 0
  %v1014 = vcvt.s32.f32 %v1013
  %v1015 = vpack.c.bf16 %v1014, %v1014
  %1016 = vmatprep.subr.bf16.mxu0 %v294
  %1017 = vmatpush1.bf16.msra.mxu0 %v293
  %1018 = vmatprep.subr.bf16.mxu0 %v296
  %1019 = vmatpush1.bf16.msra.mxu0 %v295
  %1020 = vmatprep.subr.bf16.mxu0 %v298
  %1021 = vmatpush1.bf16.msra.mxu0 %v297
  %1022 = vmatprep.subr.bf16.mxu0 %v300
  %1023 = vmatpush1.bf16.msra.mxu0 %v299
  %1024 = vmatprep.subr.bf16.mxu0 %v302
  %1025 = vmatpush1.bf16.msra.mxu0 %v301
  %1026 = vmatprep.subr.bf16.mxu0 %v304
  %1027 = vmatpush1.bf16.msra.mxu0 %v303
  %1028 = vmatprep.subr.bf16.mxu0 %v306
  %1029 = vmatpush1.bf16.msra.mxu0 %v305
  %1030 = vmatprep.subr.bf16.mxu0 %v308
  %1031 = vmatpush1.bf16.msra.mxu0 %v307
  %1032 = vmatprep.subr.bf16.mxu0 %v310
  %1033 = vmatpush1.bf16.msra.mxu0 %v309
  %1034 = vmatprep.subr.bf16.mxu0 %v312
  %1035 = vmatpush1.bf16.msra.mxu0 %v311
  %1036 = vmatprep.subr.bf16.mxu0 %v314
  %1037 = vmatpush1.bf16.msra.mxu0 %v313
  %1038 = vmatprep.subr.bf16.mxu0 %v316
  %1039 = vmatpush1.bf16.msra.mxu0 %v315
  %1040 = vmatprep.subr.bf16.mxu0 0
  %1041 = vmatpush1.bf16.msra.mxu0 0
  %1042 = vmatprep.subr.bf16.mxu0 0
  %1043 = vmatpush1.bf16.msra.mxu0 0
  %1044 = vmatprep.subr.bf16.mxu0 0
  %1045 = vmatpush1.bf16.msra.mxu0 0
  %1046 = vmatprep.subr.bf16.mxu0 0
  %1047 = vmatpush1.bf16.msra.mxu0 0
  %1048 = vmatprep.mubr.bf16.mxu0 %v950
  %1049 = vmatmul.mubr.bf16.gmra.mrb[0].mxu0 %v1015
  %v1050 = vpop.f32.mrb[0].mxu0
  %v1051 = vadd.f32 %v243, %v1050
  %v1052 = vpop.f32.mrb[0].mxu0
  %v1053 = vadd.f32 %v244, %v1052
  %v1054 = vpop.f32.mrb[0].mxu0
  %v1055 = vpop.f32.mrb[0].mxu0
  %1056 = vdwg.mxu0
  %v1057 = vxor.u32 %v1051, 2147483648
  %v1058 = vmul.f32 %v1057, 1.442695
  %v1059 = vpow.pop %v1058
  %v1060 = vadd.f32 %v1059, 1.0
  %v1061 = vrcp.pop %v1060
  %v1062 = vmul.f32 1.0, %v1061
  %1064 = vrot.lane.b32.xlu0 %v1053, 64
  %v1065 = vpop.permute.xlu0 %1064
  %v1067 = vmul.f32 %v1062, %v1065
  %v1068 = vadd.f32 %v1053, %v1067
  %v1069 = vtanh.pop %v1068
  %v1070 = vsub.f32 1.0, %v1062
  %1072 = vrot.lane.b32.xlu0 %v1069, 64
  %v1073 = vpop.permute.xlu0 %1072
  %v1075 = vmul.f32 %v1070, %v1073
  %v1076 = vmul.f32 %v1062, %v944
  %v1077 = vadd.f32 %v1075, %v1076
  %v1078 = vpack.c.bf16 %v1077, %v1077
  %1080 = vrot.lane.b32.xlu0 %v1078, 64
  %v1081 = vpop.permute.xlu0 %1080
  %v1083 = vsel %vm66, %v1081, 0
  %1085 = vmatprep.subr.bf16.mxu0 0
  %1086 = vmatpush1.bf16.msra.mxu0 %v325
  %1087 = vmatprep.subr.bf16.mxu0 0
  %1088 = vmatpush1.bf16.msra.mxu0 %v326
  %1089 = vmatprep.subr.bf16.mxu0 0
  %1090 = vmatpush1.bf16.msra.mxu0 %v327
  %1091 = vmatprep.subr.bf16.mxu0 0
  %1092 = vmatpush1.bf16.msra.mxu0 %v328
  %1093 = vmatprep.subr.bf16.mxu0 0
  %1094 = vmatpush1.bf16.msra.mxu0 0
  %1095 = vmatprep.subr.bf16.mxu0 0
  %1096 = vmatpush1.bf16.msra.mxu0 0
  %1097 = vmatprep.subr.bf16.mxu0 0
  %1098 = vmatpush1.bf16.msra.mxu0 0
  %1099 = vmatprep.subr.bf16.mxu0 0
  %1100 = vmatpush1.bf16.msra.mxu0 0
  %1101 = vmatprep.subr.bf16.mxu0 0
  %1102 = vmatpush1.bf16.msra.mxu0 0
  %1103 = vmatprep.subr.bf16.mxu0 0
  %1104 = vmatpush1.bf16.msra.mxu0 0
  %1105 = vmatprep.subr.bf16.mxu0 0
  %1106 = vmatpush1.bf16.msra.mxu0 0
  %1107 = vmatprep.subr.bf16.mxu0 0
  %1108 = vmatpush1.bf16.msra.mxu0 0
  %1109 = vmatprep.subr.bf16.mxu0 0
  %1110 = vmatpush1.bf16.msra.mxu0 0
  %1111 = vmatprep.subr.bf16.mxu0 0
  %1112 = vmatpush1.bf16.msra.mxu0 0
  %1113 = vmatprep.subr.bf16.mxu0 0
  %1114 = vmatpush1.bf16.msra.mxu0 0
  %1115 = vmatprep.subr.bf16.mxu0 0
  %1116 = vmatpush1.bf16.msra.mxu0 0
  %1117 = vmatprep.mubr.bf16.mxu0 0
  %1118 = vmatmul.mubr.bf16.gmra.mrb[0].mxu0 %v1083
  %v1119 = vpop.f32.mrb[0].mxu0
  %v1120 = vadd.f32 %v334, %v1119
  %v1121 = vpop.f32.mrb[0].mxu0
  %v1122 = vpop.f32.mrb[0].mxu0
  %v1123 = vpop.f32.mrb[0].mxu0
  %1124 = vdwg.mxu0
  %s1125 = scalar_lea.vmem %s12, 48
  %1126 = vst [vmem:[%s1125] sm:$0xff] %v1120
  %1127 = vmax.xlane.f32.xlu0 %v1120
  %v1128 = vpop.xlane.xlu0 %1127
  %vm1129 = vcmp.eq.f32.partialorder %v1120, %v1128
  %v1130 = vsel %vm1129, %v337, 128
  %v1131 = vand.u32 %v1130, 65535
  %v1132 = vshra.s32 %v1130, 16
  %v1133 = vcvt.s32.f32 %v1131
  %v1134 = vcvt.s32.f32 %v1132
  %1135 = vmin.xlane.f32.xlu0 %v1134
  %v1136 = vpop.xlane.xlu0 %1135
  %vm1137 = vcmp.eq.f32.partialorder %v1134, %v1136
  %v1138 = vsel %vm1137, %v1133, inf
  %1139 = vmin.xlane.f32.xlu0 %v1138
  %v1140 = vpop.xlane.xlu0 %1139
  %v1141 = vcvt.f32.s32 %v1140
  %v1142 = vcvt.f32.s32 %v1136
  %v1143 = vshll.u32 %v1142, 16
  %v1144 = vadd.s32 %v1143, %v1141
  %vm1145 = vcmp.eq.s32.totalorder %v337, %v1144
  %v1146 = vsel %vm1145, 1, 0
  %v1147 = vcvt.s32.f32 %v1146
  %v1148 = vpack.c.bf16 %v1147, %v1147
  %1149 = vmatprep.subr.bf16.mxu0 %v294
  %1150 = vmatpush1.bf16.msra.mxu0 %v293
  %1151 = vmatprep.subr.bf16.mxu0 %v296
  %1152 = vmatpush1.bf16.msra.mxu0 %v295
  %1153 = vmatprep.subr.bf16.mxu0 %v298
  %1154 = vmatpush1.bf16.msra.mxu0 %v297
  %1155 = vmatprep.subr.bf16.mxu0 %v300
  %1156 = vmatpush1.bf16.msra.mxu0 %v299
  %1157 = vmatprep.subr.bf16.mxu0 %v302
  %1158 = vmatpush1.bf16.msra.mxu0 %v301
  %1159 = vmatprep.subr.bf16.mxu0 %v304
  %1160 = vmatpush1.bf16.msra.mxu0 %v303
  %1161 = vmatprep.subr.bf16.mxu0 %v306
  %1162 = vmatpush1.bf16.msra.mxu0 %v305
  %1163 = vmatprep.subr.bf16.mxu0 %v308
  %1164 = vmatpush1.bf16.msra.mxu0 %v307
  %1165 = vmatprep.subr.bf16.mxu0 %v310
  %1166 = vmatpush1.bf16.msra.mxu0 %v309
  %1167 = vmatprep.subr.bf16.mxu0 %v312
  %1168 = vmatpush1.bf16.msra.mxu0 %v311
  %1169 = vmatprep.subr.bf16.mxu0 %v314
  %1170 = vmatpush1.bf16.msra.mxu0 %v313
  %1171 = vmatprep.subr.bf16.mxu0 %v316
  %1172 = vmatpush1.bf16.msra.mxu0 %v315
  %1173 = vmatprep.subr.bf16.mxu0 0
  %1174 = vmatpush1.bf16.msra.mxu0 0
  %1175 = vmatprep.subr.bf16.mxu0 0
  %1176 = vmatpush1.bf16.msra.mxu0 0
  %1177 = vmatprep.subr.bf16.mxu0 0
  %1178 = vmatpush1.bf16.msra.mxu0 0
  %1179 = vmatprep.subr.bf16.mxu0 0
  %1180 = vmatpush1.bf16.msra.mxu0 0
  %1181 = vmatprep.mubr.bf16.mxu0 %v1083
  %1182 = vmatmul.mubr.bf16.gmra.mrb[0].mxu0 %v1148
  %v1183 = vpop.f32.mrb[0].mxu0
  %v1184 = vadd.f32 %v243, %v1183
  %v1185 = vpop.f32.mrb[0].mxu0
  %v1186 = vadd.f32 %v244, %v1185
  %v1187 = vpop.f32.mrb[0].mxu0
  %v1188 = vpop.f32.mrb[0].mxu0
  %1189 = vdwg.mxu0
  %v1190 = vxor.u32 %v1184, 2147483648
  %v1191 = vmul.f32 %v1190, 1.442695
  %v1192 = vpow.pop %v1191
  %v1193 = vadd.f32 %v1192, 1.0
  %v1194 = vrcp.pop %v1193
  %v1195 = vmul.f32 1.0, %v1194
  %1197 = vrot.lane.b32.xlu0 %v1186, 64
  %v1198 = vpop.permute.xlu0 %1197
  %v1200 = vmul.f32 %v1195, %v1198
  %v1201 = vadd.f32 %v1186, %v1200
  %v1202 = vtanh.pop %v1201
  %v1203 = vsub.f32 1.0, %v1195
  %1205 = vrot.lane.b32.xlu0 %v1202, 64
  %v1206 = vpop.permute.xlu0 %1205
  %v1208 = vmul.f32 %v1203, %v1206
  %v1209 = vmul.f32 %v1195, %v1077
  %v1210 = vadd.f32 %v1208, %v1209
  %v1211 = vpack.c.bf16 %v1210, %v1210
  %1213 = vrot.lane.b32.xlu0 %v1211, 64
  %v1214 = vpop.permute.xlu0 %1213
  %v1216 = vsel %vm66, %v1214, 0
  %1218 = vmatprep.subr.bf16.mxu0 0
  %1219 = vmatpush1.bf16.msra.mxu0 %v325
  %1220 = vmatprep.subr.bf16.mxu0 0
  %1221 = vmatpush1.bf16.msra.mxu0 %v326
  %1222 = vmatprep.subr.bf16.mxu0 0
  %1223 = vmatpush1.bf16.msra.mxu0 %v327
  %1224 = vmatprep.subr.bf16.mxu0 0
  %1225 = vmatpush1.bf16.msra.mxu0 %v328
  %1226 = vmatprep.subr.bf16.mxu0 0
  %1227 = vmatpush1.bf16.msra.mxu0 0
  %1228 = vmatprep.subr.bf16.mxu0 0
  %1229 = vmatpush1.bf16.msra.mxu0 0
  %1230 = vmatprep.subr.bf16.mxu0 0
  %1231 = vmatpush1.bf16.msra.mxu0 0
  %1232 = vmatprep.subr.bf16.mxu0 0
  %1233 = vmatpush1.bf16.msra.mxu0 0
  %1234 = vmatprep.subr.bf16.mxu0 0
  %1235 = vmatpush1.bf16.msra.mxu0 0
  %1236 = vmatprep.subr.bf16.mxu0 0
  %1237 = vmatpush1.bf16.msra.mxu0 0
  %1238 = vmatprep.subr.bf16.mxu0 0
  %1239 = vmatpush1.bf16.msra.mxu0 0
  %1240 = vmatprep.subr.bf16.mxu0 0
  %1241 = vmatpush1.bf16.msra.mxu0 0
  %1242 = vmatprep.subr.bf16.mxu0 0
  %1243 = vmatpush1.bf16.msra.mxu0 0
  %1244 = vmatprep.subr.bf16.mxu0 0
  %1245 = vmatpush1.bf16.msra.mxu0 0
  %1246 = vmatprep.subr.bf16.mxu0 0
  %1247 = vmatpush1.bf16.msra.mxu0 0
  %1248 = vmatprep.subr.bf16.mxu0 0
  %1249 = vmatpush1.bf16.msra.mxu0 0
  %1250 = vmatprep.mubr.bf16.mxu0 0
  %1251 = vmatmul.mubr.bf16.gmra.mrb[0].mxu0 %v1216
  %v1252 = vpop.f32.mrb[0].mxu0
  %v1253 = vadd.f32 %v334, %v1252
  %v1254 = vpop.f32.mrb[0].mxu0
  %v1255 = vpop.f32.mrb[0].mxu0
  %v1256 = vpop.f32.mrb[0].mxu0
  %1257 = vdwg.mxu0
  %s1258 = scalar_lea.vmem %s12, 56
  %1259 = vst [vmem:[%s1258] sm:$0xff] %v1253
  // Predicated region
  $region50: #{l_msvae_forward.3} parent=0 // pred_check
    _
  $region51: #{l_msvae_forward.3} parent=0 // pred_check_branch
    %1261 = sbr.rel (0) target = $region53
  $region52: #{l_msvae_forward.3} parent=0 // pred_region
    _
  $region53: #{l_msvae_forward.3} parent=0 // pred_fallthru
    _
  // Predicated region
  $region54: #{l_msvae_forward.3} parent=0 // pred_check
    _
  $region55: #{l_msvae_forward.3} parent=0 // pred_check_branch
    %1263 = sbr.rel (0) target = $region57
  $region56: #{l_msvae_forward.3} parent=0 // pred_region
    _
  $region57: #{l_msvae_forward.3} parent=0 // pred_fallthru
    _
  // Predicated region
  $region58: #{l_msvae_forward.3} parent=0 // pred_check
    _
  $region59: #{l_msvae_forward.3} parent=0 // pred_check_branch
    %1265 = sbr.rel (0) target = $region61
  $region60: #{l_msvae_forward.3} parent=0 // pred_region
    _
  $region61: #{l_msvae_forward.3} parent=0 // pred_fallthru
    _
  // Predicated region
  $region62: #{l_msvae_forward.3} parent=0 // pred_check
    _
  $region63: #{l_msvae_forward.3} parent=0 // pred_check_branch
    %1267 = sbr.rel (0) target = $region65
  $region64: #{l_msvae_forward.3} parent=0 // pred_region
    _
  $region65: #{l_msvae_forward.3} parent=0 // pred_fallthru
    _
  // Predicated region
  $region66: #{l_msvae_forward.3} parent=0 // pred_check
    _
  $region67: #{l_msvae_forward.3} parent=0 // pred_check_branch
    %1269 = sbr.rel (0) target = $region69
  $region68: #{l_msvae_forward.3} parent=0 // pred_region
    _
  $region69: #{l_msvae_forward.3} parent=0 // pred_fallthru
    _
  // Predicated region
  $region70: #{l_msvae_forward.3} parent=0 // pred_check
    _
  $region71: #{l_msvae_forward.3} parent=0 // pred_check_branch
    %1271 = sbr.rel (0) target = $region73
  $region72: #{l_msvae_forward.3} parent=0 // pred_region
    _
  $region73: #{l_msvae_forward.3} parent=0 // pred_fallthru
    _

</llo_original>
